<compile_context>
chip_gen: v6e
topology: v6e:2x2x1
jax: 0.10.0
libtpu: 0.0.40
codegen_flags: <defaults>
</compile_context>

<pallas_src>
import functools

import jax
import jax.numpy as jnp
from jax.experimental import pallas as pl
from jax.experimental.pallas import tpu as pltpu

EPS = 1e-5


# ----------------------------------------------------------------------------
# Fused Pallas kernel: mapping (1x1 conv + BN) -> im2col -> dynamic 3x3 conv
#                      -> batched attention mix -> BN -> ReLU -> GAP
# ----------------------------------------------------------------------------
def _fused_kernel(x_ref, valid_ref, pool_ref, onehot_ref, expand_ref, summat_ref,
                  wmap_ref, mscale_ref, mbias_ref,
                  wconv_ref, cbias_ref,
                  fc1w_ref, fc1b_ref, fc2w_ref, fc2b_ref,
                  bns_ref, bnb_ref,
                  o_ref,
                  patch_ref,
                  *, B, H, W, Nd, K, emb, PAD):
    HW = H * W
    M = B * HW

    # ---- 1x1 mapping conv + folded BatchNorm, whole batch at once -----------
    mapped = jnp.dot(x_ref[...], wmap_ref[...],
                     preferred_element_type=jnp.float32)               # (M, Nd)
    mapped = mapped * mscale_ref[...] + mbias_ref[...]

    # ---- build the im2col slab with 9 shifted staging stores ----------------
    # Tap t=(kh,kw) owns lanes [t*Nd, (t+1)*Nd) and is written row-shifted by
    # -s_t, so ONE aligned read of rows [PAD, PAD+M) yields the full (M, 9*Nd)
    # patch matrix (no shifted re-reads, no shallow matmul accumulation).
    for kh in range(3):
        for kw in range(3):
            t = kh * 3 + kw
            s = (kh - 1) * W + (kw - 1)
            patch_ref[pl.ds(PAD - s, M), pl.ds(t * Nd, Nd)] = mapped

    slab = patch_ref[pl.ds(PAD, M), :]                                  # (M, 9*Nd)
    # SAME zero padding + no cross-sample bleed.  Select (not multiply) so the
    # never-written border rows of the scratch are safe without a zero-fill.
    slab = jnp.where(valid_ref[...] != 0.0, slab, 0.0)

    # ---- dynamic 3x3 conv: ONE deep matmul over all K experts ---------------
    acc = jnp.dot(slab, wconv_ref[...],
                  preferred_element_type=jnp.float32)                   # (M, K*emb)

    # ---- attention tail, fully batch-vectorized ------------------------------
    pooled = jnp.dot(pool_ref[...], mapped,
                     preferred_element_type=jnp.float32)                # (B, Nd)
    h = jnp.dot(pooled, fc1w_ref[...],
                preferred_element_type=jnp.float32) + fc1b_ref[...]
    h = jnp.maximum(h, 0.0)
    logits = jnp.dot(h, fc2w_ref[...],
                     preferred_element_type=jnp.float32) + fc2b_ref[...]
    logits = logits - jnp.max(logits, axis=-1, keepdims=True)
    ez = jnp.exp(logits)
    att = ez * pl.reciprocal(jnp.sum(ez, axis=-1, keepdims=True), approx=True)  # (B, K)

    # Broadcast attention over all rows / lane blocks, mix expert outputs
    # (conv is linear => output-mix == weight-mix), mix biases, BN, ReLU, GAP.
    att_rows = jnp.dot(onehot_ref[...], att,
                       preferred_element_type=jnp.float32)              # (M, K)
    att_slab = jnp.dot(att_rows, expand_ref[...],
                       preferred_element_type=jnp.float32)              # (M, K*emb)
    mixed = jnp.dot(att_slab * acc, summat_ref[...],
                    preferred_element_type=jnp.float32)                 # (M, emb)
    b_all = jnp.dot(att_rows, cbias_ref[...],
                    preferred_element_type=jnp.float32)                 # (M, emb)

    y = (mixed + b_all) * bns_ref[...] + bnb_ref[...]                   # BatchNorm
    y = jnp.maximum(y, 0.0)                                             # ReLU
    o_ref[...] = jnp.dot(pool_ref[...], y,
                         preferred_element_type=jnp.float32)            # GAP -> (B, emb)


# ----------------------------------------------------------------------------
# Parameter construction (deterministic, synthetic)
# ----------------------------------------------------------------------------
def _bn_fold(gamma, beta, mean, var):
    scale = gamma / jnp.sqrt(var + EPS)
    bias = beta - mean * scale
    return scale, bias


def init_mapping(key, in_dim, n_dim):
    k1, k2, k3, k4, k5 = jax.random.split(key, 5)
    w = jax.random.normal(k1, (n_dim, in_dim, 1, 1), jnp.float32) * 0.1   # Conv2d(in,out,1) no bias
    gamma = 1.0 + 0.1 * jax.random.normal(k2, (n_dim,), jnp.float32)
    beta = 0.1 * jax.random.normal(k3, (n_dim,), jnp.float32)
    mean = 0.1 * jax.random.normal(k4, (n_dim,), jnp.float32)
    var = 1.0 + 0.1 * jax.random.uniform(k5, (n_dim,), jnp.float32)
    scale, bias = _bn_fold(gamma, beta, mean, var)
    return {
        "w": jnp.transpose(w[:, :, 0, 0], (1, 0)),   # (in_dim, n_dim)
        "scale": scale[None, :],
        "bias": bias[None, :],
    }


def init_dyconv(key, n_dim, emb, K=4):
    ks = jax.random.split(key, 10)
    hidden = max(n_dim // 4, 4)
    conv_w = jax.random.normal(ks[0], (K, emb, n_dim, 3, 3), jnp.float32) * 0.05
    conv_b = 0.05 * jax.random.normal(ks[1], (K, emb), jnp.float32)
    fc1_w = jax.random.normal(ks[2], (hidden, n_dim), jnp.float32) * 0.1
    fc1_b = 0.05 * jax.random.normal(ks[3], (hidden,), jnp.float32)
    fc2_w = jax.random.normal(ks[4], (K, hidden), jnp.float32) * 0.1
    fc2_b = 0.05 * jax.random.normal(ks[5], (K,), jnp.float32)
    gamma = 1.0 + 0.1 * jax.random.normal(ks[6], (emb,), jnp.float32)
    beta = 0.1 * jax.random.normal(ks[7], (emb,), jnp.float32)
    mean = 0.1 * jax.random.normal(ks[8], (emb,), jnp.float32)
    var = 1.0 + 0.1 * jax.random.uniform(ks[9], (emb,), jnp.float32)
    scale, bias = _bn_fold(gamma, beta, mean, var)
    # (K, emb, Cin, kh, kw) -> (kh, kw, Cin, K, emb) -> (9*Cin, K*emb): im2col weight layout.
    w_im2col = jnp.transpose(conv_w, (3, 4, 2, 0, 1)).reshape(9 * n_dim, K * emb)
    return {
        "conv_w_oihw": conv_w, "w_im2col": w_im2col, "conv_b": conv_b,
        "fc1_w": fc1_w, "fc1_b": fc1_b, "fc1_wT": fc1_w.T, "fc1_bR": fc1_b[None, :],
        "fc2_w": fc2_w, "fc2_b": fc2_b, "fc2_wT": fc2_w.T, "fc2_bR": fc2_b[None, :],
        "bn_scale": scale[None, :], "bn_bias": bias[None, :],
    }


def init_network(key, src_dim, tar_dim, n_dim, emb):
    k1, k2, k3 = jax.random.split(key, 3)
    return {
        "source_mapping": init_mapping(k1, src_dim, n_dim),
        "target_mapping": init_mapping(k2, tar_dim, n_dim),
        "feature_encoder": init_dyconv(k3, n_dim, emb),
    }


# ----------------------------------------------------------------------------
# Network forward: one fused pallas_call
# ----------------------------------------------------------------------------
@functools.partial(jax.jit, static_argnames=("domain",))
def network_forward(params, x_nchw, domain="source"):
    x = jnp.transpose(x_nchw.astype(jnp.float32), (0, 2, 3, 1))   # NCHW -> NHWC
    B, H, W, Cin = x.shape
    mp = params["target_mapping"] if domain == "target" else params["source_mapping"]
    fe = params["feature_encoder"]
    Nd = mp["w"].shape[1]
    K, emb = fe["conv_b"].shape
    HW = H * W
    M = B * HW
    PAD = 16                                  # >= W + 1 and multiple of 8 (aligned slab read)
    assert PAD >= W + 1, "PAD must cover the max 3x3 flat shift"

    x2d = x.reshape(M, Cin)

    # --- constants below are built from static shapes only -> folded at compile time ---
    r = jnp.arange(HW, dtype=jnp.int32) // W
    c = jnp.arange(HW, dtype=jnp.int32) % W
    cols = []
    for kh in range(3):
        for kw in range(3):
            dh, dw = kh - 1, kw - 1
            v = jnp.ones((HW,), bool)
            if dh == -1:
                v = v & (r >= 1)
            if dh == 1:
                v = v & (r <= H - 2)
            if dw == -1:
                v = v & (c >= 1)
            if dw == 1:
                v = v & (c <= W - 2)
            cols.append(jnp.broadcast_to(v[:, None], (HW, Nd)))
    valid = jnp.tile(jnp.concatenate(cols, axis=1).astype(jnp.float32), (B, 1))   # (M, 9*Nd)

    samp = jnp.arange(M, dtype=jnp.int32) // HW
    onehot = (samp[:, None] == jnp.arange(B, dtype=jnp.int32)[None, :]).astype(jnp.float32)  # (M, B)
    pool_mat = onehot.T / float(HW)                                                # (B, M)

    ke = jnp.arange(K * emb, dtype=jnp.int32)
    expander = (ke[None, :] // emb ==
                jnp.arange(K, dtype=jnp.int32)[:, None]).astype(jnp.float32)       # (K, K*emb)
    summat = (ke[:, None] % emb ==
              jnp.arange(emb, dtype=jnp.int32)[None, :]).astype(jnp.float32)       # (K*emb, emb)

    kernel = functools.partial(_fused_kernel,
                               B=B, H=H, W=W, Nd=Nd, K=K, emb=emb, PAD=PAD)
    out = pl.pallas_call(
        kernel,
        out_shape=jax.ShapeDtypeStruct((B, emb), jnp.float32),
        scratch_shapes=[
            pltpu.VMEM((PAD + M + PAD, 9 * Nd), jnp.float32),   # im2col staging slab
        ],
    )(
        x2d, valid, pool_mat, onehot, expander, summat,
        mp["w"], mp["scale"], mp["bias"],
        fe["w_im2col"], fe["conv_b"],
        fe["fc1_wT"], fe["fc1_bR"], fe["fc2_wT"], fe["fc2_bR"],
        fe["bn_scale"], fe["bn_bias"],
    )
    return out


# ----------------------------------------------------------------------------
# Pure-JAX reference (uses lax.conv) for verification
# ----------------------------------------------------------------------------
def network_ref(params, x_nchw, domain="source"):
    x = jnp.transpose(x_nchw.astype(jnp.float32), (0, 2, 3, 1))
    B, H, W, Cin = x.shape
    mp = params["target_mapping"] if domain == "target" else params["source_mapping"]
    x_mapped = (x.reshape(B, H * W, Cin) @ mp["w"]) * mp["scale"] + mp["bias"]
    Nd = x_mapped.shape[-1]
    fe = params["feature_encoder"]

    pooled = jnp.mean(x_mapped, axis=1)
    h = jax.nn.relu(pooled @ fe["fc1_w"].T + fe["fc1_b"])
    att = jax.nn.softmax(h @ fe["fc2_w"].T + fe["fc2_b"], axis=-1)
    w_agg = jnp.einsum("bk,koihw->boihw", att, fe["conv_w_oihw"])           # (B, emb, Nd, 3, 3)
    b_agg = att @ fe["conv_b"]

    x_img = x_mapped.reshape(B, H, W, Nd)

    def one(xi, wi, bi):
        y = jax.lax.conv_general_dilated(
            xi[None], wi, (1, 1), "SAME",
            dimension_numbers=("NHWC", "OIHW", "NHWC"))[0] + bi
        return y

    y = jax.vmap(one)(x_img, w_agg, b_agg)                                  # (B, H, W, emb)
    y = y * fe["bn_scale"][0] + fe["bn_bias"][0]
    y = jax.nn.relu(y)
    return jnp.mean(y, axis=(1, 2))


# ----------------------------------------------------------------------------
if __name__ == "__main__":
    # Small shapes consistent with the module (patch-based HSI classification).
    B = 2
    PATCH = 9                     # spatial patch size
    SRC_INPUT_DIMENSION = 12
    TAR_INPUT_DIMENSION = 8
    N_DIMENSION = 16
    EMB_SIZE = 32

    key = jax.random.PRNGKey(0)
    kp, kx1, kx2 = jax.random.split(key, 3)
    params = init_network(kp, SRC_INPUT_DIMENSION, TAR_INPUT_DIMENSION, N_DIMENSION, EMB_SIZE)

    x_src = jax.random.normal(kx1, (B, SRC_INPUT_DIMENSION, PATCH, PATCH), jnp.float32)
    x_tar = jax.random.normal(kx2, (B, TAR_INPUT_DIMENSION, PATCH, PATCH), jnp.float32)

    feat_src = jax.block_until_ready(network_forward(params, x_src, domain="source"))
    feat_tar = jax.block_until_ready(network_forward(params, x_tar, domain="target"))

    ref_src = network_ref(params, x_src, domain="source")
    ref_tar = network_ref(params, x_tar, domain="target")

    assert feat_src.shape == (B, EMB_SIZE) and feat_tar.shape == (B, EMB_SIZE)
    assert jnp.allclose(feat_src, ref_src, rtol=1e-2, atol=1e-2)
    assert jnp.allclose(feat_tar, ref_tar, rtol=1e-2, atol=1e-2)

    print("KERNEL_OK")
</pallas_src>

<mosaic_0001>
module attributes {stable_mosaic.version = 11 : i64} {
  func.func @_fused_kernel(%arg0: memref<162x12xf32, #tpu.memory_space<vmem>>, %arg1: memref<162x144xf32, #tpu.memory_space<vmem>>, %arg2: memref<2x162xf32, #tpu.memory_space<vmem>>, %arg3: memref<162x2xf32, #tpu.memory_space<vmem>>, %arg4: memref<4x128xf32, #tpu.memory_space<vmem>>, %arg5: memref<128x32xf32, #tpu.memory_space<vmem>>, %arg6: memref<12x16xf32, #tpu.memory_space<vmem>>, %arg7: memref<1x16xf32, #tpu.memory_space<vmem>>, %arg8: memref<1x16xf32, #tpu.memory_space<vmem>>, %arg9: memref<144x128xf32, #tpu.memory_space<vmem>>, %arg10: memref<4x32xf32, #tpu.memory_space<vmem>>, %arg11: memref<16x4xf32, #tpu.memory_space<vmem>>, %arg12: memref<1x4xf32, #tpu.memory_space<vmem>>, %arg13: memref<4x4xf32, #tpu.memory_space<vmem>>, %arg14: memref<1x4xf32, #tpu.memory_space<vmem>>, %arg15: memref<1x32xf32, #tpu.memory_space<vmem>>, %arg16: memref<1x32xf32, #tpu.memory_space<vmem>>, %arg17: memref<2x32xf32, #tpu.memory_space<vmem>>, %arg18: memref<194x144xf32, #tpu.memory_space<vmem>>) attributes {dimension_semantics = [], scalar_prefetch = 0 : i64, scratch_operands = 1 : i64, tpu.core_type = #tpu.core_type<tc>} {
    %c0 = arith.constant 0 : index
    %c0_0 = arith.constant 0 : index
    %0 = vector.load %arg0[%c0, %c0_0] : memref<162x12xf32, #tpu.memory_space<vmem>>, vector<162x12xf32>
    %c0_1 = arith.constant 0 : index
    %c0_2 = arith.constant 0 : index
    %1 = vector.load %arg6[%c0_1, %c0_2] : memref<12x16xf32, #tpu.memory_space<vmem>>, vector<12x16xf32>
    %cst = arith.constant dense<0.000000e+00> : vector<162x16xf32>
    %2 = tpu.matmul %0, %1, %cst {dimension_numbers = #tpu.dot_dimension_numbers<[1], [0], [0], [1], [0, 0, 1, 1], [], []>} : vector<162x12xf32>, vector<12x16xf32>, vector<162x16xf32> -> vector<162x16xf32>
    %c0_3 = arith.constant 0 : index
    %c0_4 = arith.constant 0 : index
    %3 = vector.load %arg7[%c0_3, %c0_4] : memref<1x16xf32, #tpu.memory_space<vmem>>, vector<1x16xf32>
    %4 = vector.broadcast %3 : vector<1x16xf32> to vector<162x16xf32>
    %5 = arith.mulf %2, %4 : vector<162x16xf32>
    %c0_5 = arith.constant 0 : index
    %c0_6 = arith.constant 0 : index
    %6 = vector.load %arg8[%c0_5, %c0_6] : memref<1x16xf32, #tpu.memory_space<vmem>>, vector<1x16xf32>
    %7 = vector.broadcast %6 : vector<1x16xf32> to vector<162x16xf32>
    %8 = arith.addf %5, %7 : vector<162x16xf32>
    %c26 = arith.constant 26 : index
    %c0_7 = arith.constant 0 : index
    %9 = vector.load %arg18[%c26, %c0_7] : memref<194x144xf32, #tpu.memory_space<vmem>>, vector<162x16xf32>
    tpu.vector_store %arg18[%c26, %c0_7], %8 {strides = array<i32>} : memref<194x144xf32, #tpu.memory_space<vmem>>, vector<162x16xf32>,
    %c25 = arith.constant 25 : index
    %c16 = arith.constant 16 : index
    %10 = vector.load %arg18[%c25, %c16] : memref<194x144xf32, #tpu.memory_space<vmem>>, vector<162x16xf32>
    tpu.vector_store %arg18[%c25, %c16], %8 {strides = array<i32>} : memref<194x144xf32, #tpu.memory_space<vmem>>, vector<162x16xf32>,
    %c24 = arith.constant 24 : index
    %c32 = arith.constant 32 : index
    %11 = vector.load %arg18[%c24, %c32] : memref<194x144xf32, #tpu.memory_space<vmem>>, vector<162x16xf32>
    tpu.vector_store %arg18[%c24, %c32], %8 {strides = array<i32>} : memref<194x144xf32, #tpu.memory_space<vmem>>, vector<162x16xf32>,
    %c17 = arith.constant 17 : index
    %c48 = arith.constant 48 : index
    %12 = vector.load %arg18[%c17, %c48] : memref<194x144xf32, #tpu.memory_space<vmem>>, vector<162x16xf32>
    tpu.vector_store %arg18[%c17, %c48], %8 {strides = array<i32>} : memref<194x144xf32, #tpu.memory_space<vmem>>, vector<162x16xf32>,
    %c16_8 = arith.constant 16 : index
    %c64 = arith.constant 64 : index
    %13 = vector.load %arg18[%c16_8, %c64] : memref<194x144xf32, #tpu.memory_space<vmem>>, vector<162x16xf32>
    tpu.vector_store %arg18[%c16_8, %c64], %8 {strides = array<i32>} : memref<194x144xf32, #tpu.memory_space<vmem>>, vector<162x16xf32>,
    %c15 = arith.constant 15 : index
    %c80 = arith.constant 80 : index
    %14 = vector.load %arg18[%c15, %c80] : memref<194x144xf32, #tpu.memory_space<vmem>>, vector<162x16xf32>
    tpu.vector_store %arg18[%c15, %c80], %8 {strides = array<i32>} : memref<194x144xf32, #tpu.memory_space<vmem>>, vector<162x16xf32>,
    %c8 = arith.constant 8 : index
    %c96 = arith.constant 96 : index
    %15 = vector.load %arg18[%c8, %c96] : memref<194x144xf32, #tpu.memory_space<vmem>>, vector<162x16xf32>
    tpu.vector_store %arg18[%c8, %c96], %8 {strides = array<i32>} : memref<194x144xf32, #tpu.memory_space<vmem>>, vector<162x16xf32>,
    %c7 = arith.constant 7 : index
    %c112 = arith.constant 112 : index
    %16 = vector.load %arg18[%c7, %c112] : memref<194x144xf32, #tpu.memory_space<vmem>>, vector<162x16xf32>
    tpu.vector_store %arg18[%c7, %c112], %8 {strides = array<i32>} : memref<194x144xf32, #tpu.memory_space<vmem>>, vector<162x16xf32>,
    %c6 = arith.constant 6 : index
    %c128 = arith.constant 128 : index
    %17 = vector.load %arg18[%c6, %c128] : memref<194x144xf32, #tpu.memory_space<vmem>>, vector<162x16xf32>
    tpu.vector_store %arg18[%c6, %c128], %8 {strides = array<i32>} : memref<194x144xf32, #tpu.memory_space<vmem>>, vector<162x16xf32>,
    %c16_9 = arith.constant 16 : index
    %c0_10 = arith.constant 0 : index
    %18 = vector.load %arg18[%c16_9, %c0_10] : memref<194x144xf32, #tpu.memory_space<vmem>>, vector<162x144xf32>
    %c0_11 = arith.constant 0 : index
    %c0_12 = arith.constant 0 : index
    %19 = vector.load %arg1[%c0_11, %c0_12] : memref<162x144xf32, #tpu.memory_space<vmem>>, vector<162x144xf32>
    %cst_13 = arith.constant 0.000000e+00 : f32
    %20 = vector.broadcast %cst_13 : f32 to vector<162x144xf32>
    %21 = arith.cmpf one, %19, %20 : vector<162x144xf32>
    %cst_14 = arith.constant 0.000000e+00 : f32
    %22 = vector.broadcast %cst_14 : f32 to vector<162x144xf32>
    %23 = arith.select %21, %18, %22 : vector<162x144xi1>, vector<162x144xf32>
    %c0_15 = arith.constant 0 : index
    %c0_16 = arith.constant 0 : index
    %24 = vector.load %arg9[%c0_15, %c0_16] : memref<144x128xf32, #tpu.memory_space<vmem>>, vector<144x128xf32>
    %cst_17 = arith.constant dense<0.000000e+00> : vector<162x128xf32>
    %25 = tpu.matmul %23, %24, %cst_17 {dimension_numbers = #tpu.dot_dimension_numbers<[1], [0], [0], [1], [0, 0, 1, 1], [], []>} : vector<162x144xf32>, vector<144x128xf32>, vector<162x128xf32> -> vector<162x128xf32>
    %c0_18 = arith.constant 0 : index
    %c0_19 = arith.constant 0 : index
    %26 = vector.load %arg2[%c0_18, %c0_19] : memref<2x162xf32, #tpu.memory_space<vmem>>, vector<2x162xf32>
    %cst_20 = arith.constant dense<0.000000e+00> : vector<2x16xf32>
    %27 = tpu.matmul %26, %8, %cst_20 {dimension_numbers = #tpu.dot_dimension_numbers<[1], [0], [0], [1], [0, 0, 1, 1], [], []>} : vector<2x162xf32>, vector<162x16xf32>, vector<2x16xf32> -> vector<2x16xf32>
    %c0_21 = arith.constant 0 : index
    %c0_22 = arith.constant 0 : index
    %28 = vector.load %arg11[%c0_21, %c0_22] : memref<16x4xf32, #tpu.memory_space<vmem>>, vector<16x4xf32>
    %cst_23 = arith.constant dense<0.000000e+00> : vector<2x4xf32>
    %29 = tpu.matmul %27, %28, %cst_23 {dimension_numbers = #tpu.dot_dimension_numbers<[1], [0], [0], [1], [0, 0, 1, 1], [], []>} : vector<2x16xf32>, vector<16x4xf32>, vector<2x4xf32> -> vector<2x4xf32>
    %c0_24 = arith.constant 0 : index
    %c0_25 = arith.constant 0 : index
    %30 = vector.load %arg12[%c0_24, %c0_25] : memref<1x4xf32, #tpu.memory_space<vmem>>, vector<1x4xf32>
    %31 = vector.broadcast %30 : vector<1x4xf32> to vector<2x4xf32>
    %32 = arith.addf %29, %31 : vector<2x4xf32>
    %cst_26 = arith.constant 0.000000e+00 : f32
    %33 = vector.broadcast %cst_26 : f32 to vector<2x4xf32>
    %34 = arith.maximumf %32, %33 : vector<2x4xf32>
    %c0_27 = arith.constant 0 : index
    %c0_28 = arith.constant 0 : index
    %35 = vector.load %arg13[%c0_27, %c0_28] : memref<4x4xf32, #tpu.memory_space<vmem>>, vector<4x4xf32>
    %cst_29 = arith.constant dense<0.000000e+00> : vector<2x4xf32>
    %36 = tpu.matmul %34, %35, %cst_29 {dimension_numbers = #tpu.dot_dimension_numbers<[1], [0], [0], [1], [0, 0, 1, 1], [], []>} : vector<2x4xf32>, vector<4x4xf32>, vector<2x4xf32> -> vector<2x4xf32>
    %c0_30 = arith.constant 0 : index
    %c0_31 = arith.constant 0 : index
    %37 = vector.load %arg14[%c0_30, %c0_31] : memref<1x4xf32, #tpu.memory_space<vmem>>, vector<1x4xf32>
    %38 = vector.broadcast %37 : vector<1x4xf32> to vector<2x4xf32>
    %39 = arith.addf %36, %38 : vector<2x4xf32>
    %cst_32 = arith.constant dense<0xFF800000> : vector<2xf32>
    %40 = vector.multi_reduction <maximumf>, %39, %cst_32 [1] : vector<2x4xf32> to vector<2xf32>
    %41 = vector.shape_cast %40 : vector<2xf32> to vector<2x1xf32>
    %42 = vector.broadcast %41 : vector<2x1xf32> to vector<2x4xf32>
    %43 = arith.subf %39, %42 : vector<2x4xf32>
    %44 = math.exp %43 : vector<2x4xf32>
    %cst_33 = arith.constant dense<0.000000e+00> : vector<2xf32>
    %45 = vector.multi_reduction <add>, %44, %cst_33 [1] : vector<2x4xf32> to vector<2xf32>
    %46 = vector.shape_cast %45 : vector<2xf32> to vector<2x1xf32>
    %47 = tpu.reciprocal %46 {approx = true} : vector<2x1xf32> -> vector<2x1xf32>
    %48 = vector.broadcast %47 : vector<2x1xf32> to vector<2x4xf32>
    %49 = arith.mulf %44, %48 : vector<2x4xf32>
    %c0_34 = arith.constant 0 : index
    %c0_35 = arith.constant 0 : index
    %50 = vector.load %arg3[%c0_34, %c0_35] : memref<162x2xf32, #tpu.memory_space<vmem>>, vector<162x2xf32>
    %cst_36 = arith.constant dense<0.000000e+00> : vector<162x4xf32>
    %51 = tpu.matmul %50, %49, %cst_36 {dimension_numbers = #tpu.dot_dimension_numbers<[1], [0], [0], [1], [0, 0, 1, 1], [], []>} : vector<162x2xf32>, vector<2x4xf32>, vector<162x4xf32> -> vector<162x4xf32>
    %c0_37 = arith.constant 0 : index
    %c0_38 = arith.constant 0 : index
    %52 = vector.load %arg4[%c0_37, %c0_38] : memref<4x128xf32, #tpu.memory_space<vmem>>, vector<4x128xf32>
    %cst_39 = arith.constant dense<0.000000e+00> : vector<162x128xf32>
    %53 = tpu.matmul %51, %52, %cst_39 {dimension_numbers = #tpu.dot_dimension_numbers<[1], [0], [0], [1], [0, 0, 1, 1], [], []>} : vector<162x4xf32>, vector<4x128xf32>, vector<162x128xf32> -> vector<162x128xf32>
    %54 = arith.mulf %53, %25 : vector<162x128xf32>
    %c0_40 = arith.constant 0 : index
    %c0_41 = arith.constant 0 : index
    %55 = vector.load %arg5[%c0_40, %c0_41] : memref<128x32xf32, #tpu.memory_space<vmem>>, vector<128x32xf32>
    %cst_42 = arith.constant dense<0.000000e+00> : vector<162x32xf32>
    %56 = tpu.matmul %54, %55, %cst_42 {dimension_numbers = #tpu.dot_dimension_numbers<[1], [0], [0], [1], [0, 0, 1, 1], [], []>} : vector<162x128xf32>, vector<128x32xf32>, vector<162x32xf32> -> vector<162x32xf32>
    %c0_43 = arith.constant 0 : index
    %c0_44 = arith.constant 0 : index
    %57 = vector.load %arg10[%c0_43, %c0_44] : memref<4x32xf32, #tpu.memory_space<vmem>>, vector<4x32xf32>
    %cst_45 = arith.constant dense<0.000000e+00> : vector<162x32xf32>
    %58 = tpu.matmul %51, %57, %cst_45 {dimension_numbers = #tpu.dot_dimension_numbers<[1], [0], [0], [1], [0, 0, 1, 1], [], []>} : vector<162x4xf32>, vector<4x32xf32>, vector<162x32xf32> -> vector<162x32xf32>
    %59 = arith.addf %56, %58 : vector<162x32xf32>
    %c0_46 = arith.constant 0 : index
    %c0_47 = arith.constant 0 : index
    %60 = vector.load %arg15[%c0_46, %c0_47] : memref<1x32xf32, #tpu.memory_space<vmem>>, vector<1x32xf32>
    %61 = vector.broadcast %60 : vector<1x32xf32> to vector<162x32xf32>
    %62 = arith.mulf %59, %61 : vector<162x32xf32>
    %c0_48 = arith.constant 0 : index
    %c0_49 = arith.constant 0 : index
    %63 = vector.load %arg16[%c0_48, %c0_49] : memref<1x32xf32, #tpu.memory_space<vmem>>, vector<1x32xf32>
    %64 = vector.broadcast %63 : vector<1x32xf32> to vector<162x32xf32>
    %65 = arith.addf %62, %64 : vector<162x32xf32>
    %cst_50 = arith.constant 0.000000e+00 : f32
    %66 = vector.broadcast %cst_50 : f32 to vector<162x32xf32>
    %67 = arith.maximumf %65, %66 : vector<162x32xf32>
    %c0_51 = arith.constant 0 : index
    %c0_52 = arith.constant 0 : index
    %68 = vector.load %arg2[%c0_51, %c0_52] : memref<2x162xf32, #tpu.memory_space<vmem>>, vector<2x162xf32>
    %cst_53 = arith.constant dense<0.000000e+00> : vector<2x32xf32>
    %69 = tpu.matmul %68, %67, %cst_53 {dimension_numbers = #tpu.dot_dimension_numbers<[1], [0], [0], [1], [0, 0, 1, 1], [], []>} : vector<2x162xf32>, vector<162x32xf32>, vector<2x32xf32> -> vector<2x32xf32>
    %c0_54 = arith.constant 0 : index
    %c0_55 = arith.constant 0 : index
    %70 = vector.load %arg17[%c0_54, %c0_55] : memref<2x32xf32, #tpu.memory_space<vmem>>, vector<2x32xf32>
    tpu.vector_store %arg17[%c0_54, %c0_55], %69 {strides = array<i32>} : memref<2x32xf32, #tpu.memory_space<vmem>>, vector<2x32xf32>,
    return
  }
}

</mosaic_0001>

<llo_original>
// kernel: tile.9
$region0: #{tile.9}
  %s0 = inlined_call_operand.vmem [shape: f32[2,81,144], index: 0, kind: input, shape index: {}]
  %s1 = inlined_call_operand.vmem [shape: f32[162,144], index: 1, kind: output, shape index: {}]
  $region1: #{tile.9} parent=0
    #allocation0 [shape = 'u8[589824]{0}', space=vmem, size = 0x90000, scoped, tag = 'scoped mem for input reshape']
    %s3 = sshll.u32 1, 2
    %s4 = ssub.s32 %s3, 1
    %s5 = smul.addr 2, 143
    %s6 = scalar_lea.vmem %s0, %s5
    %v7 = vld [vmem:[%s6] sm:%s4]
    %s8 = scalar_lea.vmem [#allocation0], 1144
    %9 = vst [vmem:[%s8] sm:%s4] %v7
    %s10 = smul.addr 2, 142
    %s11 = scalar_lea.vmem %s0, %s10
    %v12 = vld [vmem:[%s11] sm:%s4]
    %s13 = scalar_lea.vmem [#allocation0], 1136
    %14 = vst [vmem:[%s13] sm:%s4] %v12
    %s15 = smul.addr 2, 141
    %s16 = scalar_lea.vmem %s0, %s15
    %v17 = vld [vmem:[%s16] sm:%s4]
    %s18 = scalar_lea.vmem [#allocation0], 1128
    %19 = vst [vmem:[%s18] sm:%s4] %v17
    %s20 = smul.addr 2, 140
    %s21 = scalar_lea.vmem %s0, %s20
    %v22 = vld [vmem:[%s21] sm:%s4]
    %s23 = scalar_lea.vmem [#allocation0], 1120
    %24 = vst [vmem:[%s23] sm:%s4] %v22
    %s25 = smul.addr 2, 139
    %s26 = scalar_lea.vmem %s0, %s25
    %v27 = vld [vmem:[%s26] sm:%s4]
    %s28 = scalar_lea.vmem [#allocation0], 1112
    %29 = vst [vmem:[%s28] sm:%s4] %v27
    %s30 = smul.addr 2, 138
    %s31 = scalar_lea.vmem %s0, %s30
    %v32 = vld [vmem:[%s31] sm:%s4]
    %s33 = scalar_lea.vmem [#allocation0], 1104
    %34 = vst [vmem:[%s33] sm:%s4] %v32
    %s35 = smul.addr 2, 137
    %s36 = scalar_lea.vmem %s0, %s35
    %v37 = vld [vmem:[%s36] sm:%s4]
    %s38 = scalar_lea.vmem [#allocation0], 1096
    %39 = vst [vmem:[%s38] sm:%s4] %v37
    %s40 = smul.addr 2, 136
    %s41 = scalar_lea.vmem %s0, %s40
    %v42 = vld [vmem:[%s41] sm:%s4]
    %s43 = scalar_lea.vmem [#allocation0], 1088
    %44 = vst [vmem:[%s43] sm:%s4] %v42
    %s45 = smul.addr 2, 135
    %s46 = scalar_lea.vmem %s0, %s45
    %v47 = vld [vmem:[%s46] sm:%s4]
    %s48 = scalar_lea.vmem [#allocation0], 1080
    %49 = vst [vmem:[%s48] sm:%s4] %v47
    %s50 = smul.addr 2, 134
    %s51 = scalar_lea.vmem %s0, %s50
    %v52 = vld [vmem:[%s51] sm:%s4]
    %s53 = scalar_lea.vmem [#allocation0], 1072
    %54 = vst [vmem:[%s53] sm:%s4] %v52
    %s55 = smul.addr 2, 133
    %s56 = scalar_lea.vmem %s0, %s55
    %v57 = vld [vmem:[%s56] sm:%s4]
    %s58 = scalar_lea.vmem [#allocation0], 1064
    %59 = vst [vmem:[%s58] sm:%s4] %v57
    %s60 = smul.addr 2, 132
    %s61 = scalar_lea.vmem %s0, %s60
    %v62 = vld [vmem:[%s61] sm:%s4]
    %s63 = scalar_lea.vmem [#allocation0], 1056
    %64 = vst [vmem:[%s63] sm:%s4] %v62
    %s65 = smul.addr 2, 131
    %s66 = scalar_lea.vmem %s0, %s65
    %v67 = vld [vmem:[%s66] sm:%s4]
    %s68 = scalar_lea.vmem [#allocation0], 1048
    %69 = vst [vmem:[%s68] sm:%s4] %v67
    %s70 = smul.addr 2, 130
    %s71 = scalar_lea.vmem %s0, %s70
    %v72 = vld [vmem:[%s71] sm:%s4]
    %s73 = scalar_lea.vmem [#allocation0], 1040
    %74 = vst [vmem:[%s73] sm:%s4] %v72
    %s75 = smul.addr 2, 129
    %s76 = scalar_lea.vmem %s0, %s75
    %v77 = vld [vmem:[%s76] sm:%s4]
    %s78 = scalar_lea.vmem [#allocation0], 1032
    %79 = vst [vmem:[%s78] sm:%s4] %v77
    %s80 = smul.addr 2, 128
    %s81 = scalar_lea.vmem %s0, %s80
    %v82 = vld [vmem:[%s81] sm:%s4]
    %s83 = scalar_lea.vmem [#allocation0], 1024
    %84 = vst [vmem:[%s83] sm:%s4] %v82
    %s85 = smul.addr 2, 127
    %s86 = scalar_lea.vmem %s0, %s85
    %v87 = vld [vmem:[%s86] sm:%s4]
    %s88 = scalar_lea.vmem [#allocation0], 1016
    %89 = vst [vmem:[%s88] sm:%s4] %v87
    %s90 = smul.addr 2, 126
    %s91 = scalar_lea.vmem %s0, %s90
    %v92 = vld [vmem:[%s91] sm:%s4]
    %s93 = scalar_lea.vmem [#allocation0], 1008
    %94 = vst [vmem:[%s93] sm:%s4] %v92
    %s95 = smul.addr 2, 125
    %s96 = scalar_lea.vmem %s0, %s95
    %v97 = vld [vmem:[%s96] sm:%s4]
    %s98 = scalar_lea.vmem [#allocation0], 1000
    %99 = vst [vmem:[%s98] sm:%s4] %v97
    %s100 = smul.addr 2, 124
    %s101 = scalar_lea.vmem %s0, %s100
    %v102 = vld [vmem:[%s101] sm:%s4]
    %s103 = scalar_lea.vmem [#allocation0], 992
    %104 = vst [vmem:[%s103] sm:%s4] %v102
    %s105 = smul.addr 2, 123
    %s106 = scalar_lea.vmem %s0, %s105
    %v107 = vld [vmem:[%s106] sm:%s4]
    %s108 = scalar_lea.vmem [#allocation0], 984
    %109 = vst [vmem:[%s108] sm:%s4] %v107
    %s110 = smul.addr 2, 122
    %s111 = scalar_lea.vmem %s0, %s110
    %v112 = vld [vmem:[%s111] sm:%s4]
    %s113 = scalar_lea.vmem [#allocation0], 976
    %114 = vst [vmem:[%s113] sm:%s4] %v112
    %s115 = smul.addr 2, 121
    %s116 = scalar_lea.vmem %s0, %s115
    %v117 = vld [vmem:[%s116] sm:%s4]
    %s118 = scalar_lea.vmem [#allocation0], 968
    %119 = vst [vmem:[%s118] sm:%s4] %v117
    %s120 = smul.addr 2, 120
    %s121 = scalar_lea.vmem %s0, %s120
    %v122 = vld [vmem:[%s121] sm:%s4]
    %s123 = scalar_lea.vmem [#allocation0], 960
    %124 = vst [vmem:[%s123] sm:%s4] %v122
    %s125 = smul.addr 2, 119
    %s126 = scalar_lea.vmem %s0, %s125
    %v127 = vld [vmem:[%s126] sm:%s4]
    %s128 = scalar_lea.vmem [#allocation0], 952
    %129 = vst [vmem:[%s128] sm:%s4] %v127
    %s130 = smul.addr 2, 118
    %s131 = scalar_lea.vmem %s0, %s130
    %v132 = vld [vmem:[%s131] sm:%s4]
    %s133 = scalar_lea.vmem [#allocation0], 944
    %134 = vst [vmem:[%s133] sm:%s4] %v132
    %s135 = smul.addr 2, 117
    %s136 = scalar_lea.vmem %s0, %s135
    %v137 = vld [vmem:[%s136] sm:%s4]
    %s138 = scalar_lea.vmem [#allocation0], 936
    %139 = vst [vmem:[%s138] sm:%s4] %v137
    %s140 = smul.addr 2, 116
    %s141 = scalar_lea.vmem %s0, %s140
    %v142 = vld [vmem:[%s141] sm:%s4]
    %s143 = scalar_lea.vmem [#allocation0], 928
    %144 = vst [vmem:[%s143] sm:%s4] %v142
    %s145 = smul.addr 2, 115
    %s146 = scalar_lea.vmem %s0, %s145
    %v147 = vld [vmem:[%s146] sm:%s4]
    %s148 = scalar_lea.vmem [#allocation0], 920
    %149 = vst [vmem:[%s148] sm:%s4] %v147
    %s150 = smul.addr 2, 114
    %s151 = scalar_lea.vmem %s0, %s150
    %v152 = vld [vmem:[%s151] sm:%s4]
    %s153 = scalar_lea.vmem [#allocation0], 912
    %154 = vst [vmem:[%s153] sm:%s4] %v152
    %s155 = smul.addr 2, 113
    %s156 = scalar_lea.vmem %s0, %s155
    %v157 = vld [vmem:[%s156] sm:%s4]
    %s158 = scalar_lea.vmem [#allocation0], 904
    %159 = vst [vmem:[%s158] sm:%s4] %v157
    %s160 = smul.addr 2, 112
    %s161 = scalar_lea.vmem %s0, %s160
    %v162 = vld [vmem:[%s161] sm:%s4]
    %s163 = scalar_lea.vmem [#allocation0], 896
    %164 = vst [vmem:[%s163] sm:%s4] %v162
    %s165 = smul.addr 2, 111
    %s166 = scalar_lea.vmem %s0, %s165
    %v167 = vld [vmem:[%s166] sm:%s4]
    %s168 = scalar_lea.vmem [#allocation0], 888
    %169 = vst [vmem:[%s168] sm:%s4] %v167
    %s170 = smul.addr 2, 110
    %s171 = scalar_lea.vmem %s0, %s170
    %v172 = vld [vmem:[%s171] sm:%s4]
    %s173 = scalar_lea.vmem [#allocation0], 880
    %174 = vst [vmem:[%s173] sm:%s4] %v172
    %s175 = smul.addr 2, 109
    %s176 = scalar_lea.vmem %s0, %s175
    %v177 = vld [vmem:[%s176] sm:%s4]
    %s178 = scalar_lea.vmem [#allocation0], 872
    %179 = vst [vmem:[%s178] sm:%s4] %v177
    %s180 = smul.addr 2, 108
    %s181 = scalar_lea.vmem %s0, %s180
    %v182 = vld [vmem:[%s181] sm:%s4]
    %s183 = scalar_lea.vmem [#allocation0], 864
    %184 = vst [vmem:[%s183] sm:%s4] %v182
    %s185 = smul.addr 2, 107
    %s186 = scalar_lea.vmem %s0, %s185
    %v187 = vld [vmem:[%s186] sm:%s4]
    %s188 = scalar_lea.vmem [#allocation0], 856
    %189 = vst [vmem:[%s188] sm:%s4] %v187
    %s190 = smul.addr 2, 106
    %s191 = scalar_lea.vmem %s0, %s190
    %v192 = vld [vmem:[%s191] sm:%s4]
    %s193 = scalar_lea.vmem [#allocation0], 848
    %194 = vst [vmem:[%s193] sm:%s4] %v192
    %s195 = smul.addr 2, 105
    %s196 = scalar_lea.vmem %s0, %s195
    %v197 = vld [vmem:[%s196] sm:%s4]
    %s198 = scalar_lea.vmem [#allocation0], 840
    %199 = vst [vmem:[%s198] sm:%s4] %v197
    %s200 = smul.addr 2, 104
    %s201 = scalar_lea.vmem %s0, %s200
    %v202 = vld [vmem:[%s201] sm:%s4]
    %s203 = scalar_lea.vmem [#allocation0], 832
    %204 = vst [vmem:[%s203] sm:%s4] %v202
    %s205 = smul.addr 2, 103
    %s206 = scalar_lea.vmem %s0, %s205
    %v207 = vld [vmem:[%s206] sm:%s4]
    %s208 = scalar_lea.vmem [#allocation0], 824
    %209 = vst [vmem:[%s208] sm:%s4] %v207
    %s210 = smul.addr 2, 102
    %s211 = scalar_lea.vmem %s0, %s210
    %v212 = vld [vmem:[%s211] sm:%s4]
    %s213 = scalar_lea.vmem [#allocation0], 816
    %214 = vst [vmem:[%s213] sm:%s4] %v212
    %s215 = smul.addr 2, 101
    %s216 = scalar_lea.vmem %s0, %s215
    %v217 = vld [vmem:[%s216] sm:%s4]
    %s218 = scalar_lea.vmem [#allocation0], 808
    %219 = vst [vmem:[%s218] sm:%s4] %v217
    %s220 = smul.addr 2, 100
    %s221 = scalar_lea.vmem %s0, %s220
    %v222 = vld [vmem:[%s221] sm:%s4]
    %s223 = scalar_lea.vmem [#allocation0], 800
    %224 = vst [vmem:[%s223] sm:%s4] %v222
    %s225 = smul.addr 2, 99
    %s226 = scalar_lea.vmem %s0, %s225
    %v227 = vld [vmem:[%s226] sm:%s4]
    %s228 = scalar_lea.vmem [#allocation0], 792
    %229 = vst [vmem:[%s228] sm:%s4] %v227
    %s230 = smul.addr 2, 98
    %s231 = scalar_lea.vmem %s0, %s230
    %v232 = vld [vmem:[%s231] sm:%s4]
    %s233 = scalar_lea.vmem [#allocation0], 784
    %234 = vst [vmem:[%s233] sm:%s4] %v232
    %s235 = smul.addr 2, 97
    %s236 = scalar_lea.vmem %s0, %s235
    %v237 = vld [vmem:[%s236] sm:%s4]
    %s238 = scalar_lea.vmem [#allocation0], 776
    %239 = vst [vmem:[%s238] sm:%s4] %v237
    %s240 = smul.addr 2, 96
    %s241 = scalar_lea.vmem %s0, %s240
    %v242 = vld [vmem:[%s241] sm:%s4]
    %s243 = scalar_lea.vmem [#allocation0], 768
    %244 = vst [vmem:[%s243] sm:%s4] %v242
    %s245 = smul.addr 2, 95
    %s246 = scalar_lea.vmem %s0, %s245
    %v247 = vld [vmem:[%s246] sm:%s4]
    %s248 = scalar_lea.vmem [#allocation0], 760
    %249 = vst [vmem:[%s248] sm:%s4] %v247
    %s250 = smul.addr 2, 94
    %s251 = scalar_lea.vmem %s0, %s250
    %v252 = vld [vmem:[%s251] sm:%s4]
    %s253 = scalar_lea.vmem [#allocation0], 752
    %254 = vst [vmem:[%s253] sm:%s4] %v252
    %s255 = smul.addr 2, 93
    %s256 = scalar_lea.vmem %s0, %s255
    %v257 = vld [vmem:[%s256] sm:%s4]
    %s258 = scalar_lea.vmem [#allocation0], 744
    %259 = vst [vmem:[%s258] sm:%s4] %v257
    %s260 = smul.addr 2, 92
    %s261 = scalar_lea.vmem %s0, %s260
    %v262 = vld [vmem:[%s261] sm:%s4]
    %s263 = scalar_lea.vmem [#allocation0], 736
    %264 = vst [vmem:[%s263] sm:%s4] %v262
    %s265 = smul.addr 2, 91
    %s266 = scalar_lea.vmem %s0, %s265
    %v267 = vld [vmem:[%s266] sm:%s4]
    %s268 = scalar_lea.vmem [#allocation0], 728
    %269 = vst [vmem:[%s268] sm:%s4] %v267
    %s270 = smul.addr 2, 90
    %s271 = scalar_lea.vmem %s0, %s270
    %v272 = vld [vmem:[%s271] sm:%s4]
    %s273 = scalar_lea.vmem [#allocation0], 720
    %274 = vst [vmem:[%s273] sm:%s4] %v272
    %s275 = smul.addr 2, 89
    %s276 = scalar_lea.vmem %s0, %s275
    %v277 = vld [vmem:[%s276] sm:%s4]
    %s278 = scalar_lea.vmem [#allocation0], 712
    %279 = vst [vmem:[%s278] sm:%s4] %v277
    %s280 = smul.addr 2, 88
    %s281 = scalar_lea.vmem %s0, %s280
    %v282 = vld [vmem:[%s281] sm:%s4]
    %s283 = scalar_lea.vmem [#allocation0], 704
    %284 = vst [vmem:[%s283] sm:%s4] %v282
    %s285 = smul.addr 2, 87
    %s286 = scalar_lea.vmem %s0, %s285
    %v287 = vld [vmem:[%s286] sm:%s4]
    %s288 = scalar_lea.vmem [#allocation0], 696
    %289 = vst [vmem:[%s288] sm:%s4] %v287
    %s290 = smul.addr 2, 86
    %s291 = scalar_lea.vmem %s0, %s290
    %v292 = vld [vmem:[%s291] sm:%s4]
    %s293 = scalar_lea.vmem [#allocation0], 688
    %294 = vst [vmem:[%s293] sm:%s4] %v292
    %s295 = smul.addr 2, 85
    %s296 = scalar_lea.vmem %s0, %s295
    %v297 = vld [vmem:[%s296] sm:%s4]
    %s298 = scalar_lea.vmem [#allocation0], 680
    %299 = vst [vmem:[%s298] sm:%s4] %v297
    %s300 = smul.addr 2, 84
    %s301 = scalar_lea.vmem %s0, %s300
    %v302 = vld [vmem:[%s301] sm:%s4]
    %s303 = scalar_lea.vmem [#allocation0], 672
    %304 = vst [vmem:[%s303] sm:%s4] %v302
    %s305 = smul.addr 2, 83
    %s306 = scalar_lea.vmem %s0, %s305
    %v307 = vld [vmem:[%s306] sm:%s4]
    %s308 = scalar_lea.vmem [#allocation0], 664
    %309 = vst [vmem:[%s308] sm:%s4] %v307
    %s310 = smul.addr 2, 82
    %s311 = scalar_lea.vmem %s0, %s310
    %v312 = vld [vmem:[%s311] sm:%s4]
    %s313 = scalar_lea.vmem [#allocation0], 656
    %314 = vst [vmem:[%s313] sm:%s4] %v312
    %s315 = smul.addr 2, 81
    %s316 = scalar_lea.vmem %s0, %s315
    %v317 = vld [vmem:[%s316] sm:%s4]
    %s318 = scalar_lea.vmem [#allocation0], 648
    %319 = vst [vmem:[%s318] sm:%s4] %v317
    %s320 = smul.addr 2, 80
    %s321 = scalar_lea.vmem %s0, %s320
    %v322 = vld [vmem:[%s321] sm:%s4]
    %s323 = scalar_lea.vmem [#allocation0], 640
    %324 = vst [vmem:[%s323] sm:%s4] %v322
    %s325 = smul.addr 2, 79
    %s326 = scalar_lea.vmem %s0, %s325
    %v327 = vld [vmem:[%s326] sm:%s4]
    %s328 = scalar_lea.vmem [#allocation0], 632
    %329 = vst [vmem:[%s328] sm:%s4] %v327
    %s330 = smul.addr 2, 78
    %s331 = scalar_lea.vmem %s0, %s330
    %v332 = vld [vmem:[%s331] sm:%s4]
    %s333 = scalar_lea.vmem [#allocation0], 624
    %334 = vst [vmem:[%s333] sm:%s4] %v332
    %s335 = smul.addr 2, 77
    %s336 = scalar_lea.vmem %s0, %s335
    %v337 = vld [vmem:[%s336] sm:%s4]
    %s338 = scalar_lea.vmem [#allocation0], 616
    %339 = vst [vmem:[%s338] sm:%s4] %v337
    %s340 = smul.addr 2, 76
    %s341 = scalar_lea.vmem %s0, %s340
    %v342 = vld [vmem:[%s341] sm:%s4]
    %s343 = scalar_lea.vmem [#allocation0], 608
    %344 = vst [vmem:[%s343] sm:%s4] %v342
    %s345 = smul.addr 2, 75
    %s346 = scalar_lea.vmem %s0, %s345
    %v347 = vld [vmem:[%s346] sm:%s4]
    %s348 = scalar_lea.vmem [#allocation0], 600
    %349 = vst [vmem:[%s348] sm:%s4] %v347
    %s350 = smul.addr 2, 74
    %s351 = scalar_lea.vmem %s0, %s350
    %v352 = vld [vmem:[%s351] sm:%s4]
    %s353 = scalar_lea.vmem [#allocation0], 592
    %354 = vst [vmem:[%s353] sm:%s4] %v352
    %s355 = smul.addr 2, 73
    %s356 = scalar_lea.vmem %s0, %s355
    %v357 = vld [vmem:[%s356] sm:%s4]
    %s358 = scalar_lea.vmem [#allocation0], 584
    %359 = vst [vmem:[%s358] sm:%s4] %v357
    %s360 = smul.addr 2, 72
    %s361 = scalar_lea.vmem %s0, %s360
    %v362 = vld [vmem:[%s361] sm:%s4]
    %s363 = scalar_lea.vmem [#allocation0], 576
    %364 = vst [vmem:[%s363] sm:%s4] %v362
    %s365 = smul.addr 2, 71
    %s366 = scalar_lea.vmem %s0, %s365
    %v367 = vld [vmem:[%s366] sm:%s4]
    %s368 = scalar_lea.vmem [#allocation0], 568
    %369 = vst [vmem:[%s368] sm:%s4] %v367
    %s370 = smul.addr 2, 70
    %s371 = scalar_lea.vmem %s0, %s370
    %v372 = vld [vmem:[%s371] sm:%s4]
    %s373 = scalar_lea.vmem [#allocation0], 560
    %374 = vst [vmem:[%s373] sm:%s4] %v372
    %s375 = smul.addr 2, 69
    %s376 = scalar_lea.vmem %s0, %s375
    %v377 = vld [vmem:[%s376] sm:%s4]
    %s378 = scalar_lea.vmem [#allocation0], 552
    %379 = vst [vmem:[%s378] sm:%s4] %v377
    %s380 = smul.addr 2, 68
    %s381 = scalar_lea.vmem %s0, %s380
    %v382 = vld [vmem:[%s381] sm:%s4]
    %s383 = scalar_lea.vmem [#allocation0], 544
    %384 = vst [vmem:[%s383] sm:%s4] %v382
    %s385 = smul.addr 2, 67
    %s386 = scalar_lea.vmem %s0, %s385
    %v387 = vld [vmem:[%s386] sm:%s4]
    %s388 = scalar_lea.vmem [#allocation0], 536
    %389 = vst [vmem:[%s388] sm:%s4] %v387
    %s390 = smul.addr 2, 66
    %s391 = scalar_lea.vmem %s0, %s390
    %v392 = vld [vmem:[%s391] sm:%s4]
    %s393 = scalar_lea.vmem [#allocation0], 528
    %394 = vst [vmem:[%s393] sm:%s4] %v392
    %s395 = smul.addr 2, 65
    %s396 = scalar_lea.vmem %s0, %s395
    %v397 = vld [vmem:[%s396] sm:%s4]
    %s398 = scalar_lea.vmem [#allocation0], 520
    %399 = vst [vmem:[%s398] sm:%s4] %v397
    %s400 = smul.addr 2, 64
    %s401 = scalar_lea.vmem %s0, %s400
    %v402 = vld [vmem:[%s401] sm:%s4]
    %s403 = scalar_lea.vmem [#allocation0], 512
    %404 = vst [vmem:[%s403] sm:%s4] %v402
    %s405 = smul.addr 2, 63
    %s406 = scalar_lea.vmem %s0, %s405
    %v407 = vld [vmem:[%s406] sm:%s4]
    %s408 = scalar_lea.vmem [#allocation0], 504
    %409 = vst [vmem:[%s408] sm:%s4] %v407
    %s410 = smul.addr 2, 62
    %s411 = scalar_lea.vmem %s0, %s410
    %v412 = vld [vmem:[%s411] sm:%s4]
    %s413 = scalar_lea.vmem [#allocation0], 496
    %414 = vst [vmem:[%s413] sm:%s4] %v412
    %s415 = smul.addr 2, 61
    %s416 = scalar_lea.vmem %s0, %s415
    %v417 = vld [vmem:[%s416] sm:%s4]
    %s418 = scalar_lea.vmem [#allocation0], 488
    %419 = vst [vmem:[%s418] sm:%s4] %v417
    %s420 = smul.addr 2, 60
    %s421 = scalar_lea.vmem %s0, %s420
    %v422 = vld [vmem:[%s421] sm:%s4]
    %s423 = scalar_lea.vmem [#allocation0], 480
    %424 = vst [vmem:[%s423] sm:%s4] %v422
    %s425 = smul.addr 2, 59
    %s426 = scalar_lea.vmem %s0, %s425
    %v427 = vld [vmem:[%s426] sm:%s4]
    %s428 = scalar_lea.vmem [#allocation0], 472
    %429 = vst [vmem:[%s428] sm:%s4] %v427
    %s430 = smul.addr 2, 58
    %s431 = scalar_lea.vmem %s0, %s430
    %v432 = vld [vmem:[%s431] sm:%s4]
    %s433 = scalar_lea.vmem [#allocation0], 464
    %434 = vst [vmem:[%s433] sm:%s4] %v432
    %s435 = smul.addr 2, 57
    %s436 = scalar_lea.vmem %s0, %s435
    %v437 = vld [vmem:[%s436] sm:%s4]
    %s438 = scalar_lea.vmem [#allocation0], 456
    %439 = vst [vmem:[%s438] sm:%s4] %v437
    %s440 = smul.addr 2, 56
    %s441 = scalar_lea.vmem %s0, %s440
    %v442 = vld [vmem:[%s441] sm:%s4]
    %s443 = scalar_lea.vmem [#allocation0], 448
    %444 = vst [vmem:[%s443] sm:%s4] %v442
    %s445 = smul.addr 2, 55
    %s446 = scalar_lea.vmem %s0, %s445
    %v447 = vld [vmem:[%s446] sm:%s4]
    %s448 = scalar_lea.vmem [#allocation0], 440
    %449 = vst [vmem:[%s448] sm:%s4] %v447
    %s450 = smul.addr 2, 54
    %s451 = scalar_lea.vmem %s0, %s450
    %v452 = vld [vmem:[%s451] sm:%s4]
    %s453 = scalar_lea.vmem [#allocation0], 432
    %454 = vst [vmem:[%s453] sm:%s4] %v452
    %s455 = smul.addr 2, 53
    %s456 = scalar_lea.vmem %s0, %s455
    %v457 = vld [vmem:[%s456] sm:%s4]
    %s458 = scalar_lea.vmem [#allocation0], 424
    %459 = vst [vmem:[%s458] sm:%s4] %v457
    %s460 = smul.addr 2, 52
    %s461 = scalar_lea.vmem %s0, %s460
    %v462 = vld [vmem:[%s461] sm:%s4]
    %s463 = scalar_lea.vmem [#allocation0], 416
    %464 = vst [vmem:[%s463] sm:%s4] %v462
    %s465 = smul.addr 2, 51
    %s466 = scalar_lea.vmem %s0, %s465
    %v467 = vld [vmem:[%s466] sm:%s4]
    %s468 = scalar_lea.vmem [#allocation0], 408
    %469 = vst [vmem:[%s468] sm:%s4] %v467
    %s470 = smul.addr 2, 50
    %s471 = scalar_lea.vmem %s0, %s470
    %v472 = vld [vmem:[%s471] sm:%s4]
    %s473 = scalar_lea.vmem [#allocation0], 400
    %474 = vst [vmem:[%s473] sm:%s4] %v472
    %s475 = smul.addr 2, 49
    %s476 = scalar_lea.vmem %s0, %s475
    %v477 = vld [vmem:[%s476] sm:%s4]
    %s478 = scalar_lea.vmem [#allocation0], 392
    %479 = vst [vmem:[%s478] sm:%s4] %v477
    %s480 = smul.addr 2, 48
    %s481 = scalar_lea.vmem %s0, %s480
    %v482 = vld [vmem:[%s481] sm:%s4]
    %s483 = scalar_lea.vmem [#allocation0], 384
    %484 = vst [vmem:[%s483] sm:%s4] %v482
    %s485 = smul.addr 2, 47
    %s486 = scalar_lea.vmem %s0, %s485
    %v487 = vld [vmem:[%s486] sm:%s4]
    %s488 = scalar_lea.vmem [#allocation0], 376
    %489 = vst [vmem:[%s488] sm:%s4] %v487
    %s490 = smul.addr 2, 46
    %s491 = scalar_lea.vmem %s0, %s490
    %v492 = vld [vmem:[%s491] sm:%s4]
    %s493 = scalar_lea.vmem [#allocation0], 368
    %494 = vst [vmem:[%s493] sm:%s4] %v492
    %s495 = smul.addr 2, 45
    %s496 = scalar_lea.vmem %s0, %s495
    %v497 = vld [vmem:[%s496] sm:%s4]
    %s498 = scalar_lea.vmem [#allocation0], 360
    %499 = vst [vmem:[%s498] sm:%s4] %v497
    %s500 = smul.addr 2, 44
    %s501 = scalar_lea.vmem %s0, %s500
    %v502 = vld [vmem:[%s501] sm:%s4]
    %s503 = scalar_lea.vmem [#allocation0], 352
    %504 = vst [vmem:[%s503] sm:%s4] %v502
    %s505 = smul.addr 2, 43
    %s506 = scalar_lea.vmem %s0, %s505
    %v507 = vld [vmem:[%s506] sm:%s4]
    %s508 = scalar_lea.vmem [#allocation0], 344
    %509 = vst [vmem:[%s508] sm:%s4] %v507
    %s510 = smul.addr 2, 42
    %s511 = scalar_lea.vmem %s0, %s510
    %v512 = vld [vmem:[%s511] sm:%s4]
    %s513 = scalar_lea.vmem [#allocation0], 336
    %514 = vst [vmem:[%s513] sm:%s4] %v512
    %s515 = smul.addr 2, 41
    %s516 = scalar_lea.vmem %s0, %s515
    %v517 = vld [vmem:[%s516] sm:%s4]
    %s518 = scalar_lea.vmem [#allocation0], 328
    %519 = vst [vmem:[%s518] sm:%s4] %v517
    %s520 = smul.addr 2, 40
    %s521 = scalar_lea.vmem %s0, %s520
    %v522 = vld [vmem:[%s521] sm:%s4]
    %s523 = scalar_lea.vmem [#allocation0], 320
    %524 = vst [vmem:[%s523] sm:%s4] %v522
    %s525 = smul.addr 2, 39
    %s526 = scalar_lea.vmem %s0, %s525
    %v527 = vld [vmem:[%s526] sm:%s4]
    %s528 = scalar_lea.vmem [#allocation0], 312
    %529 = vst [vmem:[%s528] sm:%s4] %v527
    %s530 = smul.addr 2, 38
    %s531 = scalar_lea.vmem %s0, %s530
    %v532 = vld [vmem:[%s531] sm:%s4]
    %s533 = scalar_lea.vmem [#allocation0], 304
    %534 = vst [vmem:[%s533] sm:%s4] %v532
    %s535 = smul.addr 2, 37
    %s536 = scalar_lea.vmem %s0, %s535
    %v537 = vld [vmem:[%s536] sm:%s4]
    %s538 = scalar_lea.vmem [#allocation0], 296
    %539 = vst [vmem:[%s538] sm:%s4] %v537
    %s540 = smul.addr 2, 36
    %s541 = scalar_lea.vmem %s0, %s540
    %v542 = vld [vmem:[%s541] sm:%s4]
    %s543 = scalar_lea.vmem [#allocation0], 288
    %544 = vst [vmem:[%s543] sm:%s4] %v542
    %s545 = smul.addr 2, 35
    %s546 = scalar_lea.vmem %s0, %s545
    %v547 = vld [vmem:[%s546] sm:%s4]
    %s548 = scalar_lea.vmem [#allocation0], 280
    %549 = vst [vmem:[%s548] sm:%s4] %v547
    %s550 = smul.addr 2, 34
    %s551 = scalar_lea.vmem %s0, %s550
    %v552 = vld [vmem:[%s551] sm:%s4]
    %s553 = scalar_lea.vmem [#allocation0], 272
    %554 = vst [vmem:[%s553] sm:%s4] %v552
    %s555 = smul.addr 2, 33
    %s556 = scalar_lea.vmem %s0, %s555
    %v557 = vld [vmem:[%s556] sm:%s4]
    %s558 = scalar_lea.vmem [#allocation0], 264
    %559 = vst [vmem:[%s558] sm:%s4] %v557
    %s560 = smul.addr 2, 32
    %s561 = scalar_lea.vmem %s0, %s560
    %v562 = vld [vmem:[%s561] sm:%s4]
    %s563 = scalar_lea.vmem [#allocation0], 256
    %564 = vst [vmem:[%s563] sm:%s4] %v562
    %s565 = smul.addr 2, 31
    %s566 = scalar_lea.vmem %s0, %s565
    %v567 = vld [vmem:[%s566] sm:%s4]
    %s568 = scalar_lea.vmem [#allocation0], 248
    %569 = vst [vmem:[%s568] sm:%s4] %v567
    %s570 = smul.addr 2, 30
    %s571 = scalar_lea.vmem %s0, %s570
    %v572 = vld [vmem:[%s571] sm:%s4]
    %s573 = scalar_lea.vmem [#allocation0], 240
    %574 = vst [vmem:[%s573] sm:%s4] %v572
    %s575 = smul.addr 2, 29
    %s576 = scalar_lea.vmem %s0, %s575
    %v577 = vld [vmem:[%s576] sm:%s4]
    %s578 = scalar_lea.vmem [#allocation0], 232
    %579 = vst [vmem:[%s578] sm:%s4] %v577
    %s580 = smul.addr 2, 28
    %s581 = scalar_lea.vmem %s0, %s580
    %v582 = vld [vmem:[%s581] sm:%s4]
    %s583 = scalar_lea.vmem [#allocation0], 224
    %584 = vst [vmem:[%s583] sm:%s4] %v582
    %s585 = smul.addr 2, 27
    %s586 = scalar_lea.vmem %s0, %s585
    %v587 = vld [vmem:[%s586] sm:%s4]
    %s588 = scalar_lea.vmem [#allocation0], 216
    %589 = vst [vmem:[%s588] sm:%s4] %v587
    %s590 = smul.addr 2, 26
    %s591 = scalar_lea.vmem %s0, %s590
    %v592 = vld [vmem:[%s591] sm:%s4]
    %s593 = scalar_lea.vmem [#allocation0], 208
    %594 = vst [vmem:[%s593] sm:%s4] %v592
    %s595 = smul.addr 2, 25
    %s596 = scalar_lea.vmem %s0, %s595
    %v597 = vld [vmem:[%s596] sm:%s4]
    %s598 = scalar_lea.vmem [#allocation0], 200
    %599 = vst [vmem:[%s598] sm:%s4] %v597
    %s600 = smul.addr 2, 24
    %s601 = scalar_lea.vmem %s0, %s600
    %v602 = vld [vmem:[%s601] sm:%s4]
    %s603 = scalar_lea.vmem [#allocation0], 192
    %604 = vst [vmem:[%s603] sm:%s4] %v602
    %s605 = smul.addr 2, 23
    %s606 = scalar_lea.vmem %s0, %s605
    %v607 = vld [vmem:[%s606] sm:%s4]
    %s608 = scalar_lea.vmem [#allocation0], 184
    %609 = vst [vmem:[%s608] sm:%s4] %v607
    %s610 = smul.addr 2, 22
    %s611 = scalar_lea.vmem %s0, %s610
    %v612 = vld [vmem:[%s611] sm:%s4]
    %s613 = scalar_lea.vmem [#allocation0], 176
    %614 = vst [vmem:[%s613] sm:%s4] %v612
    %s615 = smul.addr 2, 21
    %s616 = scalar_lea.vmem %s0, %s615
    %v617 = vld [vmem:[%s616] sm:%s4]
    %s618 = scalar_lea.vmem [#allocation0], 168
    %619 = vst [vmem:[%s618] sm:%s4] %v617
    %s620 = smul.addr 2, 20
    %s621 = scalar_lea.vmem %s0, %s620
    %v622 = vld [vmem:[%s621] sm:%s4]
    %s623 = scalar_lea.vmem [#allocation0], 160
    %624 = vst [vmem:[%s623] sm:%s4] %v622
    %s625 = smul.addr 2, 19
    %s626 = scalar_lea.vmem %s0, %s625
    %v627 = vld [vmem:[%s626] sm:%s4]
    %s628 = scalar_lea.vmem [#allocation0], 152
    %629 = vst [vmem:[%s628] sm:%s4] %v627
    %s630 = smul.addr 2, 18
    %s631 = scalar_lea.vmem %s0, %s630
    %v632 = vld [vmem:[%s631] sm:%s4]
    %s633 = scalar_lea.vmem [#allocation0], 144
    %634 = vst [vmem:[%s633] sm:%s4] %v632
    %s635 = smul.addr 2, 17
    %s636 = scalar_lea.vmem %s0, %s635
    %v637 = vld [vmem:[%s636] sm:%s4]
    %s638 = scalar_lea.vmem [#allocation0], 136
    %639 = vst [vmem:[%s638] sm:%s4] %v637
    %s640 = smul.addr 2, 16
    %s641 = scalar_lea.vmem %s0, %s640
    %v642 = vld [vmem:[%s641] sm:%s4]
    %s643 = scalar_lea.vmem [#allocation0], 128
    %644 = vst [vmem:[%s643] sm:%s4] %v642
    %s645 = smul.addr 2, 15
    %s646 = scalar_lea.vmem %s0, %s645
    %v647 = vld [vmem:[%s646] sm:%s4]
    %s648 = scalar_lea.vmem [#allocation0], 120
    %649 = vst [vmem:[%s648] sm:%s4] %v647
    %s650 = smul.addr 2, 14
    %s651 = scalar_lea.vmem %s0, %s650
    %v652 = vld [vmem:[%s651] sm:%s4]
    %s653 = scalar_lea.vmem [#allocation0], 112
    %654 = vst [vmem:[%s653] sm:%s4] %v652
    %s655 = smul.addr 2, 13
    %s656 = scalar_lea.vmem %s0, %s655
    %v657 = vld [vmem:[%s656] sm:%s4]
    %s658 = scalar_lea.vmem [#allocation0], 104
    %659 = vst [vmem:[%s658] sm:%s4] %v657
    %s660 = smul.addr 2, 12
    %s661 = scalar_lea.vmem %s0, %s660
    %v662 = vld [vmem:[%s661] sm:%s4]
    %s663 = scalar_lea.vmem [#allocation0], 96
    %664 = vst [vmem:[%s663] sm:%s4] %v662
    %s665 = smul.addr 2, 11
    %s666 = scalar_lea.vmem %s0, %s665
    %v667 = vld [vmem:[%s666] sm:%s4]
    %s668 = scalar_lea.vmem [#allocation0], 88
    %669 = vst [vmem:[%s668] sm:%s4] %v667
    %s670 = smul.addr 2, 10
    %s671 = scalar_lea.vmem %s0, %s670
    %v672 = vld [vmem:[%s671] sm:%s4]
    %s673 = scalar_lea.vmem [#allocation0], 80
    %674 = vst [vmem:[%s673] sm:%s4] %v672
    %s675 = smul.addr 2, 9
    %s676 = scalar_lea.vmem %s0, %s675
    %v677 = vld [vmem:[%s676] sm:%s4]
    %s678 = scalar_lea.vmem [#allocation0], 72
    %679 = vst [vmem:[%s678] sm:%s4] %v677
    %s680 = smul.addr 2, 8
    %s681 = scalar_lea.vmem %s0, %s680
    %v682 = vld [vmem:[%s681] sm:%s4]
    %s683 = scalar_lea.vmem [#allocation0], 64
    %684 = vst [vmem:[%s683] sm:%s4] %v682
    %s685 = smul.addr 2, 7
    %s686 = scalar_lea.vmem %s0, %s685
    %v687 = vld [vmem:[%s686] sm:%s4]
    %s688 = scalar_lea.vmem [#allocation0], 56
    %689 = vst [vmem:[%s688] sm:%s4] %v687
    %s690 = smul.addr 2, 6
    %s691 = scalar_lea.vmem %s0, %s690
    %v692 = vld [vmem:[%s691] sm:%s4]
    %s693 = scalar_lea.vmem [#allocation0], 48
    %694 = vst [vmem:[%s693] sm:%s4] %v692
    %s695 = smul.addr 2, 5
    %s696 = scalar_lea.vmem %s0, %s695
    %v697 = vld [vmem:[%s696] sm:%s4]
    %s698 = scalar_lea.vmem [#allocation0], 40
    %699 = vst [vmem:[%s698] sm:%s4] %v697
    %s700 = smul.addr 2, 4
    %s701 = scalar_lea.vmem %s0, %s700
    %v702 = vld [vmem:[%s701] sm:%s4]
    %s703 = scalar_lea.vmem [#allocation0], 32
    %704 = vst [vmem:[%s703] sm:%s4] %v702
    %s705 = smul.addr 2, 3
    %s706 = scalar_lea.vmem %s0, %s705
    %v707 = vld [vmem:[%s706] sm:%s4]
    %s708 = scalar_lea.vmem [#allocation0], 24
    %709 = vst [vmem:[%s708] sm:%s4] %v707
    %s710 = smul.addr 2, 2
    %s711 = scalar_lea.vmem %s0, %s710
    %v712 = vld [vmem:[%s711] sm:%s4]
    %s713 = scalar_lea.vmem [#allocation0], 16
    %714 = vst [vmem:[%s713] sm:%s4] %v712
    %s715 = scalar_lea.vmem %s0, 2
    %v716 = vld [vmem:[%s715] sm:%s4]
    %s717 = scalar_lea.vmem [#allocation0], 8
    %718 = vst [vmem:[%s717] sm:%s4] %v716
    %v719 = vld [vmem:[%s0] sm:%s4]
    %720 = vst [vmem:[#allocation0] sm:%s4] %v719
    %v721 = vld [vmem:[#allocation0] ss:$8 sm:$0xf]
    %v722 = vld [vmem:[#allocation0] ss:$8 sm:$0xf0]
    %vm723 = vcmask 1047556
    %v724 = vsel %vm723, %v722, %v721
    %vm725 = vcmask 662528
    %726 = vst.msk [vmem:[%s1] sm:$0xff] %vm725, %v724
    %s727 = scalar_lea.vmem [#allocation0], 64
    %v728 = vld [vmem:[%s727] ss:$8 sm:$0xf]
    %s729 = scalar_lea.vmem [#allocation0], 64
    %v730 = vld [vmem:[%s729] ss:$8 sm:$0xf0]
    %vm731 = vcmask 1047556
    %v732 = vsel %vm731, %v730, %v728
    %vm733 = vcmask 662528
    %s734 = scalar_lea.vmem %s1, 16
    %735 = vst.msk [vmem:[%s734] sm:$0xff] %vm733, %v732
    %s736 = scalar_lea.vmem [#allocation0], 128
    %v737 = vld [vmem:[%s736] ss:$8 sm:$0xf]
    %s738 = scalar_lea.vmem [#allocation0], 128
    %v739 = vld [vmem:[%s738] ss:$8 sm:$0xf0]
    %vm740 = vcmask 1047556
    %v741 = vsel %vm740, %v739, %v737
    %vm742 = vcmask 662528
    %s743 = scalar_lea.vmem %s1, 32
    %744 = vst.msk [vmem:[%s743] sm:$0xff] %vm742, %v741
    %s745 = scalar_lea.vmem [#allocation0], 192
    %v746 = vld [vmem:[%s745] ss:$8 sm:$0xf]
    %s747 = scalar_lea.vmem [#allocation0], 192
    %v748 = vld [vmem:[%s747] ss:$8 sm:$0xf0]
    %vm749 = vcmask 1047556
    %v750 = vsel %vm749, %v748, %v746
    %vm751 = vcmask 662528
    %s752 = scalar_lea.vmem %s1, 48
    %753 = vst.msk [vmem:[%s752] sm:$0xff] %vm751, %v750
    %s754 = scalar_lea.vmem [#allocation0], 256
    %v755 = vld [vmem:[%s754] ss:$8 sm:$0xf]
    %s756 = scalar_lea.vmem [#allocation0], 256
    %v757 = vld [vmem:[%s756] ss:$8 sm:$0xf0]
    %vm758 = vcmask 1047556
    %v759 = vsel %vm758, %v757, %v755
    %vm760 = vcmask 662528
    %s761 = scalar_lea.vmem %s1, 64
    %762 = vst.msk [vmem:[%s761] sm:$0xff] %vm760, %v759
    %s763 = scalar_lea.vmem [#allocation0], 320
    %v764 = vld [vmem:[%s763] ss:$8 sm:$0xf]
    %s765 = scalar_lea.vmem [#allocation0], 320
    %v766 = vld [vmem:[%s765] ss:$8 sm:$0xf0]
    %vm767 = vcmask 1047556
    %v768 = vsel %vm767, %v766, %v764
    %vm769 = vcmask 662528
    %s770 = scalar_lea.vmem %s1, 80
    %771 = vst.msk [vmem:[%s770] sm:$0xff] %vm769, %v768
    %s772 = scalar_lea.vmem [#allocation0], 384
    %v773 = vld [vmem:[%s772] ss:$8 sm:$0xf]
    %s774 = scalar_lea.vmem [#allocation0], 384
    %v775 = vld [vmem:[%s774] ss:$8 sm:$0xf0]
    %vm776 = vcmask 1047556
    %v777 = vsel %vm776, %v775, %v773
    %vm778 = vcmask 662528
    %s779 = scalar_lea.vmem %s1, 96
    %780 = vst.msk [vmem:[%s779] sm:$0xff] %vm778, %v777
    %s781 = scalar_lea.vmem [#allocation0], 448
    %v782 = vld [vmem:[%s781] ss:$8 sm:$0xf]
    %s783 = scalar_lea.vmem [#allocation0], 448
    %v784 = vld [vmem:[%s783] ss:$8 sm:$0xf0]
    %vm785 = vcmask 1047556
    %v786 = vsel %vm785, %v784, %v782
    %vm787 = vcmask 662528
    %s788 = scalar_lea.vmem %s1, 112
    %789 = vst.msk [vmem:[%s788] sm:$0xff] %vm787, %v786
    %s790 = scalar_lea.vmem [#allocation0], 512
    %v791 = vld [vmem:[%s790] ss:$8 sm:$0xf]
    %s792 = scalar_lea.vmem [#allocation0], 512
    %v793 = vld [vmem:[%s792] ss:$8 sm:$0xf0]
    %vm794 = vcmask 1047556
    %v795 = vsel %vm794, %v793, %v791
    %vm796 = vcmask 662528
    %s797 = scalar_lea.vmem %s1, 128
    %798 = vst.msk [vmem:[%s797] sm:$0xff] %vm796, %v795
    %s799 = scalar_lea.vmem [#allocation0], 576
    %v800 = vld [vmem:[%s799] ss:$8 sm:$0xf]
    %s801 = scalar_lea.vmem [#allocation0], 576
    %v802 = vld [vmem:[%s801] ss:$8 sm:$0xf0]
    %vm803 = vcmask 1047556
    %v804 = vsel %vm803, %v802, %v800
    %vm805 = vcmask 662528
    %s806 = scalar_lea.vmem %s1, 144
    %807 = vst.msk [vmem:[%s806] sm:$0xff] %vm805, %v804
    %s808 = scalar_lea.vmem [#allocation0], 640
    %v809 = vld [vmem:[%s808] ss:$8 sm:$0xf]
    %s810 = scalar_lea.vmem [#allocation0], 640
    %v811 = vld [vmem:[%s810] ss:$8 sm:$0xf0]
    %vm812 = vcmask 1047556
    %v813 = vsel %vm812, %v811, %v809
    %vm814 = vcmask 662528
    %s815 = scalar_lea.vmem %s1, 160
    %816 = vst.msk [vmem:[%s815] sm:$0xff] %vm814, %v813
    %s817 = scalar_lea.vmem [#allocation0], 704
    %v818 = vld [vmem:[%s817] ss:$8 sm:$0xf]
    %s819 = scalar_lea.vmem [#allocation0], 704
    %v820 = vld [vmem:[%s819] ss:$8 sm:$0xf0]
    %vm821 = vcmask 1047556
    %v822 = vsel %vm821, %v820, %v818
    %vm823 = vcmask 662528
    %s824 = scalar_lea.vmem %s1, 176
    %825 = vst.msk [vmem:[%s824] sm:$0xff] %vm823, %v822
    %s826 = scalar_lea.vmem [#allocation0], 768
    %v827 = vld [vmem:[%s826] ss:$8 sm:$0xf]
    %s828 = scalar_lea.vmem [#allocation0], 768
    %v829 = vld [vmem:[%s828] ss:$8 sm:$0xf0]
    %vm830 = vcmask 1047556
    %v831 = vsel %vm830, %v829, %v827
    %vm832 = vcmask 662528
    %s833 = scalar_lea.vmem %s1, 192
    %834 = vst.msk [vmem:[%s833] sm:$0xff] %vm832, %v831
    %s835 = scalar_lea.vmem [#allocation0], 832
    %v836 = vld [vmem:[%s835] ss:$8 sm:$0xf]
    %s837 = scalar_lea.vmem [#allocation0], 832
    %v838 = vld [vmem:[%s837] ss:$8 sm:$0xf0]
    %vm839 = vcmask 1047556
    %v840 = vsel %vm839, %v838, %v836
    %vm841 = vcmask 662528
    %s842 = scalar_lea.vmem %s1, 208
    %843 = vst.msk [vmem:[%s842] sm:$0xff] %vm841, %v840
    %s844 = scalar_lea.vmem [#allocation0], 896
    %v845 = vld [vmem:[%s844] ss:$8 sm:$0xf]
    %s846 = scalar_lea.vmem [#allocation0], 896
    %v847 = vld [vmem:[%s846] ss:$8 sm:$0xf0]
    %vm848 = vcmask 1047556
    %v849 = vsel %vm848, %v847, %v845
    %vm850 = vcmask 662528
    %s851 = scalar_lea.vmem %s1, 224
    %852 = vst.msk [vmem:[%s851] sm:$0xff] %vm850, %v849
    %s853 = scalar_lea.vmem [#allocation0], 960
    %v854 = vld [vmem:[%s853] ss:$8 sm:$0xf]
    %s855 = scalar_lea.vmem [#allocation0], 960
    %v856 = vld [vmem:[%s855] ss:$8 sm:$0xf0]
    %vm857 = vcmask 1047556
    %v858 = vsel %vm857, %v856, %v854
    %vm859 = vcmask 662528
    %s860 = scalar_lea.vmem %s1, 240
    %861 = vst.msk [vmem:[%s860] sm:$0xff] %vm859, %v858
    %s862 = scalar_lea.vmem [#allocation0], 1024
    %v863 = vld [vmem:[%s862] ss:$8 sm:$0xf]
    %s864 = scalar_lea.vmem [#allocation0], 1024
    %v865 = vld [vmem:[%s864] ss:$8 sm:$0xf0]
    %vm866 = vcmask 1047556
    %v867 = vsel %vm866, %v865, %v863
    %vm868 = vcmask 662528
    %s869 = scalar_lea.vmem %s1, 256
    %870 = vst.msk [vmem:[%s869] sm:$0xff] %vm868, %v867
    %s871 = scalar_lea.vmem [#allocation0], 1088
    %v872 = vld [vmem:[%s871] ss:$8 sm:$0xf]
    %s873 = scalar_lea.vmem [#allocation0], 1088
    %v874 = vld [vmem:[%s873] ss:$8 sm:$0xf0]
    %vm875 = vcmask 1047556
    %v876 = vsel %vm875, %v874, %v872
    %vm877 = vcmask 662528
    %s878 = scalar_lea.vmem %s1, 272
    %879 = vst.msk [vmem:[%s878] sm:$0xff] %vm877, %v876
    %s880 = scalar_lea.vmem [#allocation0], 1
    %v881 = vld [vmem:[%s880] ss:$8 sm:$0xf]
    %s882 = scalar_lea.vmem [#allocation0], 1
    %v883 = vld [vmem:[%s882] ss:$8 sm:$0xf0]
    %vm884 = vcmask 1047556
    %v885 = vsel %vm884, %v883, %v881
    %s886 = scalar_lea.vmem [#allocation0], 1
    %v887 = vld [vmem:[%s886] ss:$8 sm:$0xf]
    %s888 = scalar_lea.vmem [#allocation0], 1
    %v889 = vld [vmem:[%s888] ss:$8 sm:$0xf0]
    %vm890 = vcmask 1047556
    %v891 = vsel %vm890, %v889, %v887
    %vm892 = vcmask 384000
    %v893 = vsel %vm892, %v891, %v885
    %894 = vrot.lane.b32.xlu0 %v893, 81
    %v895 = vpop.permute.xlu0 %894
    %vm896 = vcmask 277504
    %s897 = scalar_lea.vmem %s1, 8
    %898 = vst.msk [vmem:[%s897] sm:$0xff] %vm896, %v895
    %vm899 = vcmask 1048200
    %900 = vst.msk [vmem:[%s1] sm:$0xff] %vm899, %v895
    %s901 = scalar_lea.vmem [#allocation0], 129
    %v902 = vld [vmem:[%s901] ss:$8 sm:$0xf]
    %s903 = scalar_lea.vmem [#allocation0], 129
    %v904 = vld [vmem:[%s903] ss:$8 sm:$0xf0]
    %vm905 = vcmask 1047556
    %v906 = vsel %vm905, %v904, %v902
    %s907 = scalar_lea.vmem [#allocation0], 129
    %v908 = vld [vmem:[%s907] ss:$8 sm:$0xf]
    %s909 = scalar_lea.vmem [#allocation0], 129
    %v910 = vld [vmem:[%s909] ss:$8 sm:$0xf0]
    %vm911 = vcmask 1047556
    %v912 = vsel %vm911, %v910, %v908
    %vm913 = vcmask 384000
    %v914 = vsel %vm913, %v912, %v906
    %915 = vrot.lane.b32.xlu0 %v914, 81
    %v916 = vpop.permute.xlu0 %915
    %vm917 = vcmask 277504
    %s918 = scalar_lea.vmem %s1, 40
    %919 = vst.msk [vmem:[%s918] sm:$0xff] %vm917, %v916
    %vm920 = vcmask 1048200
    %s921 = scalar_lea.vmem %s1, 32
    %922 = vst.msk [vmem:[%s921] sm:$0xff] %vm920, %v916
    %s923 = scalar_lea.vmem [#allocation0], 257
    %v924 = vld [vmem:[%s923] ss:$8 sm:$0xf]
    %s925 = scalar_lea.vmem [#allocation0], 257
    %v926 = vld [vmem:[%s925] ss:$8 sm:$0xf0]
    %vm927 = vcmask 1047556
    %v928 = vsel %vm927, %v926, %v924
    %s929 = scalar_lea.vmem [#allocation0], 257
    %v930 = vld [vmem:[%s929] ss:$8 sm:$0xf]
    %s931 = scalar_lea.vmem [#allocation0], 257
    %v932 = vld [vmem:[%s931] ss:$8 sm:$0xf0]
    %vm933 = vcmask 1047556
    %v934 = vsel %vm933, %v932, %v930
    %vm935 = vcmask 384000
    %v936 = vsel %vm935, %v934, %v928
    %937 = vrot.lane.b32.xlu0 %v936, 81
    %v938 = vpop.permute.xlu0 %937
    %vm939 = vcmask 277504
    %s940 = scalar_lea.vmem %s1, 72
    %941 = vst.msk [vmem:[%s940] sm:$0xff] %vm939, %v938
    %vm942 = vcmask 1048200
    %s943 = scalar_lea.vmem %s1, 64
    %944 = vst.msk [vmem:[%s943] sm:$0xff] %vm942, %v938
    %s945 = scalar_lea.vmem [#allocation0], 385
    %v946 = vld [vmem:[%s945] ss:$8 sm:$0xf]
    %s947 = scalar_lea.vmem [#allocation0], 385
    %v948 = vld [vmem:[%s947] ss:$8 sm:$0xf0]
    %vm949 = vcmask 1047556
    %v950 = vsel %vm949, %v948, %v946
    %s951 = scalar_lea.vmem [#allocation0], 385
    %v952 = vld [vmem:[%s951] ss:$8 sm:$0xf]
    %s953 = scalar_lea.vmem [#allocation0], 385
    %v954 = vld [vmem:[%s953] ss:$8 sm:$0xf0]
    %vm955 = vcmask 1047556
    %v956 = vsel %vm955, %v954, %v952
    %vm957 = vcmask 384000
    %v958 = vsel %vm957, %v956, %v950
    %959 = vrot.lane.b32.xlu0 %v958, 81
    %v960 = vpop.permute.xlu0 %959
    %vm961 = vcmask 277504
    %s962 = scalar_lea.vmem %s1, 104
    %963 = vst.msk [vmem:[%s962] sm:$0xff] %vm961, %v960
    %vm964 = vcmask 1048200
    %s965 = scalar_lea.vmem %s1, 96
    %966 = vst.msk [vmem:[%s965] sm:$0xff] %vm964, %v960
    %s967 = scalar_lea.vmem [#allocation0], 513
    %v968 = vld [vmem:[%s967] ss:$8 sm:$0xf]
    %s969 = scalar_lea.vmem [#allocation0], 513
    %v970 = vld [vmem:[%s969] ss:$8 sm:$0xf0]
    %vm971 = vcmask 1047556
    %v972 = vsel %vm971, %v970, %v968
    %s973 = scalar_lea.vmem [#allocation0], 513
    %v974 = vld [vmem:[%s973] ss:$8 sm:$0xf]
    %s975 = scalar_lea.vmem [#allocation0], 513
    %v976 = vld [vmem:[%s975] ss:$8 sm:$0xf0]
    %vm977 = vcmask 1047556
    %v978 = vsel %vm977, %v976, %v974
    %vm979 = vcmask 384000
    %v980 = vsel %vm979, %v978, %v972
    %981 = vrot.lane.b32.xlu0 %v980, 81
    %v982 = vpop.permute.xlu0 %981
    %vm983 = vcmask 277504
    %s984 = scalar_lea.vmem %s1, 136
    %985 = vst.msk [vmem:[%s984] sm:$0xff] %vm983, %v982
    %vm986 = vcmask 1048200
    %s987 = scalar_lea.vmem %s1, 128
    %988 = vst.msk [vmem:[%s987] sm:$0xff] %vm986, %v982
    %s989 = scalar_lea.vmem [#allocation0], 641
    %v990 = vld [vmem:[%s989] ss:$8 sm:$0xf]
    %s991 = scalar_lea.vmem [#allocation0], 641
    %v992 = vld [vmem:[%s991] ss:$8 sm:$0xf0]
    %vm993 = vcmask 1047556
    %v994 = vsel %vm993, %v992, %v990
    %s995 = scalar_lea.vmem [#allocation0], 641
    %v996 = vld [vmem:[%s995] ss:$8 sm:$0xf]
    %s997 = scalar_lea.vmem [#allocation0], 641
    %v998 = vld [vmem:[%s997] ss:$8 sm:$0xf0]
    %vm999 = vcmask 1047556
    %v1000 = vsel %vm999, %v998, %v996
    %vm1001 = vcmask 384000
    %v1002 = vsel %vm1001, %v1000, %v994
    %1003 = vrot.lane.b32.xlu0 %v1002, 81
    %v1004 = vpop.permute.xlu0 %1003
    %vm1005 = vcmask 277504
    %s1006 = scalar_lea.vmem %s1, 168
    %1007 = vst.msk [vmem:[%s1006] sm:$0xff] %vm1005, %v1004
    %vm1008 = vcmask 1048200
    %s1009 = scalar_lea.vmem %s1, 160
    %1010 = vst.msk [vmem:[%s1009] sm:$0xff] %vm1008, %v1004
    %s1011 = scalar_lea.vmem [#allocation0], 769
    %v1012 = vld [vmem:[%s1011] ss:$8 sm:$0xf]
    %s1013 = scalar_lea.vmem [#allocation0], 769
    %v1014 = vld [vmem:[%s1013] ss:$8 sm:$0xf0]
    %vm1015 = vcmask 1047556
    %v1016 = vsel %vm1015, %v1014, %v1012
    %s1017 = scalar_lea.vmem [#allocation0], 769
    %v1018 = vld [vmem:[%s1017] ss:$8 sm:$0xf]
    %s1019 = scalar_lea.vmem [#allocation0], 769
    %v1020 = vld [vmem:[%s1019] ss:$8 sm:$0xf0]
    %vm1021 = vcmask 1047556
    %v1022 = vsel %vm1021, %v1020, %v1018
    %vm1023 = vcmask 384000
    %v1024 = vsel %vm1023, %v1022, %v1016
    %1025 = vrot.lane.b32.xlu0 %v1024, 81
    %v1026 = vpop.permute.xlu0 %1025
    %vm1027 = vcmask 277504
    %s1028 = scalar_lea.vmem %s1, 200
    %1029 = vst.msk [vmem:[%s1028] sm:$0xff] %vm1027, %v1026
    %vm1030 = vcmask 1048200
    %s1031 = scalar_lea.vmem %s1, 192
    %1032 = vst.msk [vmem:[%s1031] sm:$0xff] %vm1030, %v1026
    %s1033 = scalar_lea.vmem [#allocation0], 897
    %v1034 = vld [vmem:[%s1033] ss:$8 sm:$0xf]
    %s1035 = scalar_lea.vmem [#allocation0], 897
    %v1036 = vld [vmem:[%s1035] ss:$8 sm:$0xf0]
    %vm1037 = vcmask 1047556
    %v1038 = vsel %vm1037, %v1036, %v1034
    %s1039 = scalar_lea.vmem [#allocation0], 897
    %v1040 = vld [vmem:[%s1039] ss:$8 sm:$0xf]
    %s1041 = scalar_lea.vmem [#allocation0], 897
    %v1042 = vld [vmem:[%s1041] ss:$8 sm:$0xf0]
    %vm1043 = vcmask 1047556
    %v1044 = vsel %vm1043, %v1042, %v1040
    %vm1045 = vcmask 384000
    %v1046 = vsel %vm1045, %v1044, %v1038
    %1047 = vrot.lane.b32.xlu0 %v1046, 81
    %v1048 = vpop.permute.xlu0 %1047
    %vm1049 = vcmask 277504
    %s1050 = scalar_lea.vmem %s1, 232
    %1051 = vst.msk [vmem:[%s1050] sm:$0xff] %vm1049, %v1048
    %vm1052 = vcmask 1048200
    %s1053 = scalar_lea.vmem %s1, 224
    %1054 = vst.msk [vmem:[%s1053] sm:$0xff] %vm1052, %v1048
    %s1055 = scalar_lea.vmem [#allocation0], 1025
    %v1056 = vld [vmem:[%s1055] ss:$8 sm:$0xf]
    %s1057 = scalar_lea.vmem [#allocation0], 1025
    %v1058 = vld [vmem:[%s1057] ss:$8 sm:$0xf0]
    %vm1059 = vcmask 1047556
    %v1060 = vsel %vm1059, %v1058, %v1056
    %s1061 = scalar_lea.vmem [#allocation0], 1025
    %v1062 = vld [vmem:[%s1061] ss:$8 sm:$0xf]
    %s1063 = scalar_lea.vmem [#allocation0], 1025
    %v1064 = vld [vmem:[%s1063] ss:$8 sm:$0xf0]
    %vm1065 = vcmask 1047556
    %v1066 = vsel %vm1065, %v1064, %v1062
    %vm1067 = vcmask 384000
    %v1068 = vsel %vm1067, %v1066, %v1060
    %1069 = vrot.lane.b32.xlu0 %v1068, 81
    %v1070 = vpop.permute.xlu0 %1069
    %vm1071 = vcmask 277504
    %s1072 = scalar_lea.vmem %s1, 264
    %1073 = vst.msk [vmem:[%s1072] sm:$0xff] %vm1071, %v1070
    %vm1074 = vcmask 1048200
    %s1075 = scalar_lea.vmem %s1, 256
    %1076 = vst.msk [vmem:[%s1075] sm:$0xff] %vm1074, %v1070
    %s1077 = scalar_lea.vmem [#allocation0], 65
    %v1078 = vld [vmem:[%s1077] ss:$8 sm:$0xf]
    %s1079 = scalar_lea.vmem [#allocation0], 65
    %v1080 = vld [vmem:[%s1079] ss:$8 sm:$0xf0]
    %vm1081 = vcmask 1047556
    %v1082 = vsel %vm1081, %v1080, %v1078
    %s1083 = scalar_lea.vmem [#allocation0], 65
    %v1084 = vld [vmem:[%s1083] ss:$8 sm:$0xf]
    %s1085 = scalar_lea.vmem [#allocation0], 65
    %v1086 = vld [vmem:[%s1085] ss:$8 sm:$0xf0]
    %vm1087 = vcmask 1047556
    %v1088 = vsel %vm1087, %v1086, %v1084
    %vm1089 = vcmask 384000
    %v1090 = vsel %vm1089, %v1088, %v1082
    %1091 = vrot.lane.b32.xlu0 %v1090, 81
    %v1092 = vpop.permute.xlu0 %1091
    %vm1093 = vcmask 277504
    %s1094 = scalar_lea.vmem %s1, 24
    %1095 = vst.msk [vmem:[%s1094] sm:$0xff] %vm1093, %v1092
    %vm1096 = vcmask 1048200
    %s1097 = scalar_lea.vmem %s1, 16
    %1098 = vst.msk [vmem:[%s1097] sm:$0xff] %vm1096, %v1092
    %s1099 = scalar_lea.vmem [#allocation0], 193
    %v1100 = vld [vmem:[%s1099] ss:$8 sm:$0xf]
    %s1101 = scalar_lea.vmem [#allocation0], 193
    %v1102 = vld [vmem:[%s1101] ss:$8 sm:$0xf0]
    %vm1103 = vcmask 1047556
    %v1104 = vsel %vm1103, %v1102, %v1100
    %s1105 = scalar_lea.vmem [#allocation0], 193
    %v1106 = vld [vmem:[%s1105] ss:$8 sm:$0xf]
    %s1107 = scalar_lea.vmem [#allocation0], 193
    %v1108 = vld [vmem:[%s1107] ss:$8 sm:$0xf0]
    %vm1109 = vcmask 1047556
    %v1110 = vsel %vm1109, %v1108, %v1106
    %vm1111 = vcmask 384000
    %v1112 = vsel %vm1111, %v1110, %v1104
    %1113 = vrot.lane.b32.xlu0 %v1112, 81
    %v1114 = vpop.permute.xlu0 %1113
    %vm1115 = vcmask 277504
    %s1116 = scalar_lea.vmem %s1, 56
    %1117 = vst.msk [vmem:[%s1116] sm:$0xff] %vm1115, %v1114
    %vm1118 = vcmask 1048200
    %s1119 = scalar_lea.vmem %s1, 48
    %1120 = vst.msk [vmem:[%s1119] sm:$0xff] %vm1118, %v1114
    %s1121 = scalar_lea.vmem [#allocation0], 321
    %v1122 = vld [vmem:[%s1121] ss:$8 sm:$0xf]
    %s1123 = scalar_lea.vmem [#allocation0], 321
    %v1124 = vld [vmem:[%s1123] ss:$8 sm:$0xf0]
    %vm1125 = vcmask 1047556
    %v1126 = vsel %vm1125, %v1124, %v1122
    %s1127 = scalar_lea.vmem [#allocation0], 321
    %v1128 = vld [vmem:[%s1127] ss:$8 sm:$0xf]
    %s1129 = scalar_lea.vmem [#allocation0], 321
    %v1130 = vld [vmem:[%s1129] ss:$8 sm:$0xf0]
    %vm1131 = vcmask 1047556
    %v1132 = vsel %vm1131, %v1130, %v1128
    %vm1133 = vcmask 384000
    %v1134 = vsel %vm1133, %v1132, %v1126
    %1135 = vrot.lane.b32.xlu0 %v1134, 81
    %v1136 = vpop.permute.xlu0 %1135
    %vm1137 = vcmask 277504
    %s1138 = scalar_lea.vmem %s1, 88
    %1139 = vst.msk [vmem:[%s1138] sm:$0xff] %vm1137, %v1136
    %vm1140 = vcmask 1048200
    %s1141 = scalar_lea.vmem %s1, 80
    %1142 = vst.msk [vmem:[%s1141] sm:$0xff] %vm1140, %v1136
    %s1143 = scalar_lea.vmem [#allocation0], 449
    %v1144 = vld [vmem:[%s1143] ss:$8 sm:$0xf]
    %s1145 = scalar_lea.vmem [#allocation0], 449
    %v1146 = vld [vmem:[%s1145] ss:$8 sm:$0xf0]
    %vm1147 = vcmask 1047556
    %v1148 = vsel %vm1147, %v1146, %v1144
    %s1149 = scalar_lea.vmem [#allocation0], 449
    %v1150 = vld [vmem:[%s1149] ss:$8 sm:$0xf]
    %s1151 = scalar_lea.vmem [#allocation0], 449
    %v1152 = vld [vmem:[%s1151] ss:$8 sm:$0xf0]
    %vm1153 = vcmask 1047556
    %v1154 = vsel %vm1153, %v1152, %v1150
    %vm1155 = vcmask 384000
    %v1156 = vsel %vm1155, %v1154, %v1148
    %1157 = vrot.lane.b32.xlu0 %v1156, 81
    %v1158 = vpop.permute.xlu0 %1157
    %vm1159 = vcmask 277504
    %s1160 = scalar_lea.vmem %s1, 120
    %1161 = vst.msk [vmem:[%s1160] sm:$0xff] %vm1159, %v1158
    %vm1162 = vcmask 1048200
    %s1163 = scalar_lea.vmem %s1, 112
    %1164 = vst.msk [vmem:[%s1163] sm:$0xff] %vm1162, %v1158
    %s1165 = scalar_lea.vmem [#allocation0], 577
    %v1166 = vld [vmem:[%s1165] ss:$8 sm:$0xf]
    %s1167 = scalar_lea.vmem [#allocation0], 577
    %v1168 = vld [vmem:[%s1167] ss:$8 sm:$0xf0]
    %vm1169 = vcmask 1047556
    %v1170 = vsel %vm1169, %v1168, %v1166
    %s1171 = scalar_lea.vmem [#allocation0], 577
    %v1172 = vld [vmem:[%s1171] ss:$8 sm:$0xf]
    %s1173 = scalar_lea.vmem [#allocation0], 577
    %v1174 = vld [vmem:[%s1173] ss:$8 sm:$0xf0]
    %vm1175 = vcmask 1047556
    %v1176 = vsel %vm1175, %v1174, %v1172
    %vm1177 = vcmask 384000
    %v1178 = vsel %vm1177, %v1176, %v1170
    %1179 = vrot.lane.b32.xlu0 %v1178, 81
    %v1180 = vpop.permute.xlu0 %1179
    %vm1181 = vcmask 277504
    %s1182 = scalar_lea.vmem %s1, 152
    %1183 = vst.msk [vmem:[%s1182] sm:$0xff] %vm1181, %v1180
    %vm1184 = vcmask 1048200
    %s1185 = scalar_lea.vmem %s1, 144
    %1186 = vst.msk [vmem:[%s1185] sm:$0xff] %vm1184, %v1180
    %s1187 = scalar_lea.vmem [#allocation0], 705
    %v1188 = vld [vmem:[%s1187] ss:$8 sm:$0xf]
    %s1189 = scalar_lea.vmem [#allocation0], 705
    %v1190 = vld [vmem:[%s1189] ss:$8 sm:$0xf0]
    %vm1191 = vcmask 1047556
    %v1192 = vsel %vm1191, %v1190, %v1188
    %s1193 = scalar_lea.vmem [#allocation0], 705
    %v1194 = vld [vmem:[%s1193] ss:$8 sm:$0xf]
    %s1195 = scalar_lea.vmem [#allocation0], 705
    %v1196 = vld [vmem:[%s1195] ss:$8 sm:$0xf0]
    %vm1197 = vcmask 1047556
    %v1198 = vsel %vm1197, %v1196, %v1194
    %vm1199 = vcmask 384000
    %v1200 = vsel %vm1199, %v1198, %v1192
    %1201 = vrot.lane.b32.xlu0 %v1200, 81
    %v1202 = vpop.permute.xlu0 %1201
    %vm1203 = vcmask 277504
    %s1204 = scalar_lea.vmem %s1, 184
    %1205 = vst.msk [vmem:[%s1204] sm:$0xff] %vm1203, %v1202
    %vm1206 = vcmask 1048200
    %s1207 = scalar_lea.vmem %s1, 176
    %1208 = vst.msk [vmem:[%s1207] sm:$0xff] %vm1206, %v1202
    %s1209 = scalar_lea.vmem [#allocation0], 833
    %v1210 = vld [vmem:[%s1209] ss:$8 sm:$0xf]
    %s1211 = scalar_lea.vmem [#allocation0], 833
    %v1212 = vld [vmem:[%s1211] ss:$8 sm:$0xf0]
    %vm1213 = vcmask 1047556
    %v1214 = vsel %vm1213, %v1212, %v1210
    %s1215 = scalar_lea.vmem [#allocation0], 833
    %v1216 = vld [vmem:[%s1215] ss:$8 sm:$0xf]
    %s1217 = scalar_lea.vmem [#allocation0], 833
    %v1218 = vld [vmem:[%s1217] ss:$8 sm:$0xf0]
    %vm1219 = vcmask 1047556
    %v1220 = vsel %vm1219, %v1218, %v1216
    %vm1221 = vcmask 384000
    %v1222 = vsel %vm1221, %v1220, %v1214
    %1223 = vrot.lane.b32.xlu0 %v1222, 81
    %v1224 = vpop.permute.xlu0 %1223
    %vm1225 = vcmask 277504
    %s1226 = scalar_lea.vmem %s1, 216
    %1227 = vst.msk [vmem:[%s1226] sm:$0xff] %vm1225, %v1224
    %vm1228 = vcmask 1048200
    %s1229 = scalar_lea.vmem %s1, 208
    %1230 = vst.msk [vmem:[%s1229] sm:$0xff] %vm1228, %v1224
    %s1231 = scalar_lea.vmem [#allocation0], 961
    %v1232 = vld [vmem:[%s1231] ss:$8 sm:$0xf]
    %s1233 = scalar_lea.vmem [#allocation0], 961
    %v1234 = vld [vmem:[%s1233] ss:$8 sm:$0xf0]
    %vm1235 = vcmask 1047556
    %v1236 = vsel %vm1235, %v1234, %v1232
    %s1237 = scalar_lea.vmem [#allocation0], 961
    %v1238 = vld [vmem:[%s1237] ss:$8 sm:$0xf]
    %s1239 = scalar_lea.vmem [#allocation0], 961
    %v1240 = vld [vmem:[%s1239] ss:$8 sm:$0xf0]
    %vm1241 = vcmask 1047556
    %v1242 = vsel %vm1241, %v1240, %v1238
    %vm1243 = vcmask 384000
    %v1244 = vsel %vm1243, %v1242, %v1236
    %1245 = vrot.lane.b32.xlu0 %v1244, 81
    %v1246 = vpop.permute.xlu0 %1245
    %vm1247 = vcmask 277504
    %s1248 = scalar_lea.vmem %s1, 248
    %1249 = vst.msk [vmem:[%s1248] sm:$0xff] %vm1247, %v1246
    %vm1250 = vcmask 1048200
    %s1251 = scalar_lea.vmem %s1, 240
    %1252 = vst.msk [vmem:[%s1251] sm:$0xff] %vm1250, %v1246
    %s1253 = scalar_lea.vmem [#allocation0], 1089
    %v1254 = vld [vmem:[%s1253] ss:$8 sm:$0xf]
    %s1255 = scalar_lea.vmem [#allocation0], 1089
    %v1256 = vld [vmem:[%s1255] ss:$8 sm:$0xf0]
    %vm1257 = vcmask 1047556
    %v1258 = vsel %vm1257, %v1256, %v1254
    %s1259 = scalar_lea.vmem [#allocation0], 1089
    %v1260 = vld [vmem:[%s1259] ss:$8 sm:$0xf]
    %s1261 = scalar_lea.vmem [#allocation0], 1089
    %v1262 = vld [vmem:[%s1261] ss:$8 sm:$0xf0]
    %vm1263 = vcmask 1047556
    %v1264 = vsel %vm1263, %v1262, %v1260
    %vm1265 = vcmask 384000
    %v1266 = vsel %vm1265, %v1264, %v1258
    %1267 = vrot.lane.b32.xlu0 %v1266, 81
    %v1268 = vpop.permute.xlu0 %1267
    %vm1269 = vcmask 277504
    %s1270 = scalar_lea.vmem %s1, 280
    %1271 = vst.msk [vmem:[%s1270] sm:$0xff] %vm1269, %v1268
    %vm1272 = vcmask 1048200
    %s1273 = scalar_lea.vmem %s1, 272
    %1274 = vst.msk [vmem:[%s1273] sm:$0xff] %vm1272, %v1268

// kernel: network_forward.1
$region0: #{network_forward.1}
  #allocation0 [shape = 'u32[]', space=smem, size = 0x4, offset = 0x4, fixed_abs, tag = 'smem constant byte address 0x4 - core index']
  #allocation1 [shape = 'u32[144,128]{1,0:T(1,128)}', space=vmem, size = 0x12000, scoped, tag = 'internal scratch']
  #allocation2 [shape = 'f32[194,144]{1,0:T(8,128)}', space=vmem, size = 0x32000, scoped, tag = 'scratch operand']
  %s0 = inlined_call_operand.vmem [shape: f32[162,12], index: 0, kind: input, shape index: {}]
  %s1 = inlined_call_operand.vmem [shape: f32[162,144], index: 1, kind: input, shape index: {}]
  %s2 = inlined_call_operand.vmem [shape: f32[2,162], index: 2, kind: input, shape index: {}]
  %s3 = inlined_call_operand.vmem [shape: f32[162,2], index: 3, kind: input, shape index: {}]
  %s4 = inlined_call_operand.vmem [shape: f32[4,128], index: 4, kind: input, shape index: {}]
  %s5 = inlined_call_operand.vmem [shape: f32[128,32], index: 5, kind: input, shape index: {}]
  %s6 = inlined_call_operand.vmem [shape: f32[12,16], index: 6, kind: input, shape index: {}]
  %s7 = inlined_call_operand.vmem [shape: f32[1,16], index: 7, kind: input, shape index: {}]
  %s8 = inlined_call_operand.vmem [shape: f32[1,16], index: 8, kind: input, shape index: {}]
  %s9 = inlined_call_operand.vmem [shape: f32[144,128], index: 9, kind: input, shape index: {}]
  %s10 = inlined_call_operand.vmem [shape: f32[4,32], index: 10, kind: input, shape index: {}]
  %s11 = inlined_call_operand.vmem [shape: f32[16,4], index: 11, kind: input, shape index: {}]
  %s12 = inlined_call_operand.vmem [shape: f32[1,4], index: 12, kind: input, shape index: {}]
  %s13 = inlined_call_operand.vmem [shape: f32[4,4], index: 13, kind: input, shape index: {}]
  %s14 = inlined_call_operand.vmem [shape: f32[1,4], index: 14, kind: input, shape index: {}]
  %s15 = inlined_call_operand.vmem [shape: f32[1,32], index: 15, kind: input, shape index: {}]
  %s16 = inlined_call_operand.vmem [shape: f32[1,32], index: 16, kind: input, shape index: {}]
  %s17 = inlined_call_operand.hbm [shape: f32[2,32], index: 17, kind: output, shape index: {}]
  %s18 = sld [smem:[#allocation0]]
  $region78: #{network_forward.1} parent=0
    _
  %s20 = ssub.s32 1, %s18
  %s21 = scalar_select 0, %s20, %s18
  $region1: #{network_forward.1} parent=0
    #allocation3 [shape = 'u8[1024]{0}', space=vmem, size = 0x400, scoped, tag = 'output window, operand 0, single buffered']
    #allocation4 [shape = 's32[1]{0}', space=sflag, size = 0x4, scoped, tag = 'scoped memory for network_forward.1']
    %22 = vsyncpa [#allocation4], 0
    // Predicated region
    $region2: #{network_forward.1} parent=1 // pred_check
      _
    $region3: #{network_forward.1} parent=1 // pred_check_branch
      %24 = sbr.rel (0) target = $region5
    $region4: #{network_forward.1} parent=1 // pred_region
      _
    $region5: #{network_forward.1} parent=1 // pred_fallthru
      _
    // Predicated region
    $region6: #{network_forward.1} parent=1 // pred_check
      _
    $region7: #{network_forward.1} parent=1 // pred_check_branch
      %26 = sbr.rel (0) target = $region9
    $region8: #{network_forward.1} parent=1 // pred_region
      _
    $region9: #{network_forward.1} parent=1 // pred_fallthru
      _
    // Predicated region
    $region10: #{network_forward.1} parent=1 // pred_check
      _
    $region11: #{network_forward.1} parent=1 // pred_check_branch
      %28 = sbr.rel (0) target = $region13
    $region12: #{network_forward.1} parent=1 // pred_region
      _
    $region13: #{network_forward.1} parent=1 // pred_fallthru
      _
    // Predicated region
    $region14: #{network_forward.1} parent=1 // pred_check
      _
    $region15: #{network_forward.1} parent=1 // pred_check_branch
      %30 = sbr.rel (0) target = $region17
    $region16: #{network_forward.1} parent=1 // pred_region
      _
    $region17: #{network_forward.1} parent=1 // pred_fallthru
      _
    // Predicated region
    $region18: #{network_forward.1} parent=1 // pred_check
      _
    $region19: #{network_forward.1} parent=1 // pred_check_branch
      %32 = sbr.rel (0) target = $region21
    $region20: #{network_forward.1} parent=1 // pred_region
      _
    $region21: #{network_forward.1} parent=1 // pred_fallthru
      _
    // Predicated region
    $region22: #{network_forward.1} parent=1 // pred_check
      _
    $region23: #{network_forward.1} parent=1 // pred_check_branch
      %34 = sbr.rel (0) target = $region25
    $region24: #{network_forward.1} parent=1 // pred_region
      _
    $region25: #{network_forward.1} parent=1 // pred_fallthru
      _
    // Predicated region
    $region26: #{network_forward.1} parent=1 // pred_check
      _
    $region27: #{network_forward.1} parent=1 // pred_check_branch
      %36 = sbr.rel (0) target = $region29
    $region28: #{network_forward.1} parent=1 // pred_region
      _
    $region29: #{network_forward.1} parent=1 // pred_fallthru
      _
    // Predicated region
    $region30: #{network_forward.1} parent=1 // pred_check
      _
    $region31: #{network_forward.1} parent=1 // pred_check_branch
      %38 = sbr.rel (0) target = $region33
    $region32: #{network_forward.1} parent=1 // pred_region
      _
    $region33: #{network_forward.1} parent=1 // pred_fallthru
      _
    // Predicated region
    $region34: #{network_forward.1} parent=1 // pred_check
      _
    $region35: #{network_forward.1} parent=1 // pred_check_branch
      %40 = sbr.rel (0) target = $region37
    $region36: #{network_forward.1} parent=1 // pred_region
      _
    $region37: #{network_forward.1} parent=1 // pred_fallthru
      _
    // Predicated region
    $region38: #{network_forward.1} parent=1 // pred_check
      _
    $region39: #{network_forward.1} parent=1 // pred_check_branch
      %42 = sbr.rel (0) target = $region41
    $region40: #{network_forward.1} parent=1 // pred_region
      _
    $region41: #{network_forward.1} parent=1 // pred_fallthru
      _
    // Predicated region
    $region42: #{network_forward.1} parent=1 // pred_check
      _
    $region43: #{network_forward.1} parent=1 // pred_check_branch
      %44 = sbr.rel (0) target = $region45
    $region44: #{network_forward.1} parent=1 // pred_region
      _
    $region45: #{network_forward.1} parent=1 // pred_fallthru
      _
    // Predicated region
    $region46: #{network_forward.1} parent=1 // pred_check
      _
    $region47: #{network_forward.1} parent=1 // pred_check_branch
      %46 = sbr.rel (0) target = $region49
    $region48: #{network_forward.1} parent=1 // pred_region
      _
    $region49: #{network_forward.1} parent=1 // pred_fallthru
      _
    // Predicated region
    $region50: #{network_forward.1} parent=1 // pred_check
      _
    $region51: #{network_forward.1} parent=1 // pred_check_branch
      %48 = sbr.rel (0) target = $region53
    $region52: #{network_forward.1} parent=1 // pred_region
      _
    $region53: #{network_forward.1} parent=1 // pred_fallthru
      _
    // Predicated region
    $region54: #{network_forward.1} parent=1 // pred_check
      _
    $region55: #{network_forward.1} parent=1 // pred_check_branch
      %50 = sbr.rel (0) target = $region57
    $region56: #{network_forward.1} parent=1 // pred_region
      _
    $region57: #{network_forward.1} parent=1 // pred_fallthru
      _
    // Predicated region
    $region58: #{network_forward.1} parent=1 // pred_check
      _
    $region59: #{network_forward.1} parent=1 // pred_check_branch
      %52 = sbr.rel (0) target = $region61
    $region60: #{network_forward.1} parent=1 // pred_region
      _
    $region61: #{network_forward.1} parent=1 // pred_fallthru
      _
    // Predicated region
    $region62: #{network_forward.1} parent=1 // pred_check
      _
    $region63: #{network_forward.1} parent=1 // pred_check_branch
      %54 = sbr.rel (0) target = $region65
    $region64: #{network_forward.1} parent=1 // pred_region
      _
    $region65: #{network_forward.1} parent=1 // pred_fallthru
      _
    // Predicated region
    $region66: #{network_forward.1} parent=1 // pred_check
      _
    $region67: #{network_forward.1} parent=1 // pred_check_branch
      %56 = sbr.rel (0) target = $region69
    $region68: #{network_forward.1} parent=1 // pred_region
      _
    $region69: #{network_forward.1} parent=1 // pred_fallthru
      _
    %v57 = vld [vmem:[%s0] sm:$0xff]
    %v58 = vld [vmem:[%s0 + $0x8] sm:$0xff]
    %v59 = vld [vmem:[%s0 + $0x10] sm:$0xff]
    %v60 = vld [vmem:[%s0 + $0x18] sm:$0xff]
    %v61 = vld [vmem:[%s0 + $0x20] sm:$0xff]
    %v62 = vld [vmem:[%s0 + $0x28] sm:$0xff]
    %v63 = vld [vmem:[%s0 + $0x30] sm:$0xff]
    %v64 = vld [vmem:[%s0 + $0x38] sm:$0xff]
    %v65 = vld [vmem:[%s0 + $0x40] sm:$0xff]
    %v66 = vld [vmem:[%s0 + $0x48] sm:$0xff]
    %v67 = vld [vmem:[%s0 + $0x50] sm:$0xff]
    %v68 = vld [vmem:[%s0 + $0x58] sm:$0xff]
    %v69 = vld [vmem:[%s0 + $0x60] sm:$0xff]
    %v70 = vld [vmem:[%s0 + $0x68] sm:$0xff]
    %v71 = vld [vmem:[%s0 + $0x70] sm:$0xff]
    %v72 = vld [vmem:[%s0 + $0x78] sm:$0xff]
    %v73 = vld [vmem:[%s0 + $0x80] sm:$0xff]
    %v74 = vld [vmem:[%s0 + $0x88] sm:$0xff]
    %v75 = vld [vmem:[%s0 + $0x90] sm:$0xff]
    %v76 = vld [vmem:[%s0 + $0x98] sm:$0xff]
    %v77 = vld [vmem:[%s0 + $0xa0] sm:$0x3]
    %v78 = vld [vmem:[%s6] sm:$0xff]
    %v79 = vld [vmem:[%s6 + $0x8] sm:$0xf]
    %vm80 = vcmask 97280
    %v82 = vsel %vm80, %v57, 0
    %v85 = vsel %vm80, %v58, 0
    %v88 = vsel %vm80, %v59, 0
    %v91 = vsel %vm80, %v60, 0
    %v94 = vsel %vm80, %v61, 0
    %v97 = vsel %vm80, %v62, 0
    %v100 = vsel %vm80, %v63, 0
    %v103 = vsel %vm80, %v64, 0
    %v106 = vsel %vm80, %v65, 0
    %v109 = vsel %vm80, %v66, 0
    %v112 = vsel %vm80, %v67, 0
    %v115 = vsel %vm80, %v68, 0
    %v118 = vsel %vm80, %v69, 0
    %v121 = vsel %vm80, %v70, 0
    %v124 = vsel %vm80, %v71, 0
    %v127 = vsel %vm80, %v72, 0
    %v130 = vsel %vm80, %v73, 0
    %v133 = vsel %vm80, %v74, 0
    %v136 = vsel %vm80, %v75, 0
    %v139 = vsel %vm80, %v76, 0
    %v142 = vsel %vm80, %v77, 0
    %vm144 = vcmask 1043456
    %v146 = vsel %vm144, %v79, 0
    %148 = vmatprep.subr.mxu0 0.0
    %149 = vmatpush1.msra.mxu0 0.0
    %150 = vmatprep.subr.mxu0 0.0
    %151 = vmatpush1.msra.mxu0 0.0
    %152 = vmatprep.subr.mxu0 0.0
    %153 = vmatpush1.msra.mxu0 0.0
    %154 = vmatprep.subr.mxu0 0.0
    %155 = vmatpush1.msra.mxu0 0.0
    %156 = vmatprep.subr.mxu0 0.0
    %157 = vmatpush1.msra.mxu0 0.0
    %158 = vmatprep.subr.mxu0 0.0
    %159 = vmatpush1.msra.mxu0 0.0
    %160 = vmatprep.subr.mxu0 0.0
    %161 = vmatpush1.msra.mxu0 0.0
    %162 = vmatprep.subr.mxu0 0.0
    %163 = vmatpush1.msra.mxu0 0.0
    %164 = vmatprep.subr.mxu0 0.0
    %165 = vmatpush1.msra.mxu0 0.0
    %166 = vmatprep.subr.mxu0 0.0
    %167 = vmatpush1.msra.mxu0 0.0
    %168 = vmatprep.subr.mxu0 0.0
    %169 = vmatpush1.msra.mxu0 0.0
    %170 = vmatprep.subr.mxu0 0.0
    %171 = vmatpush1.msra.mxu0 0.0
    %172 = vmatprep.subr.mxu0 0.0
    %173 = vmatpush1.msra.mxu0 0.0
    %174 = vmatprep.subr.mxu0 0.0
    %175 = vmatpush1.msra.mxu0 0.0
    %176 = vmatprep.subr.mxu0 0.0
    %177 = vmatpush1.msra.mxu0 %v146
    %178 = vmatprep.subr.mxu0 0.0
    %179 = vmatpush1.msra.mxu0 %v78
    %180 = vmatprep.subr.mxu0 0.0
    %181 = vmatpush2.msra.mxu0 0.0
    %182 = vmatprep.subr.mxu0 0.0
    %183 = vmatpush2.msra.mxu0 0.0
    %184 = vmatprep.subr.mxu0 0.0
    %185 = vmatpush2.msra.mxu0 0.0
    %186 = vmatprep.subr.mxu0 0.0
    %187 = vmatpush2.msra.mxu0 0.0
    %188 = vmatprep.subr.mxu0 0.0
    %189 = vmatpush2.msra.mxu0 0.0
    %190 = vmatprep.subr.mxu0 0.0
    %191 = vmatpush2.msra.mxu0 0.0
    %192 = vmatprep.subr.mxu0 0.0
    %193 = vmatpush2.msra.mxu0 0.0
    %194 = vmatprep.subr.mxu0 0.0
    %195 = vmatpush2.msra.mxu0 0.0
    %196 = vmatprep.subr.mxu0 0.0
    %197 = vmatpush2.msra.mxu0 0.0
    %198 = vmatprep.subr.mxu0 0.0
    %199 = vmatpush2.msra.mxu0 0.0
    %200 = vmatprep.subr.mxu0 0.0
    %201 = vmatpush2.msra.mxu0 0.0
    %202 = vmatprep.subr.mxu0 0.0
    %203 = vmatpush2.msra.mxu0 0.0
    %204 = vmatprep.subr.mxu0 0.0
    %205 = vmatpush2.msra.mxu0 0.0
    %206 = vmatprep.subr.mxu0 0.0
    %207 = vmatpush2.msra.mxu0 0.0
    %208 = vmatprep.subr.mxu0 0.0
    %209 = vmatpush2.msra.mxu0 0.0
    %210 = vmatprep.subr.mxu0 0.0
    %211 = vmatpush2.msra.mxu0 0.0
    %212 = vmatprep.mubr.f32.mxu0 0.0
    %213 = vmatmul.mubr.f32.gmra.mxu0 %v82
    %v214 = vpop.f32.mrf.mxu0
    %v215 = vadd.f32 0.0, %v214
    %v216 = vpop.f32.mrf.mxu0
    %217 = vmatprep.mubr.f32.mxu0 0.0
    %218 = vmatmul.mubr.f32.gmra.mxu0 %v85
    %v219 = vpop.f32.mrf.mxu0
    %v220 = vadd.f32 0.0, %v219
    %v221 = vpop.f32.mrf.mxu0
    %222 = vmatprep.mubr.f32.mxu0 0.0
    %223 = vmatmul.mubr.f32.gmra.mxu0 %v88
    %v224 = vpop.f32.mrf.mxu0
    %v225 = vadd.f32 0.0, %v224
    %v226 = vpop.f32.mrf.mxu0
    %227 = vmatprep.mubr.f32.mxu0 0.0
    %228 = vmatmul.mubr.f32.gmra.mxu0 %v91
    %v229 = vpop.f32.mrf.mxu0
    %v230 = vadd.f32 0.0, %v229
    %v231 = vpop.f32.mrf.mxu0
    %232 = vmatprep.mubr.f32.mxu0 0.0
    %233 = vmatmul.mubr.f32.gmra.mxu0 %v94
    %v234 = vpop.f32.mrf.mxu0
    %v235 = vadd.f32 0.0, %v234
    %v236 = vpop.f32.mrf.mxu0
    %237 = vmatprep.mubr.f32.mxu0 0.0
    %238 = vmatmul.mubr.f32.gmra.mxu0 %v97
    %v239 = vpop.f32.mrf.mxu0
    %v240 = vadd.f32 0.0, %v239
    %v241 = vpop.f32.mrf.mxu0
    %242 = vmatprep.mubr.f32.mxu0 0.0
    %243 = vmatmul.mubr.f32.gmra.mxu0 %v100
    %v244 = vpop.f32.mrf.mxu0
    %v245 = vadd.f32 0.0, %v244
    %v246 = vpop.f32.mrf.mxu0
    %247 = vmatprep.mubr.f32.mxu0 0.0
    %248 = vmatmul.mubr.f32.gmra.mxu0 %v103
    %v249 = vpop.f32.mrf.mxu0
    %v250 = vadd.f32 0.0, %v249
    %v251 = vpop.f32.mrf.mxu0
    %252 = vmatprep.mubr.f32.mxu0 0.0
    %253 = vmatmul.mubr.f32.gmra.mxu0 %v106
    %v254 = vpop.f32.mrf.mxu0
    %v255 = vadd.f32 0.0, %v254
    %v256 = vpop.f32.mrf.mxu0
    %257 = vmatprep.mubr.f32.mxu0 0.0
    %258 = vmatmul.mubr.f32.gmra.mxu0 %v109
    %v259 = vpop.f32.mrf.mxu0
    %v260 = vadd.f32 0.0, %v259
    %v261 = vpop.f32.mrf.mxu0
    %262 = vmatprep.mubr.f32.mxu0 0.0
    %263 = vmatmul.mubr.f32.gmra.mxu0 %v112
    %v264 = vpop.f32.mrf.mxu0
    %v265 = vadd.f32 0.0, %v264
    %v266 = vpop.f32.mrf.mxu0
    %267 = vmatprep.mubr.f32.mxu0 0.0
    %268 = vmatmul.mubr.f32.gmra.mxu0 %v115
    %v269 = vpop.f32.mrf.mxu0
    %v270 = vadd.f32 0.0, %v269
    %v271 = vpop.f32.mrf.mxu0
    %272 = vmatprep.mubr.f32.mxu0 0.0
    %273 = vmatmul.mubr.f32.gmra.mxu0 %v118
    %v274 = vpop.f32.mrf.mxu0
    %v275 = vadd.f32 0.0, %v274
    %v276 = vpop.f32.mrf.mxu0
    %277 = vmatprep.mubr.f32.mxu0 0.0
    %278 = vmatmul.mubr.f32.gmra.mxu0 %v121
    %v279 = vpop.f32.mrf.mxu0
    %v280 = vadd.f32 0.0, %v279
    %v281 = vpop.f32.mrf.mxu0
    %282 = vmatprep.mubr.f32.mxu0 0.0
    %283 = vmatmul.mubr.f32.gmra.mxu0 %v124
    %v284 = vpop.f32.mrf.mxu0
    %v285 = vadd.f32 0.0, %v284
    %v286 = vpop.f32.mrf.mxu0
    %287 = vmatprep.mubr.f32.mxu0 0.0
    %288 = vmatmul.mubr.f32.gmra.mxu0 %v127
    %v289 = vpop.f32.mrf.mxu0
    %v290 = vadd.f32 0.0, %v289
    %v291 = vpop.f32.mrf.mxu0
    %292 = vmatprep.mubr.f32.mxu0 0.0
    %293 = vmatmul.mubr.f32.gmra.mxu0 %v130
    %v294 = vpop.f32.mrf.mxu0
    %v295 = vadd.f32 0.0, %v294
    %v296 = vpop.f32.mrf.mxu0
    %297 = vmatprep.mubr.f32.mxu0 0.0
    %298 = vmatmul.mubr.f32.gmra.mxu0 %v133
    %v299 = vpop.f32.mrf.mxu0
    %v300 = vadd.f32 0.0, %v299
    %v301 = vpop.f32.mrf.mxu0
    %302 = vmatprep.mubr.f32.mxu0 0.0
    %303 = vmatmul.mubr.f32.gmra.mxu0 %v136
    %v304 = vpop.f32.mrf.mxu0
    %v305 = vadd.f32 0.0, %v304
    %v306 = vpop.f32.mrf.mxu0
    %307 = vmatprep.mubr.f32.mxu0 0.0
    %308 = vmatmul.mubr.f32.gmra.mxu0 %v139
    %v309 = vpop.f32.mrf.mxu0
    %v310 = vadd.f32 0.0, %v309
    %v311 = vpop.f32.mrf.mxu0
    %312 = vmatprep.mubr.f32.mxu0 0.0
    %313 = vmatmul.mubr.f32.gmra.mxu0 %v142
    %v314 = vpop.f32.mrf.mxu0
    %v315 = vadd.f32 0.0, %v314
    %v316 = vpop.f32.mrf.mxu0
    %317 = vdwg.mxu0
    %v318 = vld [vmem:[%s7] sm:$0x1]
    %v320 = vlaneseq
    %v321 = vshrl.u32 %v320, 7
    %v322 = vsub.s32 0, %v321
    %v323 = vrot.slane %v318, %v322
    %v325 = vmul.f32 %v215, %v323
    %v326 = vmul.f32 %v220, %v323
    %v327 = vmul.f32 %v225, %v323
    %v328 = vmul.f32 %v230, %v323
    %v329 = vmul.f32 %v235, %v323
    %v330 = vmul.f32 %v240, %v323
    %v331 = vmul.f32 %v245, %v323
    %v332 = vmul.f32 %v250, %v323
    %v333 = vmul.f32 %v255, %v323
    %v334 = vmul.f32 %v260, %v323
    %v335 = vmul.f32 %v265, %v323
    %v336 = vmul.f32 %v270, %v323
    %v337 = vmul.f32 %v275, %v323
    %v338 = vmul.f32 %v280, %v323
    %v339 = vmul.f32 %v285, %v323
    %v340 = vmul.f32 %v290, %v323
    %v341 = vmul.f32 %v295, %v323
    %v342 = vmul.f32 %v300, %v323
    %v343 = vmul.f32 %v305, %v323
    %v344 = vmul.f32 %v310, %v323
    %v345 = vmul.f32 %v315, %v323
    %v346 = vld [vmem:[%s8] sm:$0x1]
    %v348 = vlaneseq
    %v349 = vshrl.u32 %v348, 7
    %v350 = vsub.s32 0, %v349
    %v351 = vrot.slane %v346, %v350
    %v353 = vadd.f32 %v325, %v351
    %v354 = vadd.f32 %v326, %v351
    %v355 = vadd.f32 %v327, %v351
    %v356 = vadd.f32 %v328, %v351
    %v357 = vadd.f32 %v329, %v351
    %v358 = vadd.f32 %v330, %v351
    %v359 = vadd.f32 %v331, %v351
    %v360 = vadd.f32 %v332, %v351
    %v361 = vadd.f32 %v333, %v351
    %v362 = vadd.f32 %v334, %v351
    %v363 = vadd.f32 %v335, %v351
    %v364 = vadd.f32 %v336, %v351
    %v365 = vadd.f32 %v337, %v351
    %v366 = vadd.f32 %v338, %v351
    %v367 = vadd.f32 %v339, %v351
    %v368 = vadd.f32 %v340, %v351
    %v369 = vadd.f32 %v341, %v351
    %v370 = vadd.f32 %v342, %v351
    %v371 = vadd.f32 %v343, %v351
    %v372 = vadd.f32 %v344, %v351
    %v373 = vadd.f32 %v345, %v351
    %vm395 = vcmask 1041408
    %v396 = vrot.slane %v353, 6
    %v397 = vrot.slane %v354, 6
    %v398 = vsel %vm395, %v396, %v397
    %v399 = vrot.slane %v355, 6
    %v400 = vsel %vm395, %v397, %v399
    %v401 = vrot.slane %v356, 6
    %v402 = vsel %vm395, %v399, %v401
    %v403 = vrot.slane %v357, 6
    %v404 = vsel %vm395, %v401, %v403
    %v405 = vrot.slane %v358, 6
    %v406 = vsel %vm395, %v403, %v405
    %v407 = vrot.slane %v359, 6
    %v408 = vsel %vm395, %v405, %v407
    %v409 = vrot.slane %v360, 6
    %v410 = vsel %vm395, %v407, %v409
    %v411 = vrot.slane %v361, 6
    %v412 = vsel %vm395, %v409, %v411
    %v413 = vrot.slane %v362, 6
    %v414 = vsel %vm395, %v411, %v413
    %v415 = vrot.slane %v363, 6
    %v416 = vsel %vm395, %v413, %v415
    %v417 = vrot.slane %v364, 6
    %v418 = vsel %vm395, %v415, %v417
    %v419 = vrot.slane %v365, 6
    %v420 = vsel %vm395, %v417, %v419
    %v421 = vrot.slane %v366, 6
    %v422 = vsel %vm395, %v419, %v421
    %v423 = vrot.slane %v367, 6
    %v424 = vsel %vm395, %v421, %v423
    %v425 = vrot.slane %v368, 6
    %v426 = vsel %vm395, %v423, %v425
    %v427 = vrot.slane %v369, 6
    %v428 = vsel %vm395, %v425, %v427
    %v429 = vrot.slane %v370, 6
    %v430 = vsel %vm395, %v427, %v429
    %v431 = vrot.slane %v371, 6
    %v432 = vsel %vm395, %v429, %v431
    %v433 = vrot.slane %v372, 6
    %v434 = vsel %vm395, %v431, %v433
    %v435 = vrot.slane %v373, 6
    %v436 = vsel %vm395, %v433, %v435
    %vm458 = vcmask 130050
    %459 = vst.msk [vmem:[#allocation2 + $0x30] sm:$0xfc] %vm458, %v396
    %vm460 = vcmask 130048
    %461 = vst.msk [vmem:[#allocation2 + $0x40] sm:$0xff] %vm460, %v398
    %462 = vst.msk [vmem:[#allocation2 + $0x50] sm:$0xff] %vm460, %v400
    %463 = vst.msk [vmem:[#allocation2 + $0x60] sm:$0xff] %vm460, %v402
    %464 = vst.msk [vmem:[#allocation2 + $0x70] sm:$0xff] %vm460, %v404
    %465 = vst.msk [vmem:[#allocation2 + $0x80] sm:$0xff] %vm460, %v406
    %466 = vst.msk [vmem:[#allocation2 + $0x90] sm:$0xff] %vm460, %v408
    %467 = vst.msk [vmem:[#allocation2 + $0xa0] sm:$0xff] %vm460, %v410
    %468 = vst.msk [vmem:[#allocation2 + $0xb0] sm:$0xff] %vm460, %v412
    %469 = vst.msk [vmem:[#allocation2 + $0xc0] sm:$0xff] %vm460, %v414
    %470 = vst.msk [vmem:[#allocation2 + $0xd0] sm:$0xff] %vm460, %v416
    %471 = vst.msk [vmem:[#allocation2 + $0xe0] sm:$0xff] %vm460, %v418
    %472 = vst.msk [vmem:[#allocation2 + $0xf0] sm:$0xff] %vm460, %v420
    %473 = vst.msk [vmem:[#allocation2 + $0x100] sm:$0xff] %vm460, %v422
    %474 = vst.msk [vmem:[#allocation2 + $0x110] sm:$0xff] %vm460, %v424
    %475 = vst.msk [vmem:[#allocation2 + $0x120] sm:$0xff] %vm460, %v426
    %476 = vst.msk [vmem:[#allocation2 + $0x130] sm:$0xff] %vm460, %v428
    %477 = vst.msk [vmem:[#allocation2 + $0x140] sm:$0xff] %vm460, %v430
    %478 = vst.msk [vmem:[#allocation2 + $0x150] sm:$0xff] %vm460, %v432
    %479 = vst.msk [vmem:[#allocation2 + $0x160] sm:$0xff] %vm460, %v434
    %vm480 = vcmask 125952
    %481 = vst.msk [vmem:[#allocation2 + $0x170] sm:$0xf] %vm480, %v436
    %vm482 = vcmask 1040384
    %v483 = vrot.slane %v353, 7
    %v484 = vrot.slane %v354, 7
    %v485 = vsel %vm482, %v483, %v484
    %v486 = vrot.slane %v355, 7
    %v487 = vsel %vm482, %v484, %v486
    %v488 = vrot.slane %v356, 7
    %v489 = vsel %vm482, %v486, %v488
    %v490 = vrot.slane %v357, 7
    %v491 = vsel %vm482, %v488, %v490
    %v492 = vrot.slane %v358, 7
    %v493 = vsel %vm482, %v490, %v492
    %v494 = vrot.slane %v359, 7
    %v495 = vsel %vm482, %v492, %v494
    %v496 = vrot.slane %v360, 7
    %v497 = vsel %vm482, %v494, %v496
    %v498 = vrot.slane %v361, 7
    %v499 = vsel %vm482, %v496, %v498
    %v500 = vrot.slane %v362, 7
    %v501 = vsel %vm482, %v498, %v500
    %v502 = vrot.slane %v363, 7
    %v503 = vsel %vm482, %v500, %v502
    %v504 = vrot.slane %v364, 7
    %v505 = vsel %vm482, %v502, %v504
    %v506 = vrot.slane %v365, 7
    %v507 = vsel %vm482, %v504, %v506
    %v508 = vrot.slane %v366, 7
    %v509 = vsel %vm482, %v506, %v508
    %v510 = vrot.slane %v367, 7
    %v511 = vsel %vm482, %v508, %v510
    %v512 = vrot.slane %v368, 7
    %v513 = vsel %vm482, %v510, %v512
    %v514 = vrot.slane %v369, 7
    %v515 = vsel %vm482, %v512, %v514
    %v516 = vrot.slane %v370, 7
    %v517 = vsel %vm482, %v514, %v516
    %v518 = vrot.slane %v371, 7
    %v519 = vsel %vm482, %v516, %v518
    %v520 = vrot.slane %v372, 7
    %v521 = vsel %vm482, %v518, %v520
    %v522 = vrot.slane %v373, 7
    %v523 = vsel %vm482, %v520, %v522
    %524 = vrot.lane.b32.xlu0 %v483, 16
    %v525 = vpop.permute.xlu0 %524
    %526 = vrot.lane.b32.xlu0 %v485, 16
    %v527 = vpop.permute.xlu0 %526
    %528 = vrot.lane.b32.xlu0 %v487, 16
    %v529 = vpop.permute.xlu0 %528
    %530 = vrot.lane.b32.xlu0 %v489, 16
    %v531 = vpop.permute.xlu0 %530
    %532 = vrot.lane.b32.xlu0 %v491, 16
    %v533 = vpop.permute.xlu0 %532
    %534 = vrot.lane.b32.xlu0 %v493, 16
    %v535 = vpop.permute.xlu0 %534
    %536 = vrot.lane.b32.xlu0 %v495, 16
    %v537 = vpop.permute.xlu0 %536
    %538 = vrot.lane.b32.xlu0 %v497, 16
    %v539 = vpop.permute.xlu0 %538
    %540 = vrot.lane.b32.xlu0 %v499, 16
    %v541 = vpop.permute.xlu0 %540
    %542 = vrot.lane.b32.xlu0 %v501, 16
    %v543 = vpop.permute.xlu0 %542
    %544 = vrot.lane.b32.xlu0 %v503, 16
    %v545 = vpop.permute.xlu0 %544
    %546 = vrot.lane.b32.xlu0 %v505, 16
    %v547 = vpop.permute.xlu0 %546
    %548 = vrot.lane.b32.xlu0 %v507, 16
    %v549 = vpop.permute.xlu0 %548
    %550 = vrot.lane.b32.xlu0 %v509, 16
    %v551 = vpop.permute.xlu0 %550
    %552 = vrot.lane.b32.xlu0 %v511, 16
    %v553 = vpop.permute.xlu0 %552
    %554 = vrot.lane.b32.xlu0 %v513, 16
    %v555 = vpop.permute.xlu0 %554
    %556 = vrot.lane.b32.xlu0 %v515, 16
    %v557 = vpop.permute.xlu0 %556
    %558 = vrot.lane.b32.xlu0 %v517, 16
    %v559 = vpop.permute.xlu0 %558
    %560 = vrot.lane.b32.xlu0 %v519, 16
    %v561 = vpop.permute.xlu0 %560
    %562 = vrot.lane.b32.xlu0 %v521, 16
    %v563 = vpop.permute.xlu0 %562
    %564 = vrot.lane.b32.xlu0 %v523, 16
    %v565 = vpop.permute.xlu0 %564
    %vm587 = vcmask 261249
    %588 = vst.msk [vmem:[#allocation2 + $0x30] sm:$0xfe] %vm587, %v525
    %vm589 = vcmask 261248
    %590 = vst.msk [vmem:[#allocation2 + $0x40] sm:$0xff] %vm589, %v527
    %591 = vst.msk [vmem:[#allocation2 + $0x50] sm:$0xff] %vm589, %v529
    %592 = vst.msk [vmem:[#allocation2 + $0x60] sm:$0xff] %vm589, %v531
    %593 = vst.msk [vmem:[#allocation2 + $0x70] sm:$0xff] %vm589, %v533
    %594 = vst.msk [vmem:[#allocation2 + $0x80] sm:$0xff] %vm589, %v535
    %595 = vst.msk [vmem:[#allocation2 + $0x90] sm:$0xff] %vm589, %v537
    %596 = vst.msk [vmem:[#allocation2 + $0xa0] sm:$0xff] %vm589, %v539
    %597 = vst.msk [vmem:[#allocation2 + $0xb0] sm:$0xff] %vm589, %v541
    %598 = vst.msk [vmem:[#allocation2 + $0xc0] sm:$0xff] %vm589, %v543
    %599 = vst.msk [vmem:[#allocation2 + $0xd0] sm:$0xff] %vm589, %v545
    %600 = vst.msk [vmem:[#allocation2 + $0xe0] sm:$0xff] %vm589, %v547
    %601 = vst.msk [vmem:[#allocation2 + $0xf0] sm:$0xff] %vm589, %v549
    %602 = vst.msk [vmem:[#allocation2 + $0x100] sm:$0xff] %vm589, %v551
    %603 = vst.msk [vmem:[#allocation2 + $0x110] sm:$0xff] %vm589, %v553
    %604 = vst.msk [vmem:[#allocation2 + $0x120] sm:$0xff] %vm589, %v555
    %605 = vst.msk [vmem:[#allocation2 + $0x130] sm:$0xff] %vm589, %v557
    %606 = vst.msk [vmem:[#allocation2 + $0x140] sm:$0xff] %vm589, %v559
    %607 = vst.msk [vmem:[#allocation2 + $0x150] sm:$0xff] %vm589, %v561
    %608 = vst.msk [vmem:[#allocation2 + $0x160] sm:$0xff] %vm589, %v563
    %vm609 = vcmask 256128
    %610 = vst.msk [vmem:[#allocation2 + $0x170] sm:$0x7] %vm609, %v565
    %611 = vrot.lane.b32.xlu0 %v353, 32
    %v612 = vpop.permute.xlu0 %611
    %613 = vrot.lane.b32.xlu0 %v354, 32
    %v614 = vpop.permute.xlu0 %613
    %615 = vrot.lane.b32.xlu0 %v355, 32
    %v616 = vpop.permute.xlu0 %615
    %617 = vrot.lane.b32.xlu0 %v356, 32
    %v618 = vpop.permute.xlu0 %617
    %619 = vrot.lane.b32.xlu0 %v357, 32
    %v620 = vpop.permute.xlu0 %619
    %621 = vrot.lane.b32.xlu0 %v358, 32
    %v622 = vpop.permute.xlu0 %621
    %623 = vrot.lane.b32.xlu0 %v359, 32
    %v624 = vpop.permute.xlu0 %623
    %625 = vrot.lane.b32.xlu0 %v360, 32
    %v626 = vpop.permute.xlu0 %625
    %627 = vrot.lane.b32.xlu0 %v361, 32
    %v628 = vpop.permute.xlu0 %627
    %629 = vrot.lane.b32.xlu0 %v362, 32
    %v630 = vpop.permute.xlu0 %629
    %631 = vrot.lane.b32.xlu0 %v363, 32
    %v632 = vpop.permute.xlu0 %631
    %633 = vrot.lane.b32.xlu0 %v364, 32
    %v634 = vpop.permute.xlu0 %633
    %635 = vrot.lane.b32.xlu0 %v365, 32
    %v636 = vpop.permute.xlu0 %635
    %637 = vrot.lane.b32.xlu0 %v366, 32
    %v638 = vpop.permute.xlu0 %637
    %639 = vrot.lane.b32.xlu0 %v367, 32
    %v640 = vpop.permute.xlu0 %639
    %641 = vrot.lane.b32.xlu0 %v368, 32
    %v642 = vpop.permute.xlu0 %641
    %643 = vrot.lane.b32.xlu0 %v369, 32
    %v644 = vpop.permute.xlu0 %643
    %645 = vrot.lane.b32.xlu0 %v370, 32
    %v646 = vpop.permute.xlu0 %645
    %647 = vrot.lane.b32.xlu0 %v371, 32
    %v648 = vpop.permute.xlu0 %647
    %649 = vrot.lane.b32.xlu0 %v372, 32
    %v650 = vpop.permute.xlu0 %649
    %651 = vrot.lane.b32.xlu0 %v373, 32
    %v652 = vpop.permute.xlu0 %651
    %vm674 = vcmask 392448
    %675 = vst.msk [vmem:[#allocation2 + $0x30] sm:$0xff] %vm674, %v612
    %676 = vst.msk [vmem:[#allocation2 + $0x40] sm:$0xff] %vm674, %v614
    %677 = vst.msk [vmem:[#allocation2 + $0x50] sm:$0xff] %vm674, %v616
    %678 = vst.msk [vmem:[#allocation2 + $0x60] sm:$0xff] %vm674, %v618
    %679 = vst.msk [vmem:[#allocation2 + $0x70] sm:$0xff] %vm674, %v620
    %680 = vst.msk [vmem:[#allocation2 + $0x80] sm:$0xff] %vm674, %v622
    %681 = vst.msk [vmem:[#allocation2 + $0x90] sm:$0xff] %vm674, %v624
    %682 = vst.msk [vmem:[#allocation2 + $0xa0] sm:$0xff] %vm674, %v626
    %683 = vst.msk [vmem:[#allocation2 + $0xb0] sm:$0xff] %vm674, %v628
    %684 = vst.msk [vmem:[#allocation2 + $0xc0] sm:$0xff] %vm674, %v630
    %685 = vst.msk [vmem:[#allocation2 + $0xd0] sm:$0xff] %vm674, %v632
    %686 = vst.msk [vmem:[#allocation2 + $0xe0] sm:$0xff] %vm674, %v634
    %687 = vst.msk [vmem:[#allocation2 + $0xf0] sm:$0xff] %vm674, %v636
    %688 = vst.msk [vmem:[#allocation2 + $0x100] sm:$0xff] %vm674, %v638
    %689 = vst.msk [vmem:[#allocation2 + $0x110] sm:$0xff] %vm674, %v640
    %690 = vst.msk [vmem:[#allocation2 + $0x120] sm:$0xff] %vm674, %v642
    %691 = vst.msk [vmem:[#allocation2 + $0x130] sm:$0xff] %vm674, %v644
    %692 = vst.msk [vmem:[#allocation2 + $0x140] sm:$0xff] %vm674, %v646
    %693 = vst.msk [vmem:[#allocation2 + $0x150] sm:$0xff] %vm674, %v648
    %694 = vst.msk [vmem:[#allocation2 + $0x160] sm:$0xff] %vm674, %v650
    %vm695 = vcmask 386304
    %696 = vst.msk [vmem:[#allocation2 + $0x170] sm:$0x3] %vm695, %v652
    %697 = vrot.lane.b32.xlu0 %v483, 48
    %v698 = vpop.permute.xlu0 %697
    %699 = vrot.lane.b32.xlu0 %v485, 48
    %v700 = vpop.permute.xlu0 %699
    %701 = vrot.lane.b32.xlu0 %v487, 48
    %v702 = vpop.permute.xlu0 %701
    %703 = vrot.lane.b32.xlu0 %v489, 48
    %v704 = vpop.permute.xlu0 %703
    %705 = vrot.lane.b32.xlu0 %v491, 48
    %v706 = vpop.permute.xlu0 %705
    %707 = vrot.lane.b32.xlu0 %v493, 48
    %v708 = vpop.permute.xlu0 %707
    %709 = vrot.lane.b32.xlu0 %v495, 48
    %v710 = vpop.permute.xlu0 %709
    %711 = vrot.lane.b32.xlu0 %v497, 48
    %v712 = vpop.permute.xlu0 %711
    %713 = vrot.lane.b32.xlu0 %v499, 48
    %v714 = vpop.permute.xlu0 %713
    %715 = vrot.lane.b32.xlu0 %v501, 48
    %v716 = vpop.permute.xlu0 %715
    %717 = vrot.lane.b32.xlu0 %v503, 48
    %v718 = vpop.permute.xlu0 %717
    %719 = vrot.lane.b32.xlu0 %v505, 48
    %v720 = vpop.permute.xlu0 %719
    %721 = vrot.lane.b32.xlu0 %v507, 48
    %v722 = vpop.permute.xlu0 %721
    %723 = vrot.lane.b32.xlu0 %v509, 48
    %v724 = vpop.permute.xlu0 %723
    %725 = vrot.lane.b32.xlu0 %v511, 48
    %v726 = vpop.permute.xlu0 %725
    %727 = vrot.lane.b32.xlu0 %v513, 48
    %v728 = vpop.permute.xlu0 %727
    %729 = vrot.lane.b32.xlu0 %v515, 48
    %v730 = vpop.permute.xlu0 %729
    %731 = vrot.lane.b32.xlu0 %v517, 48
    %v732 = vpop.permute.xlu0 %731
    %733 = vrot.lane.b32.xlu0 %v519, 48
    %v734 = vpop.permute.xlu0 %733
    %735 = vrot.lane.b32.xlu0 %v521, 48
    %v736 = vpop.permute.xlu0 %735
    %737 = vrot.lane.b32.xlu0 %v523, 48
    %v738 = vpop.permute.xlu0 %737
    %vm760 = vcmask 523649
    %761 = vst.msk [vmem:[#allocation2 + $0x20] sm:$0xfe] %vm760, %v698
    %vm762 = vcmask 523648
    %763 = vst.msk [vmem:[#allocation2 + $0x30] sm:$0xff] %vm762, %v700
    %764 = vst.msk [vmem:[#allocation2 + $0x40] sm:$0xff] %vm762, %v702
    %765 = vst.msk [vmem:[#allocation2 + $0x50] sm:$0xff] %vm762, %v704
    %766 = vst.msk [vmem:[#allocation2 + $0x60] sm:$0xff] %vm762, %v706
    %767 = vst.msk [vmem:[#allocation2 + $0x70] sm:$0xff] %vm762, %v708
    %768 = vst.msk [vmem:[#allocation2 + $0x80] sm:$0xff] %vm762, %v710
    %769 = vst.msk [vmem:[#allocation2 + $0x90] sm:$0xff] %vm762, %v712
    %770 = vst.msk [vmem:[#allocation2 + $0xa0] sm:$0xff] %vm762, %v714
    %771 = vst.msk [vmem:[#allocation2 + $0xb0] sm:$0xff] %vm762, %v716
    %772 = vst.msk [vmem:[#allocation2 + $0xc0] sm:$0xff] %vm762, %v718
    %773 = vst.msk [vmem:[#allocation2 + $0xd0] sm:$0xff] %vm762, %v720
    %774 = vst.msk [vmem:[#allocation2 + $0xe0] sm:$0xff] %vm762, %v722
    %775 = vst.msk [vmem:[#allocation2 + $0xf0] sm:$0xff] %vm762, %v724
    %776 = vst.msk [vmem:[#allocation2 + $0x100] sm:$0xff] %vm762, %v726
    %777 = vst.msk [vmem:[#allocation2 + $0x110] sm:$0xff] %vm762, %v728
    %778 = vst.msk [vmem:[#allocation2 + $0x120] sm:$0xff] %vm762, %v730
    %779 = vst.msk [vmem:[#allocation2 + $0x130] sm:$0xff] %vm762, %v732
    %780 = vst.msk [vmem:[#allocation2 + $0x140] sm:$0xff] %vm762, %v734
    %781 = vst.msk [vmem:[#allocation2 + $0x150] sm:$0xff] %vm762, %v736
    %vm782 = vcmask 518528
    %783 = vst.msk [vmem:[#allocation2 + $0x160] sm:$0x7] %vm782, %v738
    %784 = vrot.lane.b32.xlu0 %v353, 64
    %v785 = vpop.permute.xlu0 %784
    %786 = vrot.lane.b32.xlu0 %v354, 64
    %v787 = vpop.permute.xlu0 %786
    %788 = vrot.lane.b32.xlu0 %v355, 64
    %v789 = vpop.permute.xlu0 %788
    %790 = vrot.lane.b32.xlu0 %v356, 64
    %v791 = vpop.permute.xlu0 %790
    %792 = vrot.lane.b32.xlu0 %v357, 64
    %v793 = vpop.permute.xlu0 %792
    %794 = vrot.lane.b32.xlu0 %v358, 64
    %v795 = vpop.permute.xlu0 %794
    %796 = vrot.lane.b32.xlu0 %v359, 64
    %v797 = vpop.permute.xlu0 %796
    %798 = vrot.lane.b32.xlu0 %v360, 64
    %v799 = vpop.permute.xlu0 %798
    %800 = vrot.lane.b32.xlu0 %v361, 64
    %v801 = vpop.permute.xlu0 %800
    %802 = vrot.lane.b32.xlu0 %v362, 64
    %v803 = vpop.permute.xlu0 %802
    %804 = vrot.lane.b32.xlu0 %v363, 64
    %v805 = vpop.permute.xlu0 %804
    %806 = vrot.lane.b32.xlu0 %v364, 64
    %v807 = vpop.permute.xlu0 %806
    %808 = vrot.lane.b32.xlu0 %v365, 64
    %v809 = vpop.permute.xlu0 %808
    %810 = vrot.lane.b32.xlu0 %v366, 64
    %v811 = vpop.permute.xlu0 %810
    %812 = vrot.lane.b32.xlu0 %v367, 64
    %v813 = vpop.permute.xlu0 %812
    %814 = vrot.lane.b32.xlu0 %v368, 64
    %v815 = vpop.permute.xlu0 %814
    %816 = vrot.lane.b32.xlu0 %v369, 64
    %v817 = vpop.permute.xlu0 %816
    %818 = vrot.lane.b32.xlu0 %v370, 64
    %v819 = vpop.permute.xlu0 %818
    %820 = vrot.lane.b32.xlu0 %v371, 64
    %v821 = vpop.permute.xlu0 %820
    %822 = vrot.lane.b32.xlu0 %v372, 64
    %v823 = vpop.permute.xlu0 %822
    %824 = vrot.lane.b32.xlu0 %v373, 64
    %v825 = vpop.permute.xlu0 %824
    %vm847 = vcmask 654848
    %848 = vst.msk [vmem:[#allocation2 + $0x20] sm:$0xff] %vm847, %v785
    %849 = vst.msk [vmem:[#allocation2 + $0x30] sm:$0xff] %vm847, %v787
    %850 = vst.msk [vmem:[#allocation2 + $0x40] sm:$0xff] %vm847, %v789
    %851 = vst.msk [vmem:[#allocation2 + $0x50] sm:$0xff] %vm847, %v791
    %852 = vst.msk [vmem:[#allocation2 + $0x60] sm:$0xff] %vm847, %v793
    %853 = vst.msk [vmem:[#allocation2 + $0x70] sm:$0xff] %vm847, %v795
    %854 = vst.msk [vmem:[#allocation2 + $0x80] sm:$0xff] %vm847, %v797
    %855 = vst.msk [vmem:[#allocation2 + $0x90] sm:$0xff] %vm847, %v799
    %856 = vst.msk [vmem:[#allocation2 + $0xa0] sm:$0xff] %vm847, %v801
    %857 = vst.msk [vmem:[#allocation2 + $0xb0] sm:$0xff] %vm847, %v803
    %858 = vst.msk [vmem:[#allocation2 + $0xc0] sm:$0xff] %vm847, %v805
    %859 = vst.msk [vmem:[#allocation2 + $0xd0] sm:$0xff] %vm847, %v807
    %860 = vst.msk [vmem:[#allocation2 + $0xe0] sm:$0xff] %vm847, %v809
    %861 = vst.msk [vmem:[#allocation2 + $0xf0] sm:$0xff] %vm847, %v811
    %862 = vst.msk [vmem:[#allocation2 + $0x100] sm:$0xff] %vm847, %v813
    %863 = vst.msk [vmem:[#allocation2 + $0x110] sm:$0xff] %vm847, %v815
    %864 = vst.msk [vmem:[#allocation2 + $0x120] sm:$0xff] %vm847, %v817
    %865 = vst.msk [vmem:[#allocation2 + $0x130] sm:$0xff] %vm847, %v819
    %866 = vst.msk [vmem:[#allocation2 + $0x140] sm:$0xff] %vm847, %v821
    %867 = vst.msk [vmem:[#allocation2 + $0x150] sm:$0xff] %vm847, %v823
    %vm868 = vcmask 648704
    %869 = vst.msk [vmem:[#allocation2 + $0x160] sm:$0x3] %vm868, %v825
    %vm870 = vcmask 1046528
    %v871 = vrot.slane %v353, 1
    %v872 = vrot.slane %v354, 1
    %v873 = vsel %vm870, %v871, %v872
    %v874 = vrot.slane %v355, 1
    %v875 = vsel %vm870, %v872, %v874
    %v876 = vrot.slane %v356, 1
    %v877 = vsel %vm870, %v874, %v876
    %v878 = vrot.slane %v357, 1
    %v879 = vsel %vm870, %v876, %v878
    %v880 = vrot.slane %v358, 1
    %v881 = vsel %vm870, %v878, %v880
    %v882 = vrot.slane %v359, 1
    %v883 = vsel %vm870, %v880, %v882
    %v884 = vrot.slane %v360, 1
    %v885 = vsel %vm870, %v882, %v884
    %v886 = vrot.slane %v361, 1
    %v887 = vsel %vm870, %v884, %v886
    %v888 = vrot.slane %v362, 1
    %v889 = vsel %vm870, %v886, %v888
    %v890 = vrot.slane %v363, 1
    %v891 = vsel %vm870, %v888, %v890
    %v892 = vrot.slane %v364, 1
    %v893 = vsel %vm870, %v890, %v892
    %v894 = vrot.slane %v365, 1
    %v895 = vsel %vm870, %v892, %v894
    %v896 = vrot.slane %v366, 1
    %v897 = vsel %vm870, %v894, %v896
    %v898 = vrot.slane %v367, 1
    %v899 = vsel %vm870, %v896, %v898
    %v900 = vrot.slane %v368, 1
    %v901 = vsel %vm870, %v898, %v900
    %v902 = vrot.slane %v369, 1
    %v903 = vsel %vm870, %v900, %v902
    %v904 = vrot.slane %v370, 1
    %v905 = vsel %vm870, %v902, %v904
    %v906 = vrot.slane %v371, 1
    %v907 = vsel %vm870, %v904, %v906
    %v908 = vrot.slane %v372, 1
    %v909 = vsel %vm870, %v906, %v908
    %v910 = vrot.slane %v373, 1
    %v911 = vsel %vm870, %v908, %v910
    %912 = vrot.lane.b32.xlu0 %v871, 80
    %v913 = vpop.permute.xlu0 %912
    %914 = vrot.lane.b32.xlu0 %v873, 80
    %v915 = vpop.permute.xlu0 %914
    %916 = vrot.lane.b32.xlu0 %v875, 80
    %v917 = vpop.permute.xlu0 %916
    %918 = vrot.lane.b32.xlu0 %v877, 80
    %v919 = vpop.permute.xlu0 %918
    %920 = vrot.lane.b32.xlu0 %v879, 80
    %v921 = vpop.permute.xlu0 %920
    %922 = vrot.lane.b32.xlu0 %v881, 80
    %v923 = vpop.permute.xlu0 %922
    %924 = vrot.lane.b32.xlu0 %v883, 80
    %v925 = vpop.permute.xlu0 %924
    %926 = vrot.lane.b32.xlu0 %v885, 80
    %v927 = vpop.permute.xlu0 %926
    %928 = vrot.lane.b32.xlu0 %v887, 80
    %v929 = vpop.permute.xlu0 %928
    %930 = vrot.lane.b32.xlu0 %v889, 80
    %v931 = vpop.permute.xlu0 %930
    %932 = vrot.lane.b32.xlu0 %v891, 80
    %v933 = vpop.permute.xlu0 %932
    %934 = vrot.lane.b32.xlu0 %v893, 80
    %v935 = vpop.permute.xlu0 %934
    %936 = vrot.lane.b32.xlu0 %v895, 80
    %v937 = vpop.permute.xlu0 %936
    %938 = vrot.lane.b32.xlu0 %v897, 80
    %v939 = vpop.permute.xlu0 %938
    %940 = vrot.lane.b32.xlu0 %v899, 80
    %v941 = vpop.permute.xlu0 %940
    %942 = vrot.lane.b32.xlu0 %v901, 80
    %v943 = vpop.permute.xlu0 %942
    %944 = vrot.lane.b32.xlu0 %v903, 80
    %v945 = vpop.permute.xlu0 %944
    %946 = vrot.lane.b32.xlu0 %v905, 80
    %v947 = vpop.permute.xlu0 %946
    %948 = vrot.lane.b32.xlu0 %v907, 80
    %v949 = vpop.permute.xlu0 %948
    %950 = vrot.lane.b32.xlu0 %v909, 80
    %v951 = vpop.permute.xlu0 %950
    %952 = vrot.lane.b32.xlu0 %v911, 80
    %v953 = vpop.permute.xlu0 %952
    %954 = vrot.lane.b32.xlu0 %v910, 80
    %v955 = vpop.permute.xlu0 %954
    %vm978 = vcmask 786055
    %979 = vst.msk [vmem:[#allocation2 + $0x10] sm:$0x80] %vm978, %v913
    %vm980 = vcmask 786048
    %981 = vst.msk [vmem:[#allocation2 + $0x20] sm:$0xff] %vm980, %v915
    %982 = vst.msk [vmem:[#allocation2 + $0x30] sm:$0xff] %vm980, %v917
    %983 = vst.msk [vmem:[#allocation2 + $0x40] sm:$0xff] %vm980, %v919
    %984 = vst.msk [vmem:[#allocation2 + $0x50] sm:$0xff] %vm980, %v921
    %985 = vst.msk [vmem:[#allocation2 + $0x60] sm:$0xff] %vm980, %v923
    %986 = vst.msk [vmem:[#allocation2 + $0x70] sm:$0xff] %vm980, %v925
    %987 = vst.msk [vmem:[#allocation2 + $0x80] sm:$0xff] %vm980, %v927
    %988 = vst.msk [vmem:[#allocation2 + $0x90] sm:$0xff] %vm980, %v929
    %989 = vst.msk [vmem:[#allocation2 + $0xa0] sm:$0xff] %vm980, %v931
    %990 = vst.msk [vmem:[#allocation2 + $0xb0] sm:$0xff] %vm980, %v933
    %991 = vst.msk [vmem:[#allocation2 + $0xc0] sm:$0xff] %vm980, %v935
    %992 = vst.msk [vmem:[#allocation2 + $0xd0] sm:$0xff] %vm980, %v937
    %993 = vst.msk [vmem:[#allocation2 + $0xe0] sm:$0xff] %vm980, %v939
    %994 = vst.msk [vmem:[#allocation2 + $0xf0] sm:$0xff] %vm980, %v941
    %995 = vst.msk [vmem:[#allocation2 + $0x100] sm:$0xff] %vm980, %v943
    %996 = vst.msk [vmem:[#allocation2 + $0x110] sm:$0xff] %vm980, %v945
    %997 = vst.msk [vmem:[#allocation2 + $0x120] sm:$0xff] %vm980, %v947
    %998 = vst.msk [vmem:[#allocation2 + $0x130] sm:$0xff] %vm980, %v949
    %999 = vst.msk [vmem:[#allocation2 + $0x140] sm:$0xff] %vm980, %v951
    %1000 = vst.msk [vmem:[#allocation2 + $0x150] sm:$0xff] %vm980, %v953
    %vm1001 = vcmask 778880
    %1002 = vst.msk [vmem:[#allocation2 + $0x160] sm:$0x1] %vm1001, %v955
    %1003 = vrot.lane.b32.xlu0 %v353, 96
    %v1004 = vpop.permute.xlu0 %1003
    %1005 = vrot.lane.b32.xlu0 %v354, 96
    %v1006 = vpop.permute.xlu0 %1005
    %1007 = vrot.lane.b32.xlu0 %v355, 96
    %v1008 = vpop.permute.xlu0 %1007
    %1009 = vrot.lane.b32.xlu0 %v356, 96
    %v1010 = vpop.permute.xlu0 %1009
    %1011 = vrot.lane.b32.xlu0 %v357, 96
    %v1012 = vpop.permute.xlu0 %1011
    %1013 = vrot.lane.b32.xlu0 %v358, 96
    %v1014 = vpop.permute.xlu0 %1013
    %1015 = vrot.lane.b32.xlu0 %v359, 96
    %v1016 = vpop.permute.xlu0 %1015
    %1017 = vrot.lane.b32.xlu0 %v360, 96
    %v1018 = vpop.permute.xlu0 %1017
    %1019 = vrot.lane.b32.xlu0 %v361, 96
    %v1020 = vpop.permute.xlu0 %1019
    %1021 = vrot.lane.b32.xlu0 %v362, 96
    %v1022 = vpop.permute.xlu0 %1021
    %1023 = vrot.lane.b32.xlu0 %v363, 96
    %v1024 = vpop.permute.xlu0 %1023
    %1025 = vrot.lane.b32.xlu0 %v364, 96
    %v1026 = vpop.permute.xlu0 %1025
    %1027 = vrot.lane.b32.xlu0 %v365, 96
    %v1028 = vpop.permute.xlu0 %1027
    %1029 = vrot.lane.b32.xlu0 %v366, 96
    %v1030 = vpop.permute.xlu0 %1029
    %1031 = vrot.lane.b32.xlu0 %v367, 96
    %v1032 = vpop.permute.xlu0 %1031
    %1033 = vrot.lane.b32.xlu0 %v368, 96
    %v1034 = vpop.permute.xlu0 %1033
    %1035 = vrot.lane.b32.xlu0 %v369, 96
    %v1036 = vpop.permute.xlu0 %1035
    %1037 = vrot.lane.b32.xlu0 %v370, 96
    %v1038 = vpop.permute.xlu0 %1037
    %1039 = vrot.lane.b32.xlu0 %v371, 96
    %v1040 = vpop.permute.xlu0 %1039
    %1041 = vrot.lane.b32.xlu0 %v372, 96
    %v1042 = vpop.permute.xlu0 %1041
    %1043 = vrot.lane.b32.xlu0 %v373, 96
    %v1044 = vpop.permute.xlu0 %1043
    %vm1066 = vcmask 917248
    %1067 = vst.msk [vmem:[#allocation2 + $0x10] sm:$0xff] %vm1066, %v1004
    %1068 = vst.msk [vmem:[#allocation2 + $0x20] sm:$0xff] %vm1066, %v1006
    %1069 = vst.msk [vmem:[#allocation2 + $0x30] sm:$0xff] %vm1066, %v1008
    %1070 = vst.msk [vmem:[#allocation2 + $0x40] sm:$0xff] %vm1066, %v1010
    %1071 = vst.msk [vmem:[#allocation2 + $0x50] sm:$0xff] %vm1066, %v1012
    %1072 = vst.msk [vmem:[#allocation2 + $0x60] sm:$0xff] %vm1066, %v1014
    %1073 = vst.msk [vmem:[#allocation2 + $0x70] sm:$0xff] %vm1066, %v1016
    %1074 = vst.msk [vmem:[#allocation2 + $0x80] sm:$0xff] %vm1066, %v1018
    %1075 = vst.msk [vmem:[#allocation2 + $0x90] sm:$0xff] %vm1066, %v1020
    %1076 = vst.msk [vmem:[#allocation2 + $0xa0] sm:$0xff] %vm1066, %v1022
    %1077 = vst.msk [vmem:[#allocation2 + $0xb0] sm:$0xff] %vm1066, %v1024
    %1078 = vst.msk [vmem:[#allocation2 + $0xc0] sm:$0xff] %vm1066, %v1026
    %1079 = vst.msk [vmem:[#allocation2 + $0xd0] sm:$0xff] %vm1066, %v1028
    %1080 = vst.msk [vmem:[#allocation2 + $0xe0] sm:$0xff] %vm1066, %v1030
    %1081 = vst.msk [vmem:[#allocation2 + $0xf0] sm:$0xff] %vm1066, %v1032
    %1082 = vst.msk [vmem:[#allocation2 + $0x100] sm:$0xff] %vm1066, %v1034
    %1083 = vst.msk [vmem:[#allocation2 + $0x110] sm:$0xff] %vm1066, %v1036
    %1084 = vst.msk [vmem:[#allocation2 + $0x120] sm:$0xff] %vm1066, %v1038
    %1085 = vst.msk [vmem:[#allocation2 + $0x130] sm:$0xff] %vm1066, %v1040
    %1086 = vst.msk [vmem:[#allocation2 + $0x140] sm:$0xff] %vm1066, %v1042
    %vm1087 = vcmask 911104
    %1088 = vst.msk [vmem:[#allocation2 + $0x150] sm:$0x3] %vm1087, %v1044
    %1089 = vrot.lane.b32.xlu0 %v871, 112
    %v1090 = vpop.permute.xlu0 %1089
    %1091 = vrot.lane.b32.xlu0 %v873, 112
    %v1092 = vpop.permute.xlu0 %1091
    %1093 = vrot.lane.b32.xlu0 %v875, 112
    %v1094 = vpop.permute.xlu0 %1093
    %1095 = vrot.lane.b32.xlu0 %v877, 112
    %v1096 = vpop.permute.xlu0 %1095
    %1097 = vrot.lane.b32.xlu0 %v879, 112
    %v1098 = vpop.permute.xlu0 %1097
    %1099 = vrot.lane.b32.xlu0 %v881, 112
    %v1100 = vpop.permute.xlu0 %1099
    %1101 = vrot.lane.b32.xlu0 %v883, 112
    %v1102 = vpop.permute.xlu0 %1101
    %1103 = vrot.lane.b32.xlu0 %v885, 112
    %v1104 = vpop.permute.xlu0 %1103
    %1105 = vrot.lane.b32.xlu0 %v887, 112
    %v1106 = vpop.permute.xlu0 %1105
    %1107 = vrot.lane.b32.xlu0 %v889, 112
    %v1108 = vpop.permute.xlu0 %1107
    %1109 = vrot.lane.b32.xlu0 %v891, 112
    %v1110 = vpop.permute.xlu0 %1109
    %1111 = vrot.lane.b32.xlu0 %v893, 112
    %v1112 = vpop.permute.xlu0 %1111
    %1113 = vrot.lane.b32.xlu0 %v895, 112
    %v1114 = vpop.permute.xlu0 %1113
    %1115 = vrot.lane.b32.xlu0 %v897, 112
    %v1116 = vpop.permute.xlu0 %1115
    %1117 = vrot.lane.b32.xlu0 %v899, 112
    %v1118 = vpop.permute.xlu0 %1117
    %1119 = vrot.lane.b32.xlu0 %v901, 112
    %v1120 = vpop.permute.xlu0 %1119
    %1121 = vrot.lane.b32.xlu0 %v903, 112
    %v1122 = vpop.permute.xlu0 %1121
    %1123 = vrot.lane.b32.xlu0 %v905, 112
    %v1124 = vpop.permute.xlu0 %1123
    %1125 = vrot.lane.b32.xlu0 %v907, 112
    %v1126 = vpop.permute.xlu0 %1125
    %1127 = vrot.lane.b32.xlu0 %v909, 112
    %v1128 = vpop.permute.xlu0 %1127
    %1129 = vrot.lane.b32.xlu0 %v911, 112
    %v1130 = vpop.permute.xlu0 %1129
    %1131 = vrot.lane.b32.xlu0 %v910, 112
    %v1132 = vpop.permute.xlu0 %1131
    %vm1155 = vcmask 1048455
    %1156 = vst.msk [vmem:[#allocation2] sm:$0x80] %vm1155, %v1090
    %vm1157 = vcmask 1048448
    %1158 = vst.msk [vmem:[#allocation2 + $0x10] sm:$0xff] %vm1157, %v1092
    %1159 = vst.msk [vmem:[#allocation2 + $0x20] sm:$0xff] %vm1157, %v1094
    %1160 = vst.msk [vmem:[#allocation2 + $0x30] sm:$0xff] %vm1157, %v1096
    %1161 = vst.msk [vmem:[#allocation2 + $0x40] sm:$0xff] %vm1157, %v1098
    %1162 = vst.msk [vmem:[#allocation2 + $0x50] sm:$0xff] %vm1157, %v1100
    %1163 = vst.msk [vmem:[#allocation2 + $0x60] sm:$0xff] %vm1157, %v1102
    %1164 = vst.msk [vmem:[#allocation2 + $0x70] sm:$0xff] %vm1157, %v1104
    %1165 = vst.msk [vmem:[#allocation2 + $0x80] sm:$0xff] %vm1157, %v1106
    %1166 = vst.msk [vmem:[#allocation2 + $0x90] sm:$0xff] %vm1157, %v1108
    %1167 = vst.msk [vmem:[#allocation2 + $0xa0] sm:$0xff] %vm1157, %v1110
    %1168 = vst.msk [vmem:[#allocation2 + $0xb0] sm:$0xff] %vm1157, %v1112
    %1169 = vst.msk [vmem:[#allocation2 + $0xc0] sm:$0xff] %vm1157, %v1114
    %1170 = vst.msk [vmem:[#allocation2 + $0xd0] sm:$0xff] %vm1157, %v1116
    %1171 = vst.msk [vmem:[#allocation2 + $0xe0] sm:$0xff] %vm1157, %v1118
    %1172 = vst.msk [vmem:[#allocation2 + $0xf0] sm:$0xff] %vm1157, %v1120
    %1173 = vst.msk [vmem:[#allocation2 + $0x100] sm:$0xff] %vm1157, %v1122
    %1174 = vst.msk [vmem:[#allocation2 + $0x110] sm:$0xff] %vm1157, %v1124
    %1175 = vst.msk [vmem:[#allocation2 + $0x120] sm:$0xff] %vm1157, %v1126
    %1176 = vst.msk [vmem:[#allocation2 + $0x130] sm:$0xff] %vm1157, %v1128
    %1177 = vst.msk [vmem:[#allocation2 + $0x140] sm:$0xff] %vm1157, %v1130
    %vm1178 = vcmask 1041280
    %1179 = vst.msk [vmem:[#allocation2 + $0x150] sm:$0x1] %vm1178, %v1132
    %vm1180 = vcmask 1045504
    %v1181 = vrot.slane %v353, 2
    %v1182 = vrot.slane %v354, 2
    %v1183 = vsel %vm1180, %v1181, %v1182
    %v1184 = vrot.slane %v355, 2
    %v1185 = vsel %vm1180, %v1182, %v1184
    %v1186 = vrot.slane %v356, 2
    %v1187 = vsel %vm1180, %v1184, %v1186
    %v1188 = vrot.slane %v357, 2
    %v1189 = vsel %vm1180, %v1186, %v1188
    %v1190 = vrot.slane %v358, 2
    %v1191 = vsel %vm1180, %v1188, %v1190
    %v1192 = vrot.slane %v359, 2
    %v1193 = vsel %vm1180, %v1190, %v1192
    %v1194 = vrot.slane %v360, 2
    %v1195 = vsel %vm1180, %v1192, %v1194
    %v1196 = vrot.slane %v361, 2
    %v1197 = vsel %vm1180, %v1194, %v1196
    %v1198 = vrot.slane %v362, 2
    %v1199 = vsel %vm1180, %v1196, %v1198
    %v1200 = vrot.slane %v363, 2
    %v1201 = vsel %vm1180, %v1198, %v1200
    %v1202 = vrot.slane %v364, 2
    %v1203 = vsel %vm1180, %v1200, %v1202
    %v1204 = vrot.slane %v365, 2
    %v1205 = vsel %vm1180, %v1202, %v1204
    %v1206 = vrot.slane %v366, 2
    %v1207 = vsel %vm1180, %v1204, %v1206
    %v1208 = vrot.slane %v367, 2
    %v1209 = vsel %vm1180, %v1206, %v1208
    %v1210 = vrot.slane %v368, 2
    %v1211 = vsel %vm1180, %v1208, %v1210
    %v1212 = vrot.slane %v369, 2
    %v1213 = vsel %vm1180, %v1210, %v1212
    %v1214 = vrot.slane %v370, 2
    %v1215 = vsel %vm1180, %v1212, %v1214
    %v1216 = vrot.slane %v371, 2
    %v1217 = vsel %vm1180, %v1214, %v1216
    %v1218 = vrot.slane %v372, 2
    %v1219 = vsel %vm1180, %v1216, %v1218
    %v1220 = vrot.slane %v373, 2
    %v1221 = vsel %vm1180, %v1218, %v1220
    %vm1243 = vcmask 130054
    %1244 = vst.msk [vmem:[#allocation2 + $0x8] sm:$0xc0] %vm1243, %v1181
    %1245 = vst.msk [vmem:[#allocation2 + $0x18] sm:$0xff] %vm460, %v1183
    %1246 = vst.msk [vmem:[#allocation2 + $0x28] sm:$0xff] %vm460, %v1185
    %1247 = vst.msk [vmem:[#allocation2 + $0x38] sm:$0xff] %vm460, %v1187
    %1248 = vst.msk [vmem:[#allocation2 + $0x48] sm:$0xff] %vm460, %v1189
    %1249 = vst.msk [vmem:[#allocation2 + $0x58] sm:$0xff] %vm460, %v1191
    %1250 = vst.msk [vmem:[#allocation2 + $0x68] sm:$0xff] %vm460, %v1193
    %1251 = vst.msk [vmem:[#allocation2 + $0x78] sm:$0xff] %vm460, %v1195
    %1252 = vst.msk [vmem:[#allocation2 + $0x88] sm:$0xff] %vm460, %v1197
    %1253 = vst.msk [vmem:[#allocation2 + $0x98] sm:$0xff] %vm460, %v1199
    %1254 = vst.msk [vmem:[#allocation2 + $0xa8] sm:$0xff] %vm460, %v1201
    %1255 = vst.msk [vmem:[#allocation2 + $0xb8] sm:$0xff] %vm460, %v1203
    %1256 = vst.msk [vmem:[#allocation2 + $0xc8] sm:$0xff] %vm460, %v1205
    %1257 = vst.msk [vmem:[#allocation2 + $0xd8] sm:$0xff] %vm460, %v1207
    %1258 = vst.msk [vmem:[#allocation2 + $0xe8] sm:$0xff] %vm460, %v1209
    %1259 = vst.msk [vmem:[#allocation2 + $0xf8] sm:$0xff] %vm460, %v1211
    %1260 = vst.msk [vmem:[#allocation2 + $0x108] sm:$0xff] %vm460, %v1213
    %1261 = vst.msk [vmem:[#allocation2 + $0x118] sm:$0xff] %vm460, %v1215
    %1262 = vst.msk [vmem:[#allocation2 + $0x128] sm:$0xff] %vm460, %v1217
    %1263 = vst.msk [vmem:[#allocation2 + $0x138] sm:$0xff] %vm460, %v1219
    %1264 = vst.msk [vmem:[#allocation2 + $0x148] sm:$0xff] %vm460, %v1221
    %v1265 = vld [vmem:[#allocation2 + $0x20] sm:$0xff]
    %v1266 = vld [vmem:[#allocation2 + $0x28] sm:$0xff]
    %v1267 = vld [vmem:[#allocation2 + $0x30] sm:$0xff]
    %v1268 = vld [vmem:[#allocation2 + $0x38] sm:$0xff]
    %v1269 = vld [vmem:[#allocation2 + $0x40] sm:$0xff]
    %v1270 = vld [vmem:[#allocation2 + $0x48] sm:$0xff]
    %v1271 = vld [vmem:[#allocation2 + $0x50] sm:$0xff]
    %v1272 = vld [vmem:[#allocation2 + $0x58] sm:$0xff]
    %v1273 = vld [vmem:[#allocation2 + $0x60] sm:$0xff]
    %v1274 = vld [vmem:[#allocation2 + $0x68] sm:$0xff]
    %v1275 = vld [vmem:[#allocation2 + $0x70] sm:$0xff]
    %v1276 = vld [vmem:[#allocation2 + $0x78] sm:$0xff]
    %v1277 = vld [vmem:[#allocation2 + $0x80] sm:$0xff]
    %v1278 = vld [vmem:[#allocation2 + $0x88] sm:$0xff]
    %v1279 = vld [vmem:[#allocation2 + $0x90] sm:$0xff]
    %v1280 = vld [vmem:[#allocation2 + $0x98] sm:$0xff]
    %v1281 = vld [vmem:[#allocation2 + $0xa0] sm:$0xff]
    %v1282 = vld [vmem:[#allocation2 + $0xa8] sm:$0xff]
    %v1283 = vld [vmem:[#allocation2 + $0xb0] sm:$0xff]
    %v1284 = vld [vmem:[#allocation2 + $0xb8] sm:$0xff]
    %v1285 = vld [vmem:[#allocation2 + $0xc0] sm:$0xff]
    %v1286 = vld [vmem:[#allocation2 + $0xc8] sm:$0xff]
    %v1287 = vld [vmem:[#allocation2 + $0xd0] sm:$0xff]
    %v1288 = vld [vmem:[#allocation2 + $0xd8] sm:$0xff]
    %v1289 = vld [vmem:[#allocation2 + $0xe0] sm:$0xff]
    %v1290 = vld [vmem:[#allocation2 + $0xe8] sm:$0xff]
    %v1291 = vld [vmem:[#allocation2 + $0xf0] sm:$0xff]
    %v1292 = vld [vmem:[#allocation2 + $0xf8] sm:$0xff]
    %v1293 = vld [vmem:[#allocation2 + $0x100] sm:$0xff]
    %v1294 = vld [vmem:[#allocation2 + $0x108] sm:$0xff]
    %v1295 = vld [vmem:[#allocation2 + $0x110] sm:$0xff]
    %v1296 = vld [vmem:[#allocation2 + $0x118] sm:$0xff]
    %v1297 = vld [vmem:[#allocation2 + $0x120] sm:$0xff]
    %v1298 = vld [vmem:[#allocation2 + $0x128] sm:$0xff]
    %v1299 = vld [vmem:[#allocation2 + $0x130] sm:$0xff]
    %v1300 = vld [vmem:[#allocation2 + $0x138] sm:$0xff]
    %v1301 = vld [vmem:[#allocation2 + $0x140] sm:$0xff]
    %v1302 = vld [vmem:[#allocation2 + $0x148] sm:$0xff]
    %v1303 = vld [vmem:[#allocation2 + $0x150] sm:$0xff]
    %v1304 = vld [vmem:[#allocation2 + $0x158] sm:$0xff]
    %v1305 = vld [vmem:[#allocation2 + $0x160] sm:$0x3]
    %v1306 = vld [vmem:[#allocation2 + $0x168] sm:$0x3]
    %v1307 = vld [vmem:[%s1] sm:$0xff]
    %v1308 = vld [vmem:[%s1 + $0x8] sm:$0xff]
    %v1309 = vld [vmem:[%s1 + $0x10] sm:$0xff]
    %v1310 = vld [vmem:[%s1 + $0x18] sm:$0xff]
    %v1311 = vld [vmem:[%s1 + $0x20] sm:$0xff]
    %v1312 = vld [vmem:[%s1 + $0x28] sm:$0xff]
    %v1313 = vld [vmem:[%s1 + $0x30] sm:$0xff]
    %v1314 = vld [vmem:[%s1 + $0x38] sm:$0xff]
    %v1315 = vld [vmem:[%s1 + $0x40] sm:$0xff]
    %v1316 = vld [vmem:[%s1 + $0x48] sm:$0xff]
    %v1317 = vld [vmem:[%s1 + $0x50] sm:$0xff]
    %v1318 = vld [vmem:[%s1 + $0x58] sm:$0xff]
    %v1319 = vld [vmem:[%s1 + $0x60] sm:$0xff]
    %v1320 = vld [vmem:[%s1 + $0x68] sm:$0xff]
    %v1321 = vld [vmem:[%s1 + $0x70] sm:$0xff]
    %v1322 = vld [vmem:[%s1 + $0x78] sm:$0xff]
    %v1323 = vld [vmem:[%s1 + $0x80] sm:$0xff]
    %v1324 = vld [vmem:[%s1 + $0x88] sm:$0xff]
    %v1325 = vld [vmem:[%s1 + $0x90] sm:$0xff]
    %v1326 = vld [vmem:[%s1 + $0x98] sm:$0xff]
    %v1327 = vld [vmem:[%s1 + $0xa0] sm:$0xff]
    %v1328 = vld [vmem:[%s1 + $0xa8] sm:$0xff]
    %v1329 = vld [vmem:[%s1 + $0xb0] sm:$0xff]
    %v1330 = vld [vmem:[%s1 + $0xb8] sm:$0xff]
    %v1331 = vld [vmem:[%s1 + $0xc0] sm:$0xff]
    %v1332 = vld [vmem:[%s1 + $0xc8] sm:$0xff]
    %v1333 = vld [vmem:[%s1 + $0xd0] sm:$0xff]
    %v1334 = vld [vmem:[%s1 + $0xd8] sm:$0xff]
    %v1335 = vld [vmem:[%s1 + $0xe0] sm:$0xff]
    %v1336 = vld [vmem:[%s1 + $0xe8] sm:$0xff]
    %v1337 = vld [vmem:[%s1 + $0xf0] sm:$0xff]
    %v1338 = vld [vmem:[%s1 + $0xf8] sm:$0xff]
    %v1339 = vld [vmem:[%s1 + $0x100] sm:$0xff]
    %v1340 = vld [vmem:[%s1 + $0x108] sm:$0xff]
    %v1341 = vld [vmem:[%s1 + $0x110] sm:$0xff]
    %v1342 = vld [vmem:[%s1 + $0x118] sm:$0xff]
    %v1343 = vld [vmem:[%s1 + $0x120] sm:$0xff]
    %v1344 = vld [vmem:[%s1 + $0x128] sm:$0xff]
    %v1345 = vld [vmem:[%s1 + $0x130] sm:$0xff]
    %v1346 = vld [vmem:[%s1 + $0x138] sm:$0xff]
    %v1347 = vld [vmem:[%s1 + $0x140] sm:$0x3]
    %v1348 = vld [vmem:[%s1 + $0x148] sm:$0x3]
    %vm1349 = vcmp.ne.f32.partialorder %v1307, 0.0
    %vm1350 = vcmp.ne.f32.partialorder %v1308, 0.0
    %vm1351 = vcmp.ne.f32.partialorder %v1309, 0.0
    %vm1352 = vcmp.ne.f32.partialorder %v1310, 0.0
    %vm1353 = vcmp.ne.f32.partialorder %v1311, 0.0
    %vm1354 = vcmp.ne.f32.partialorder %v1312, 0.0
    %vm1355 = vcmp.ne.f32.partialorder %v1313, 0.0
    %vm1356 = vcmp.ne.f32.partialorder %v1314, 0.0
    %vm1357 = vcmp.ne.f32.partialorder %v1315, 0.0
    %vm1358 = vcmp.ne.f32.partialorder %v1316, 0.0
    %vm1359 = vcmp.ne.f32.partialorder %v1317, 0.0
    %vm1360 = vcmp.ne.f32.partialorder %v1318, 0.0
    %vm1361 = vcmp.ne.f32.partialorder %v1319, 0.0
    %vm1362 = vcmp.ne.f32.partialorder %v1320, 0.0
    %vm1363 = vcmp.ne.f32.partialorder %v1321, 0.0
    %vm1364 = vcmp.ne.f32.partialorder %v1322, 0.0
    %vm1365 = vcmp.ne.f32.partialorder %v1323, 0.0
    %vm1366 = vcmp.ne.f32.partialorder %v1324, 0.0
    %vm1367 = vcmp.ne.f32.partialorder %v1325, 0.0
    %vm1368 = vcmp.ne.f32.partialorder %v1326, 0.0
    %vm1369 = vcmp.ne.f32.partialorder %v1327, 0.0
    %vm1370 = vcmp.ne.f32.partialorder %v1328, 0.0
    %vm1371 = vcmp.ne.f32.partialorder %v1329, 0.0
    %vm1372 = vcmp.ne.f32.partialorder %v1330, 0.0
    %vm1373 = vcmp.ne.f32.partialorder %v1331, 0.0
    %vm1374 = vcmp.ne.f32.partialorder %v1332, 0.0
    %vm1375 = vcmp.ne.f32.partialorder %v1333, 0.0
    %vm1376 = vcmp.ne.f32.partialorder %v1334, 0.0
    %vm1377 = vcmp.ne.f32.partialorder %v1335, 0.0
    %vm1378 = vcmp.ne.f32.partialorder %v1336, 0.0
    %vm1379 = vcmp.ne.f32.partialorder %v1337, 0.0
    %vm1380 = vcmp.ne.f32.partialorder %v1338, 0.0
    %vm1381 = vcmp.ne.f32.partialorder %v1339, 0.0
    %vm1382 = vcmp.ne.f32.partialorder %v1340, 0.0
    %vm1383 = vcmp.ne.f32.partialorder %v1341, 0.0
    %vm1384 = vcmp.ne.f32.partialorder %v1342, 0.0
    %vm1385 = vcmp.ne.f32.partialorder %v1343, 0.0
    %vm1386 = vcmp.ne.f32.partialorder %v1344, 0.0
    %vm1387 = vcmp.ne.f32.partialorder %v1345, 0.0
    %vm1388 = vcmp.ne.f32.partialorder %v1346, 0.0
    %vm1389 = vcmp.ne.f32.partialorder %v1347, 0.0
    %vm1390 = vcmp.ne.f32.partialorder %v1348, 0.0
    %v1391 = vsel %vm1349, %v1265, 0.0
    %v1392 = vsel %vm1350, %v1266, 0.0
    %v1393 = vsel %vm1351, %v1267, 0.0
    %v1394 = vsel %vm1352, %v1268, 0.0
    %v1395 = vsel %vm1353, %v1269, 0.0
    %v1396 = vsel %vm1354, %v1270, 0.0
    %v1397 = vsel %vm1355, %v1271, 0.0
    %v1398 = vsel %vm1356, %v1272, 0.0
    %v1399 = vsel %vm1357, %v1273, 0.0
    %v1400 = vsel %vm1358, %v1274, 0.0
    %v1401 = vsel %vm1359, %v1275, 0.0
    %v1402 = vsel %vm1360, %v1276, 0.0
    %v1403 = vsel %vm1361, %v1277, 0.0
    %v1404 = vsel %vm1362, %v1278, 0.0
    %v1405 = vsel %vm1363, %v1279, 0.0
    %v1406 = vsel %vm1364, %v1280, 0.0
    %v1407 = vsel %vm1365, %v1281, 0.0
    %v1408 = vsel %vm1366, %v1282, 0.0
    %v1409 = vsel %vm1367, %v1283, 0.0
    %v1410 = vsel %vm1368, %v1284, 0.0
    %v1411 = vsel %vm1369, %v1285, 0.0
    %v1412 = vsel %vm1370, %v1286, 0.0
    %v1413 = vsel %vm1371, %v1287, 0.0
    %v1414 = vsel %vm1372, %v1288, 0.0
    %v1415 = vsel %vm1373, %v1289, 0.0
    %v1416 = vsel %vm1374, %v1290, 0.0
    %v1417 = vsel %vm1375, %v1291, 0.0
    %v1418 = vsel %vm1376, %v1292, 0.0
    %v1419 = vsel %vm1377, %v1293, 0.0
    %v1420 = vsel %vm1378, %v1294, 0.0
    %v1421 = vsel %vm1379, %v1295, 0.0
    %v1422 = vsel %vm1380, %v1296, 0.0
    %v1423 = vsel %vm1381, %v1297, 0.0
    %v1424 = vsel %vm1382, %v1298, 0.0
    %v1425 = vsel %vm1383, %v1299, 0.0
    %v1426 = vsel %vm1384, %v1300, 0.0
    %v1427 = vsel %vm1385, %v1301, 0.0
    %v1428 = vsel %vm1386, %v1302, 0.0
    %v1429 = vsel %vm1387, %v1303, 0.0
    %v1430 = vsel %vm1388, %v1304, 0.0
    %v1431 = vsel %vm1389, %v1305, 0.0
    %v1432 = vsel %vm1390, %v1306, 0.0
    %v1433 = vld [vmem:[%s9] sm:$0xff]
    %v1434 = vld [vmem:[%s9 + $0x8] sm:$0xff]
    %v1435 = vld [vmem:[%s9 + $0x10] sm:$0xff]
    %v1436 = vld [vmem:[%s9 + $0x18] sm:$0xff]
    %v1437 = vld [vmem:[%s9 + $0x20] sm:$0xff]
    %v1438 = vld [vmem:[%s9 + $0x28] sm:$0xff]
    %v1439 = vld [vmem:[%s9 + $0x30] sm:$0xff]
    %v1440 = vld [vmem:[%s9 + $0x38] sm:$0xff]
    %v1441 = vld [vmem:[%s9 + $0x40] sm:$0xff]
    %v1442 = vld [vmem:[%s9 + $0x48] sm:$0xff]
    %v1443 = vld [vmem:[%s9 + $0x50] sm:$0xff]
    %v1444 = vld [vmem:[%s9 + $0x58] sm:$0xff]
    %v1445 = vld [vmem:[%s9 + $0x60] sm:$0xff]
    %v1446 = vld [vmem:[%s9 + $0x68] sm:$0xff]
    %v1447 = vld [vmem:[%s9 + $0x70] sm:$0xff]
    %v1448 = vld [vmem:[%s9 + $0x78] sm:$0xff]
    %v1449 = vld [vmem:[%s9 + $0x80] sm:$0xff]
    %v1450 = vld [vmem:[%s9 + $0x88] sm:$0xff]
    %v1452 = vsel %vm460, %v1392, 0
    %v1455 = vsel %vm460, %v1394, 0
    %v1458 = vsel %vm460, %v1396, 0
    %v1461 = vsel %vm460, %v1398, 0
    %v1464 = vsel %vm460, %v1400, 0
    %v1467 = vsel %vm460, %v1402, 0
    %v1470 = vsel %vm460, %v1404, 0
    %v1473 = vsel %vm460, %v1406, 0
    %v1476 = vsel %vm460, %v1408, 0
    %v1479 = vsel %vm460, %v1410, 0
    %v1482 = vsel %vm460, %v1412, 0
    %v1485 = vsel %vm460, %v1414, 0
    %v1488 = vsel %vm460, %v1416, 0
    %v1491 = vsel %vm460, %v1418, 0
    %v1494 = vsel %vm460, %v1420, 0
    %v1497 = vsel %vm460, %v1422, 0
    %v1500 = vsel %vm460, %v1424, 0
    %v1503 = vsel %vm460, %v1426, 0
    %v1506 = vsel %vm460, %v1428, 0
    %v1509 = vsel %vm460, %v1430, 0
    %v1512 = vsel %vm460, %v1432, 0
    %1514 = vmatprep.subr.mxu0 0.0
    %1515 = vmatpush1.msra.mxu0 %v1448
    %1516 = vmatprep.subr.mxu0 0.0
    %1517 = vmatpush1.msra.mxu0 %v1447
    %1518 = vmatprep.subr.mxu0 0.0
    %1519 = vmatpush1.msra.mxu0 %v1446
    %1520 = vmatprep.subr.mxu0 0.0
    %1521 = vmatpush1.msra.mxu0 %v1445
    %1522 = vmatprep.subr.mxu0 0.0
    %1523 = vmatpush1.msra.mxu0 %v1444
    %1524 = vmatprep.subr.mxu0 0.0
    %1525 = vmatpush1.msra.mxu0 %v1443
    %1526 = vmatprep.subr.mxu0 0.0
    %1527 = vmatpush1.msra.mxu0 %v1442
    %1528 = vmatprep.subr.mxu0 0.0
    %1529 = vmatpush1.msra.mxu0 %v1441
    %1530 = vmatprep.subr.mxu0 0.0
    %1531 = vmatpush1.msra.mxu0 %v1440
    %1532 = vmatprep.subr.mxu0 0.0
    %1533 = vmatpush1.msra.mxu0 %v1439
    %1534 = vmatprep.subr.mxu0 0.0
    %1535 = vmatpush1.msra.mxu0 %v1438
    %1536 = vmatprep.subr.mxu0 0.0
    %1537 = vmatpush1.msra.mxu0 %v1437
    %1538 = vmatprep.subr.mxu0 0.0
    %1539 = vmatpush1.msra.mxu0 %v1436
    %1540 = vmatprep.subr.mxu0 0.0
    %1541 = vmatpush1.msra.mxu0 %v1435
    %1542 = vmatprep.subr.mxu0 0.0
    %1543 = vmatpush1.msra.mxu0 %v1434
    %1544 = vmatprep.subr.mxu0 0.0
    %1545 = vmatpush1.msra.mxu0 %v1433
    %1546 = vmatprep.subr.mxu0 0.0
    %1547 = vmatpush2.msra.mxu0 0.0
    %1548 = vmatprep.subr.mxu0 0.0
    %1549 = vmatpush2.msra.mxu0 0.0
    %1550 = vmatprep.subr.mxu0 0.0
    %1551 = vmatpush2.msra.mxu0 0.0
    %1552 = vmatprep.subr.mxu0 0.0
    %1553 = vmatpush2.msra.mxu0 0.0
    %1554 = vmatprep.subr.mxu0 0.0
    %1555 = vmatpush2.msra.mxu0 0.0
    %1556 = vmatprep.subr.mxu0 0.0
    %1557 = vmatpush2.msra.mxu0 0.0
    %1558 = vmatprep.subr.mxu0 0.0
    %1559 = vmatpush2.msra.mxu0 0.0
    %1560 = vmatprep.subr.mxu0 0.0
    %1561 = vmatpush2.msra.mxu0 0.0
    %1562 = vmatprep.subr.mxu0 0.0
    %1563 = vmatpush2.msra.mxu0 0.0
    %1564 = vmatprep.subr.mxu0 0.0
    %1565 = vmatpush2.msra.mxu0 0.0
    %1566 = vmatprep.subr.mxu0 0.0
    %1567 = vmatpush2.msra.mxu0 0.0
    %1568 = vmatprep.subr.mxu0 0.0
    %1569 = vmatpush2.msra.mxu0 0.0
    %1570 = vmatprep.subr.mxu0 0.0
    %1571 = vmatpush2.msra.mxu0 0.0
    %1572 = vmatprep.subr.mxu0 0.0
    %1573 = vmatpush2.msra.mxu0 0.0
    %1574 = vmatprep.subr.mxu0 0.0
    %1575 = vmatpush2.msra.mxu0 %v1450
    %1576 = vmatprep.subr.mxu0 0.0
    %1577 = vmatpush2.msra.mxu0 %v1449
    %1578 = vmatprep.mubr.f32.mxu0 %v1452
    %1579 = vmatmul.mubr.f32.gmra.mxu0 %v1391
    %v1580 = vpop.f32.mrf.mxu0
    %v1581 = vadd.f32 0.0, %v1580
    %v1582 = vpop.f32.mrf.mxu0
    %1583 = vmatprep.mubr.f32.mxu0 %v1455
    %1584 = vmatmul.mubr.f32.gmra.mxu0 %v1393
    %v1585 = vpop.f32.mrf.mxu0
    %v1586 = vadd.f32 0.0, %v1585
    %v1587 = vpop.f32.mrf.mxu0
    %1588 = vmatprep.mubr.f32.mxu0 %v1458
    %1589 = vmatmul.mubr.f32.gmra.mxu0 %v1395
    %v1590 = vpop.f32.mrf.mxu0
    %v1591 = vadd.f32 0.0, %v1590
    %v1592 = vpop.f32.mrf.mxu0
    %1593 = vmatprep.mubr.f32.mxu0 %v1461
    %1594 = vmatmul.mubr.f32.gmra.mxu0 %v1397
    %v1595 = vpop.f32.mrf.mxu0
    %v1596 = vadd.f32 0.0, %v1595
    %v1597 = vpop.f32.mrf.mxu0
    %1598 = vmatprep.mubr.f32.mxu0 %v1464
    %1599 = vmatmul.mubr.f32.gmra.mxu0 %v1399
    %v1600 = vpop.f32.mrf.mxu0
    %v1601 = vadd.f32 0.0, %v1600
    %v1602 = vpop.f32.mrf.mxu0
    %1603 = vmatprep.mubr.f32.mxu0 %v1467
    %1604 = vmatmul.mubr.f32.gmra.mxu0 %v1401
    %v1605 = vpop.f32.mrf.mxu0
    %v1606 = vadd.f32 0.0, %v1605
    %v1607 = vpop.f32.mrf.mxu0
    %1608 = vmatprep.mubr.f32.mxu0 %v1470
    %1609 = vmatmul.mubr.f32.gmra.mxu0 %v1403
    %v1610 = vpop.f32.mrf.mxu0
    %v1611 = vadd.f32 0.0, %v1610
    %v1612 = vpop.f32.mrf.mxu0
    %1613 = vmatprep.mubr.f32.mxu0 %v1473
    %1614 = vmatmul.mubr.f32.gmra.mxu0 %v1405
    %v1615 = vpop.f32.mrf.mxu0
    %v1616 = vadd.f32 0.0, %v1615
    %v1617 = vpop.f32.mrf.mxu0
    %1618 = vmatprep.mubr.f32.mxu0 %v1476
    %1619 = vmatmul.mubr.f32.gmra.mxu0 %v1407
    %v1620 = vpop.f32.mrf.mxu0
    %v1621 = vadd.f32 0.0, %v1620
    %v1622 = vpop.f32.mrf.mxu0
    %1623 = vmatprep.mubr.f32.mxu0 %v1479
    %1624 = vmatmul.mubr.f32.gmra.mxu0 %v1409
    %v1625 = vpop.f32.mrf.mxu0
    %v1626 = vadd.f32 0.0, %v1625
    %v1627 = vpop.f32.mrf.mxu0
    %1628 = vmatprep.mubr.f32.mxu0 %v1482
    %1629 = vmatmul.mubr.f32.gmra.mxu0 %v1411
    %v1630 = vpop.f32.mrf.mxu0
    %v1631 = vadd.f32 0.0, %v1630
    %v1632 = vpop.f32.mrf.mxu0
    %1633 = vmatprep.mubr.f32.mxu0 %v1485
    %1634 = vmatmul.mubr.f32.gmra.mxu0 %v1413
    %v1635 = vpop.f32.mrf.mxu0
    %v1636 = vadd.f32 0.0, %v1635
    %v1637 = vpop.f32.mrf.mxu0
    %1638 = vmatprep.mubr.f32.mxu0 %v1488
    %1639 = vmatmul.mubr.f32.gmra.mxu0 %v1415
    %v1640 = vpop.f32.mrf.mxu0
    %v1641 = vadd.f32 0.0, %v1640
    %v1642 = vpop.f32.mrf.mxu0
    %1643 = vmatprep.mubr.f32.mxu0 %v1491
    %1644 = vmatmul.mubr.f32.gmra.mxu0 %v1417
    %v1645 = vpop.f32.mrf.mxu0
    %v1646 = vadd.f32 0.0, %v1645
    %v1647 = vpop.f32.mrf.mxu0
    %1648 = vmatprep.mubr.f32.mxu0 %v1494
    %1649 = vmatmul.mubr.f32.gmra.mxu0 %v1419
    %v1650 = vpop.f32.mrf.mxu0
    %v1651 = vadd.f32 0.0, %v1650
    %v1652 = vpop.f32.mrf.mxu0
    %1653 = vmatprep.mubr.f32.mxu0 %v1497
    %1654 = vmatmul.mubr.f32.gmra.mxu0 %v1421
    %v1655 = vpop.f32.mrf.mxu0
    %v1656 = vadd.f32 0.0, %v1655
    %v1657 = vpop.f32.mrf.mxu0
    %1658 = vmatprep.mubr.f32.mxu0 %v1500
    %1659 = vmatmul.mubr.f32.gmra.mxu0 %v1423
    %v1660 = vpop.f32.mrf.mxu0
    %v1661 = vadd.f32 0.0, %v1660
    %v1662 = vpop.f32.mrf.mxu0
    %1663 = vmatprep.mubr.f32.mxu0 %v1503
    %1664 = vmatmul.mubr.f32.gmra.mxu0 %v1425
    %v1665 = vpop.f32.mrf.mxu0
    %v1666 = vadd.f32 0.0, %v1665
    %v1667 = vpop.f32.mrf.mxu0
    %1668 = vmatprep.mubr.f32.mxu0 %v1506
    %1669 = vmatmul.mubr.f32.gmra.mxu0 %v1427
    %v1670 = vpop.f32.mrf.mxu0
    %v1671 = vadd.f32 0.0, %v1670
    %v1672 = vpop.f32.mrf.mxu0
    %1673 = vmatprep.mubr.f32.mxu0 %v1509
    %1674 = vmatmul.mubr.f32.gmra.mxu0 %v1429
    %v1675 = vpop.f32.mrf.mxu0
    %v1676 = vadd.f32 0.0, %v1675
    %v1677 = vpop.f32.mrf.mxu0
    %1678 = vmatprep.mubr.f32.mxu0 %v1512
    %1679 = vmatmul.mubr.f32.gmra.mxu0 %v1431
    %v1680 = vpop.f32.mrf.mxu0
    %v1681 = vadd.f32 0.0, %v1680
    %v1682 = vpop.f32.mrf.mxu0
    %1683 = vdwg.mxu0
    %v1684 = vld [vmem:[%s2] sm:$0xf]
    %v1687 = vunpack.c.l.s4 1983009808
    %v1688 = vunpack.c.0.s8 %v1687
    %v1689 = vlaneseq
    %v1690 = vshrl.u32 %v1689, 7
    %v1691 = vsub.s32 %v1688, %v1690
    %v1692 = vrot.slane %v1684, %v1691
    %v1693 = vcombine.high %v1692, %v1692
    %vm1695 = vcmask 277504
    %v1696 = vsel %vm1695, %v1693, 0
    %v1698 = vsel %vm395, %v373, 0
    %1700 = vmatprep.subr.mxu0 0.0
    %1701 = vmatpush1.msra.mxu0 %v368
    %1702 = vmatprep.subr.mxu0 0.0
    %1703 = vmatpush1.msra.mxu0 %v367
    %1704 = vmatprep.subr.mxu0 0.0
    %1705 = vmatpush1.msra.mxu0 %v366
    %1706 = vmatprep.subr.mxu0 0.0
    %1707 = vmatpush1.msra.mxu0 %v365
    %1708 = vmatprep.subr.mxu0 0.0
    %1709 = vmatpush1.msra.mxu0 %v364
    %1710 = vmatprep.subr.mxu0 0.0
    %1711 = vmatpush1.msra.mxu0 %v363
    %1712 = vmatprep.subr.mxu0 0.0
    %1713 = vmatpush1.msra.mxu0 %v362
    %1714 = vmatprep.subr.mxu0 0.0
    %1715 = vmatpush1.msra.mxu0 %v361
    %1716 = vmatprep.subr.mxu0 0.0
    %1717 = vmatpush1.msra.mxu0 %v360
    %1718 = vmatprep.subr.mxu0 0.0
    %1719 = vmatpush1.msra.mxu0 %v359
    %1720 = vmatprep.subr.mxu0 0.0
    %1721 = vmatpush1.msra.mxu0 %v358
    %1722 = vmatprep.subr.mxu0 0.0
    %1723 = vmatpush1.msra.mxu0 %v357
    %1724 = vmatprep.subr.mxu0 0.0
    %1725 = vmatpush1.msra.mxu0 %v356
    %1726 = vmatprep.subr.mxu0 0.0
    %1727 = vmatpush1.msra.mxu0 %v355
    %1728 = vmatprep.subr.mxu0 0.0
    %1729 = vmatpush1.msra.mxu0 %v354
    %1730 = vmatprep.subr.mxu0 0.0
    %1731 = vmatpush1.msra.mxu0 %v353
    %1732 = vmatprep.subr.mxu0 0.0
    %1733 = vmatpush2.msra.mxu0 0.0
    %1734 = vmatprep.subr.mxu0 0.0
    %1735 = vmatpush2.msra.mxu0 0.0
    %1736 = vmatprep.subr.mxu0 0.0
    %1737 = vmatpush2.msra.mxu0 0.0
    %1738 = vmatprep.subr.mxu0 0.0
    %1739 = vmatpush2.msra.mxu0 0.0
    %1740 = vmatprep.subr.mxu0 0.0
    %1741 = vmatpush2.msra.mxu0 0.0
    %1742 = vmatprep.subr.mxu0 0.0
    %1743 = vmatpush2.msra.mxu0 0.0
    %1744 = vmatprep.subr.mxu0 0.0
    %1745 = vmatpush2.msra.mxu0 0.0
    %1746 = vmatprep.subr.mxu0 0.0
    %1747 = vmatpush2.msra.mxu0 0.0
    %1748 = vmatprep.subr.mxu0 0.0
    %1749 = vmatpush2.msra.mxu0 0.0
    %1750 = vmatprep.subr.mxu0 0.0
    %1751 = vmatpush2.msra.mxu0 0.0
    %1752 = vmatprep.subr.mxu0 0.0
    %1753 = vmatpush2.msra.mxu0 0.0
    %1754 = vmatprep.subr.mxu0 0.0
    %1755 = vmatpush2.msra.mxu0 %v1698
    %1756 = vmatprep.subr.mxu0 0.0
    %1757 = vmatpush2.msra.mxu0 %v372
    %1758 = vmatprep.subr.mxu0 0.0
    %1759 = vmatpush2.msra.mxu0 %v371
    %1760 = vmatprep.subr.mxu0 0.0
    %1761 = vmatpush2.msra.mxu0 %v370
    %1762 = vmatprep.subr.mxu0 0.0
    %1763 = vmatpush2.msra.mxu0 %v369
    %1764 = vmatprep.mubr.f32.mxu0 %v1696
    %1765 = vmatmul.mubr.f32.gmra.mxu0 %v1692
    %v1766 = vpop.f32.mrf.mxu0
    %v1767 = vadd.f32 0.0, %v1766
    %v1768 = vpop.f32.mrf.mxu0
    %1769 = vdwg.mxu0
    %v1770 = vld [vmem:[%s11] sm:$0xff]
    %v1771 = vld [vmem:[%s11 + $0x8] sm:$0xff]
    %v1772 = vld [vmem:[%s12] sm:$0x1]
    %v1774 = vlaneseq
    %v1775 = vshrl.u32 %v1774, 7
    %v1776 = vsub.s32 0, %v1775
    %v1777 = vrot.slane %v1772, %v1776
    %v1780 = vsel %vm460, %v1767, 0
    %1782 = vmatprep.subr.mxu0 0.0
    %1783 = vmatpush1.msra.mxu0 0.0
    %1784 = vmatprep.subr.mxu0 0.0
    %1785 = vmatpush1.msra.mxu0 0.0
    %1786 = vmatprep.subr.mxu0 0.0
    %1787 = vmatpush1.msra.mxu0 0.0
    %1788 = vmatprep.subr.mxu0 0.0
    %1789 = vmatpush1.msra.mxu0 0.0
    %1790 = vmatprep.subr.mxu0 0.0
    %1791 = vmatpush1.msra.mxu0 0.0
    %1792 = vmatprep.subr.mxu0 0.0
    %1793 = vmatpush1.msra.mxu0 0.0
    %1794 = vmatprep.subr.mxu0 0.0
    %1795 = vmatpush1.msra.mxu0 0.0
    %1796 = vmatprep.subr.mxu0 0.0
    %1797 = vmatpush1.msra.mxu0 0.0
    %1798 = vmatprep.subr.mxu0 0.0
    %1799 = vmatpush1.msra.mxu0 0.0
    %1800 = vmatprep.subr.mxu0 0.0
    %1801 = vmatpush1.msra.mxu0 0.0
    %1802 = vmatprep.subr.mxu0 0.0
    %1803 = vmatpush1.msra.mxu0 0.0
    %1804 = vmatprep.subr.mxu0 0.0
    %1805 = vmatpush1.msra.mxu0 0.0
    %1806 = vmatprep.subr.mxu0 0.0
    %1807 = vmatpush1.msra.mxu0 0.0
    %1808 = vmatprep.subr.mxu0 0.0
    %1809 = vmatpush1.msra.mxu0 0.0
    %1810 = vmatprep.subr.mxu0 0.0
    %1811 = vmatpush1.msra.mxu0 %v1771
    %1812 = vmatprep.subr.mxu0 0.0
    %1813 = vmatpush1.msra.mxu0 %v1770
    %1814 = vmatprep.subr.mxu0 0.0
    %1815 = vmatpush2.msra.mxu0 0.0
    %1816 = vmatprep.subr.mxu0 0.0
    %1817 = vmatpush2.msra.mxu0 0.0
    %1818 = vmatprep.subr.mxu0 0.0
    %1819 = vmatpush2.msra.mxu0 0.0
    %1820 = vmatprep.subr.mxu0 0.0
    %1821 = vmatpush2.msra.mxu0 0.0
    %1822 = vmatprep.subr.mxu0 0.0
    %1823 = vmatpush2.msra.mxu0 0.0
    %1824 = vmatprep.subr.mxu0 0.0
    %1825 = vmatpush2.msra.mxu0 0.0
    %1826 = vmatprep.subr.mxu0 0.0
    %1827 = vmatpush2.msra.mxu0 0.0
    %1828 = vmatprep.subr.mxu0 0.0
    %1829 = vmatpush2.msra.mxu0 0.0
    %1830 = vmatprep.subr.mxu0 0.0
    %1831 = vmatpush2.msra.mxu0 0.0
    %1832 = vmatprep.subr.mxu0 0.0
    %1833 = vmatpush2.msra.mxu0 0.0
    %1834 = vmatprep.subr.mxu0 0.0
    %1835 = vmatpush2.msra.mxu0 0.0
    %1836 = vmatprep.subr.mxu0 0.0
    %1837 = vmatpush2.msra.mxu0 0.0
    %1838 = vmatprep.subr.mxu0 0.0
    %1839 = vmatpush2.msra.mxu0 0.0
    %1840 = vmatprep.subr.mxu0 0.0
    %1841 = vmatpush2.msra.mxu0 0.0
    %1842 = vmatprep.subr.mxu0 0.0
    %1843 = vmatpush2.msra.mxu0 0.0
    %1844 = vmatprep.subr.mxu0 0.0
    %1845 = vmatpush2.msra.mxu0 0.0
    %1846 = vmatprep.mubr.f32.mxu0 0.0
    %1847 = vmatmul.mubr.f32.gmra.mxu0 %v1780
    %v1848 = vpop.f32.mrf.mxu0
    %v1849 = vadd.f32 %v1777, %v1848
    %v1850 = vpop.f32.mrf.mxu0
    %1851 = vdwg.mxu0
    %v1852 = vmax.f32 %v1849, 0.0
    %v1853 = vld [vmem:[%s13] sm:$0xf]
    %v1854 = vld [vmem:[%s14] sm:$0x1]
    %v1856 = vlaneseq
    %v1857 = vshrl.u32 %v1856, 7
    %v1858 = vsub.s32 0, %v1857
    %v1859 = vrot.slane %v1854, %v1858
    %vm1861 = vcmask 31744
    %v1863 = vsel %vm1861, %v1852, 0
    %v1866 = vsel %vm144, %v1853, 0
    %1868 = vmatprep.subr.mxu0 0.0
    %1869 = vmatpush1.msra.mxu0 0.0
    %1870 = vmatprep.subr.mxu0 0.0
    %1871 = vmatpush1.msra.mxu0 0.0
    %1872 = vmatprep.subr.mxu0 0.0
    %1873 = vmatpush1.msra.mxu0 0.0
    %1874 = vmatprep.subr.mxu0 0.0
    %1875 = vmatpush1.msra.mxu0 0.0
    %1876 = vmatprep.subr.mxu0 0.0
    %1877 = vmatpush1.msra.mxu0 0.0
    %1878 = vmatprep.subr.mxu0 0.0
    %1879 = vmatpush1.msra.mxu0 0.0
    %1880 = vmatprep.subr.mxu0 0.0
    %1881 = vmatpush1.msra.mxu0 0.0
    %1882 = vmatprep.subr.mxu0 0.0
    %1883 = vmatpush1.msra.mxu0 0.0
    %1884 = vmatprep.subr.mxu0 0.0
    %1885 = vmatpush1.msra.mxu0 0.0
    %1886 = vmatprep.subr.mxu0 0.0
    %1887 = vmatpush1.msra.mxu0 0.0
    %1888 = vmatprep.subr.mxu0 0.0
    %1889 = vmatpush1.msra.mxu0 0.0
    %1890 = vmatprep.subr.mxu0 0.0
    %1891 = vmatpush1.msra.mxu0 0.0
    %1892 = vmatprep.subr.mxu0 0.0
    %1893 = vmatpush1.msra.mxu0 0.0
    %1894 = vmatprep.subr.mxu0 0.0
    %1895 = vmatpush1.msra.mxu0 0.0
    %1896 = vmatprep.subr.mxu0 0.0
    %1897 = vmatpush1.msra.mxu0 0.0
    %1898 = vmatprep.subr.mxu0 0.0
    %1899 = vmatpush1.msra.mxu0 %v1866
    %1900 = vmatprep.subr.mxu0 0.0
    %1901 = vmatpush2.msra.mxu0 0.0
    %1902 = vmatprep.subr.mxu0 0.0
    %1903 = vmatpush2.msra.mxu0 0.0
    %1904 = vmatprep.subr.mxu0 0.0
    %1905 = vmatpush2.msra.mxu0 0.0
    %1906 = vmatprep.subr.mxu0 0.0
    %1907 = vmatpush2.msra.mxu0 0.0
    %1908 = vmatprep.subr.mxu0 0.0
    %1909 = vmatpush2.msra.mxu0 0.0
    %1910 = vmatprep.subr.mxu0 0.0
    %1911 = vmatpush2.msra.mxu0 0.0
    %1912 = vmatprep.subr.mxu0 0.0
    %1913 = vmatpush2.msra.mxu0 0.0
    %1914 = vmatprep.subr.mxu0 0.0
    %1915 = vmatpush2.msra.mxu0 0.0
    %1916 = vmatprep.subr.mxu0 0.0
    %1917 = vmatpush2.msra.mxu0 0.0
    %1918 = vmatprep.subr.mxu0 0.0
    %1919 = vmatpush2.msra.mxu0 0.0
    %1920 = vmatprep.subr.mxu0 0.0
    %1921 = vmatpush2.msra.mxu0 0.0
    %1922 = vmatprep.subr.mxu0 0.0
    %1923 = vmatpush2.msra.mxu0 0.0
    %1924 = vmatprep.subr.mxu0 0.0
    %1925 = vmatpush2.msra.mxu0 0.0
    %1926 = vmatprep.subr.mxu0 0.0
    %1927 = vmatpush2.msra.mxu0 0.0
    %1928 = vmatprep.subr.mxu0 0.0
    %1929 = vmatpush2.msra.mxu0 0.0
    %1930 = vmatprep.subr.mxu0 0.0
    %1931 = vmatpush2.msra.mxu0 0.0
    %1932 = vmatprep.mubr.f32.mxu0 0.0
    %1933 = vmatmul.mubr.f32.gmra.mxu0 %v1863
    %v1934 = vpop.f32.mrf.mxu0
    %v1935 = vadd.f32 %v1859, %v1934
    %v1936 = vpop.f32.mrf.mxu0
    %1937 = vdwg.mxu0
    %vm1938 = vcmask 25600
    %v1939 = vsel %vm1938, %v1935, -inf
    %1940 = vmax.xlane.f32.xlu0 %v1939
    %v1941 = vpop.xlane.xlu0 %1940
    %v1942 = vsub.f32 %v1935, %v1941
    %v1943 = vmul.f32 %v1942, 1.442695
    %v1944 = vpow.pop %v1943
    %v1945 = vsel %vm1938, %v1944, 0.0
    %1946 = vadd.xlane.f32.xlu0 %v1945
    %v1947 = vpop.xlane.xlu0 %1946
    %v1948 = vrcp.pop %v1947
    %v1949 = vmul.f32 %v1944, %v1948
    %v1950 = vld [vmem:[%s3] sm:$0xff]
    %v1951 = vld [vmem:[%s3 + $0x8] sm:$0xff]
    %v1952 = vld [vmem:[%s3 + $0x10] sm:$0xff]
    %v1953 = vld [vmem:[%s3 + $0x18] sm:$0xff]
    %v1954 = vld [vmem:[%s3 + $0x20] sm:$0xff]
    %v1955 = vld [vmem:[%s3 + $0x28] sm:$0xff]
    %v1956 = vld [vmem:[%s3 + $0x30] sm:$0xff]
    %v1957 = vld [vmem:[%s3 + $0x38] sm:$0xff]
    %v1958 = vld [vmem:[%s3 + $0x40] sm:$0xff]
    %v1959 = vld [vmem:[%s3 + $0x48] sm:$0xff]
    %v1960 = vld [vmem:[%s3 + $0x50] sm:$0xff]
    %v1961 = vld [vmem:[%s3 + $0x58] sm:$0xff]
    %v1962 = vld [vmem:[%s3 + $0x60] sm:$0xff]
    %v1963 = vld [vmem:[%s3 + $0x68] sm:$0xff]
    %v1964 = vld [vmem:[%s3 + $0x70] sm:$0xff]
    %v1965 = vld [vmem:[%s3 + $0x78] sm:$0xff]
    %v1966 = vld [vmem:[%s3 + $0x80] sm:$0xff]
    %v1967 = vld [vmem:[%s3 + $0x88] sm:$0xff]
    %v1968 = vld [vmem:[%s3 + $0x90] sm:$0xff]
    %v1969 = vld [vmem:[%s3 + $0x98] sm:$0xff]
    %v1970 = vld [vmem:[%s3 + $0xa0] sm:$0x3]
    %vm1971 = vcmask 15360
    %v1973 = vsel %vm1971, %v1950, 0
    %v1976 = vsel %vm1971, %v1951, 0
    %v1979 = vsel %vm1971, %v1952, 0
    %v1982 = vsel %vm1971, %v1953, 0
    %v1985 = vsel %vm1971, %v1954, 0
    %v1988 = vsel %vm1971, %v1955, 0
    %v1991 = vsel %vm1971, %v1956, 0
    %v1994 = vsel %vm1971, %v1957, 0
    %v1997 = vsel %vm1971, %v1958, 0
    %v2000 = vsel %vm1971, %v1959, 0
    %v2003 = vsel %vm1971, %v1960, 0
    %v2006 = vsel %vm1971, %v1961, 0
    %v2009 = vsel %vm1971, %v1962, 0
    %v2012 = vsel %vm1971, %v1963, 0
    %v2015 = vsel %vm1971, %v1964, 0
    %v2018 = vsel %vm1971, %v1965, 0
    %v2021 = vsel %vm1971, %v1966, 0
    %v2024 = vsel %vm1971, %v1967, 0
    %v2027 = vsel %vm1971, %v1968, 0
    %v2030 = vsel %vm1971, %v1969, 0
    %v2033 = vsel %vm1971, %v1970, 0
    %v2036 = vsel %vm395, %v1949, 0
    %2038 = vmatprep.subr.mxu0 0.0
    %2039 = vmatpush1.msra.mxu0 0.0
    %2040 = vmatprep.subr.mxu0 0.0
    %2041 = vmatpush1.msra.mxu0 0.0
    %2042 = vmatprep.subr.mxu0 0.0
    %2043 = vmatpush1.msra.mxu0 0.0
    %2044 = vmatprep.subr.mxu0 0.0
    %2045 = vmatpush1.msra.mxu0 0.0
    %2046 = vmatprep.subr.mxu0 0.0
    %2047 = vmatpush1.msra.mxu0 0.0
    %2048 = vmatprep.subr.mxu0 0.0
    %2049 = vmatpush1.msra.mxu0 0.0
    %2050 = vmatprep.subr.mxu0 0.0
    %2051 = vmatpush1.msra.mxu0 0.0
    %2052 = vmatprep.subr.mxu0 0.0
    %2053 = vmatpush1.msra.mxu0 0.0
    %2054 = vmatprep.subr.mxu0 0.0
    %2055 = vmatpush1.msra.mxu0 0.0
    %2056 = vmatprep.subr.mxu0 0.0
    %2057 = vmatpush1.msra.mxu0 0.0
    %2058 = vmatprep.subr.mxu0 0.0
    %2059 = vmatpush1.msra.mxu0 0.0
    %2060 = vmatprep.subr.mxu0 0.0
    %2061 = vmatpush1.msra.mxu0 0.0
    %2062 = vmatprep.subr.mxu0 0.0
    %2063 = vmatpush1.msra.mxu0 0.0
    %2064 = vmatprep.subr.mxu0 0.0
    %2065 = vmatpush1.msra.mxu0 0.0
    %2066 = vmatprep.subr.mxu0 0.0
    %2067 = vmatpush1.msra.mxu0 0.0
    %2068 = vmatprep.subr.mxu0 0.0
    %2069 = vmatpush1.msra.mxu0 %v2036
    %2070 = vmatprep.subr.mxu0 0.0
    %2071 = vmatpush2.msra.mxu0 0.0
    %2072 = vmatprep.subr.mxu0 0.0
    %2073 = vmatpush2.msra.mxu0 0.0
    %2074 = vmatprep.subr.mxu0 0.0
    %2075 = vmatpush2.msra.mxu0 0.0
    %2076 = vmatprep.subr.mxu0 0.0
    %2077 = vmatpush2.msra.mxu0 0.0
    %2078 = vmatprep.subr.mxu0 0.0
    %2079 = vmatpush2.msra.mxu0 0.0
    %2080 = vmatprep.subr.mxu0 0.0
    %2081 = vmatpush2.msra.mxu0 0.0
    %2082 = vmatprep.subr.mxu0 0.0
    %2083 = vmatpush2.msra.mxu0 0.0
    %2084 = vmatprep.subr.mxu0 0.0
    %2085 = vmatpush2.msra.mxu0 0.0
    %2086 = vmatprep.subr.mxu0 0.0
    %2087 = vmatpush2.msra.mxu0 0.0
    %2088 = vmatprep.subr.mxu0 0.0
    %2089 = vmatpush2.msra.mxu0 0.0
    %2090 = vmatprep.subr.mxu0 0.0
    %2091 = vmatpush2.msra.mxu0 0.0
    %2092 = vmatprep.subr.mxu0 0.0
    %2093 = vmatpush2.msra.mxu0 0.0
    %2094 = vmatprep.subr.mxu0 0.0
    %2095 = vmatpush2.msra.mxu0 0.0
    %2096 = vmatprep.subr.mxu0 0.0
    %2097 = vmatpush2.msra.mxu0 0.0
    %2098 = vmatprep.subr.mxu0 0.0
    %2099 = vmatpush2.msra.mxu0 0.0
    %2100 = vmatprep.subr.mxu0 0.0
    %2101 = vmatpush2.msra.mxu0 0.0
    %2102 = vmatprep.mubr.f32.mxu0 0.0
    %2103 = vmatmul.mubr.f32.gmra.mxu0 %v1973
    %v2104 = vpop.f32.mrf.mxu0
    %v2105 = vadd.f32 0.0, %v2104
    %v2106 = vpop.f32.mrf.mxu0
    %2107 = vmatprep.mubr.f32.mxu0 0.0
    %2108 = vmatmul.mubr.f32.gmra.mxu0 %v1976
    %v2109 = vpop.f32.mrf.mxu0
    %v2110 = vadd.f32 0.0, %v2109
    %v2111 = vpop.f32.mrf.mxu0
    %2112 = vmatprep.mubr.f32.mxu0 0.0
    %2113 = vmatmul.mubr.f32.gmra.mxu0 %v1979
    %v2114 = vpop.f32.mrf.mxu0
    %v2115 = vadd.f32 0.0, %v2114
    %v2116 = vpop.f32.mrf.mxu0
    %2117 = vmatprep.mubr.f32.mxu0 0.0
    %2118 = vmatmul.mubr.f32.gmra.mxu0 %v1982
    %v2119 = vpop.f32.mrf.mxu0
    %v2120 = vadd.f32 0.0, %v2119
    %v2121 = vpop.f32.mrf.mxu0
    %2122 = vmatprep.mubr.f32.mxu0 0.0
    %2123 = vmatmul.mubr.f32.gmra.mxu0 %v1985
    %v2124 = vpop.f32.mrf.mxu0
    %v2125 = vadd.f32 0.0, %v2124
    %v2126 = vpop.f32.mrf.mxu0
    %2127 = vmatprep.mubr.f32.mxu0 0.0
    %2128 = vmatmul.mubr.f32.gmra.mxu0 %v1988
    %v2129 = vpop.f32.mrf.mxu0
    %v2130 = vadd.f32 0.0, %v2129
    %v2131 = vpop.f32.mrf.mxu0
    %2132 = vmatprep.mubr.f32.mxu0 0.0
    %2133 = vmatmul.mubr.f32.gmra.mxu0 %v1991
    %v2134 = vpop.f32.mrf.mxu0
    %v2135 = vadd.f32 0.0, %v2134
    %v2136 = vpop.f32.mrf.mxu0
    %2137 = vmatprep.mubr.f32.mxu0 0.0
    %2138 = vmatmul.mubr.f32.gmra.mxu0 %v1994
    %v2139 = vpop.f32.mrf.mxu0
    %v2140 = vadd.f32 0.0, %v2139
    %v2141 = vpop.f32.mrf.mxu0
    %2142 = vmatprep.mubr.f32.mxu0 0.0
    %2143 = vmatmul.mubr.f32.gmra.mxu0 %v1997
    %v2144 = vpop.f32.mrf.mxu0
    %v2145 = vadd.f32 0.0, %v2144
    %v2146 = vpop.f32.mrf.mxu0
    %2147 = vmatprep.mubr.f32.mxu0 0.0
    %2148 = vmatmul.mubr.f32.gmra.mxu0 %v2000
    %v2149 = vpop.f32.mrf.mxu0
    %v2150 = vadd.f32 0.0, %v2149
    %v2151 = vpop.f32.mrf.mxu0
    %2152 = vmatprep.mubr.f32.mxu0 0.0
    %2153 = vmatmul.mubr.f32.gmra.mxu0 %v2003
    %v2154 = vpop.f32.mrf.mxu0
    %v2155 = vadd.f32 0.0, %v2154
    %v2156 = vpop.f32.mrf.mxu0
    %2157 = vmatprep.mubr.f32.mxu0 0.0
    %2158 = vmatmul.mubr.f32.gmra.mxu0 %v2006
    %v2159 = vpop.f32.mrf.mxu0
    %v2160 = vadd.f32 0.0, %v2159
    %v2161 = vpop.f32.mrf.mxu0
    %2162 = vmatprep.mubr.f32.mxu0 0.0
    %2163 = vmatmul.mubr.f32.gmra.mxu0 %v2009
    %v2164 = vpop.f32.mrf.mxu0
    %v2165 = vadd.f32 0.0, %v2164
    %v2166 = vpop.f32.mrf.mxu0
    %2167 = vmatprep.mubr.f32.mxu0 0.0
    %2168 = vmatmul.mubr.f32.gmra.mxu0 %v2012
    %v2169 = vpop.f32.mrf.mxu0
    %v2170 = vadd.f32 0.0, %v2169
    %v2171 = vpop.f32.mrf.mxu0
    %2172 = vmatprep.mubr.f32.mxu0 0.0
    %2173 = vmatmul.mubr.f32.gmra.mxu0 %v2015
    %v2174 = vpop.f32.mrf.mxu0
    %v2175 = vadd.f32 0.0, %v2174
    %v2176 = vpop.f32.mrf.mxu0
    %2177 = vmatprep.mubr.f32.mxu0 0.0
    %2178 = vmatmul.mubr.f32.gmra.mxu0 %v2018
    %v2179 = vpop.f32.mrf.mxu0
    %v2180 = vadd.f32 0.0, %v2179
    %v2181 = vpop.f32.mrf.mxu0
    %2182 = vmatprep.mubr.f32.mxu0 0.0
    %2183 = vmatmul.mubr.f32.gmra.mxu0 %v2021
    %v2184 = vpop.f32.mrf.mxu0
    %v2185 = vadd.f32 0.0, %v2184
    %v2186 = vpop.f32.mrf.mxu0
    %2187 = vmatprep.mubr.f32.mxu0 0.0
    %2188 = vmatmul.mubr.f32.gmra.mxu0 %v2024
    %v2189 = vpop.f32.mrf.mxu0
    %v2190 = vadd.f32 0.0, %v2189
    %v2191 = vpop.f32.mrf.mxu0
    %2192 = vmatprep.mubr.f32.mxu0 0.0
    %2193 = vmatmul.mubr.f32.gmra.mxu0 %v2027
    %v2194 = vpop.f32.mrf.mxu0
    %v2195 = vadd.f32 0.0, %v2194
    %v2196 = vpop.f32.mrf.mxu0
    %2197 = vmatprep.mubr.f32.mxu0 0.0
    %2198 = vmatmul.mubr.f32.gmra.mxu0 %v2030
    %v2199 = vpop.f32.mrf.mxu0
    %v2200 = vadd.f32 0.0, %v2199
    %v2201 = vpop.f32.mrf.mxu0
    %2202 = vmatprep.mubr.f32.mxu0 0.0
    %2203 = vmatmul.mubr.f32.gmra.mxu0 %v2033
    %v2204 = vpop.f32.mrf.mxu0
    %v2205 = vadd.f32 0.0, %v2204
    %v2206 = vpop.f32.mrf.mxu0
    %2207 = vdwg.mxu0
    %v2208 = vld [vmem:[%s4] sm:$0xf]
    %v2210 = vsel %vm1861, %v2105, 0
    %v2213 = vsel %vm1861, %v2110, 0
    %v2216 = vsel %vm1861, %v2115, 0
    %v2219 = vsel %vm1861, %v2120, 0
    %v2222 = vsel %vm1861, %v2125, 0
    %v2225 = vsel %vm1861, %v2130, 0
    %v2228 = vsel %vm1861, %v2135, 0
    %v2231 = vsel %vm1861, %v2140, 0
    %v2234 = vsel %vm1861, %v2145, 0
    %v2237 = vsel %vm1861, %v2150, 0
    %v2240 = vsel %vm1861, %v2155, 0
    %v2243 = vsel %vm1861, %v2160, 0
    %v2246 = vsel %vm1861, %v2165, 0
    %v2249 = vsel %vm1861, %v2170, 0
    %v2252 = vsel %vm1861, %v2175, 0
    %v2255 = vsel %vm1861, %v2180, 0
    %v2258 = vsel %vm1861, %v2185, 0
    %v2261 = vsel %vm1861, %v2190, 0
    %v2264 = vsel %vm1861, %v2195, 0
    %v2267 = vsel %vm1861, %v2200, 0
    %v2270 = vsel %vm1861, %v2205, 0
    %v2273 = vsel %vm144, %v2208, 0
    %2275 = vmatprep.subr.mxu0 0.0
    %2276 = vmatpush1.msra.mxu0 0.0
    %2277 = vmatprep.subr.mxu0 0.0
    %2278 = vmatpush1.msra.mxu0 0.0
    %2279 = vmatprep.subr.mxu0 0.0
    %2280 = vmatpush1.msra.mxu0 0.0
    %2281 = vmatprep.subr.mxu0 0.0
    %2282 = vmatpush1.msra.mxu0 0.0
    %2283 = vmatprep.subr.mxu0 0.0
    %2284 = vmatpush1.msra.mxu0 0.0
    %2285 = vmatprep.subr.mxu0 0.0
    %2286 = vmatpush1.msra.mxu0 0.0
    %2287 = vmatprep.subr.mxu0 0.0
    %2288 = vmatpush1.msra.mxu0 0.0
    %2289 = vmatprep.subr.mxu0 0.0
    %2290 = vmatpush1.msra.mxu0 0.0
    %2291 = vmatprep.subr.mxu0 0.0
    %2292 = vmatpush1.msra.mxu0 0.0
    %2293 = vmatprep.subr.mxu0 0.0
    %2294 = vmatpush1.msra.mxu0 0.0
    %2295 = vmatprep.subr.mxu0 0.0
    %2296 = vmatpush1.msra.mxu0 0.0
    %2297 = vmatprep.subr.mxu0 0.0
    %2298 = vmatpush1.msra.mxu0 0.0
    %2299 = vmatprep.subr.mxu0 0.0
    %2300 = vmatpush1.msra.mxu0 0.0
    %2301 = vmatprep.subr.mxu0 0.0
    %2302 = vmatpush1.msra.mxu0 0.0
    %2303 = vmatprep.subr.mxu0 0.0
    %2304 = vmatpush1.msra.mxu0 0.0
    %2305 = vmatprep.subr.mxu0 0.0
    %2306 = vmatpush1.msra.mxu0 %v2273
    %2307 = vmatprep.subr.mxu0 0.0
    %2308 = vmatpush2.msra.mxu0 0.0
    %2309 = vmatprep.subr.mxu0 0.0
    %2310 = vmatpush2.msra.mxu0 0.0
    %2311 = vmatprep.subr.mxu0 0.0
    %2312 = vmatpush2.msra.mxu0 0.0
    %2313 = vmatprep.subr.mxu0 0.0
    %2314 = vmatpush2.msra.mxu0 0.0
    %2315 = vmatprep.subr.mxu0 0.0
    %2316 = vmatpush2.msra.mxu0 0.0
    %2317 = vmatprep.subr.mxu0 0.0
    %2318 = vmatpush2.msra.mxu0 0.0
    %2319 = vmatprep.subr.mxu0 0.0
    %2320 = vmatpush2.msra.mxu0 0.0
    %2321 = vmatprep.subr.mxu0 0.0
    %2322 = vmatpush2.msra.mxu0 0.0
    %2323 = vmatprep.subr.mxu0 0.0
    %2324 = vmatpush2.msra.mxu0 0.0
    %2325 = vmatprep.subr.mxu0 0.0
    %2326 = vmatpush2.msra.mxu0 0.0
    %2327 = vmatprep.subr.mxu0 0.0
    %2328 = vmatpush2.msra.mxu0 0.0
    %2329 = vmatprep.subr.mxu0 0.0
    %2330 = vmatpush2.msra.mxu0 0.0
    %2331 = vmatprep.subr.mxu0 0.0
    %2332 = vmatpush2.msra.mxu0 0.0
    %2333 = vmatprep.subr.mxu0 0.0
    %2334 = vmatpush2.msra.mxu0 0.0
    %2335 = vmatprep.subr.mxu0 0.0
    %2336 = vmatpush2.msra.mxu0 0.0
    %2337 = vmatprep.subr.mxu0 0.0
    %2338 = vmatpush2.msra.mxu0 0.0
    %2339 = vmatprep.mubr.f32.mxu0 0.0
    %2340 = vmatmul.mubr.f32.gmra.mxu0 %v2210
    %v2341 = vpop.f32.mrf.mxu0
    %v2342 = vadd.f32 0.0, %v2341
    %v2343 = vpop.f32.mrf.mxu0
    %2344 = vmatprep.mubr.f32.mxu0 0.0
    %2345 = vmatmul.mubr.f32.gmra.mxu0 %v2213
    %v2346 = vpop.f32.mrf.mxu0
    %v2347 = vadd.f32 0.0, %v2346
    %v2348 = vpop.f32.mrf.mxu0
    %2349 = vmatprep.mubr.f32.mxu0 0.0
    %2350 = vmatmul.mubr.f32.gmra.mxu0 %v2216
    %v2351 = vpop.f32.mrf.mxu0
    %v2352 = vadd.f32 0.0, %v2351
    %v2353 = vpop.f32.mrf.mxu0
    %2354 = vmatprep.mubr.f32.mxu0 0.0
    %2355 = vmatmul.mubr.f32.gmra.mxu0 %v2219
    %v2356 = vpop.f32.mrf.mxu0
    %v2357 = vadd.f32 0.0, %v2356
    %v2358 = vpop.f32.mrf.mxu0
    %2359 = vmatprep.mubr.f32.mxu0 0.0
    %2360 = vmatmul.mubr.f32.gmra.mxu0 %v2222
    %v2361 = vpop.f32.mrf.mxu0
    %v2362 = vadd.f32 0.0, %v2361
    %v2363 = vpop.f32.mrf.mxu0
    %2364 = vmatprep.mubr.f32.mxu0 0.0
    %2365 = vmatmul.mubr.f32.gmra.mxu0 %v2225
    %v2366 = vpop.f32.mrf.mxu0
    %v2367 = vadd.f32 0.0, %v2366
    %v2368 = vpop.f32.mrf.mxu0
    %2369 = vmatprep.mubr.f32.mxu0 0.0
    %2370 = vmatmul.mubr.f32.gmra.mxu0 %v2228
    %v2371 = vpop.f32.mrf.mxu0
    %v2372 = vadd.f32 0.0, %v2371
    %v2373 = vpop.f32.mrf.mxu0
    %2374 = vmatprep.mubr.f32.mxu0 0.0
    %2375 = vmatmul.mubr.f32.gmra.mxu0 %v2231
    %v2376 = vpop.f32.mrf.mxu0
    %v2377 = vadd.f32 0.0, %v2376
    %v2378 = vpop.f32.mrf.mxu0
    %2379 = vmatprep.mubr.f32.mxu0 0.0
    %2380 = vmatmul.mubr.f32.gmra.mxu0 %v2234
    %v2381 = vpop.f32.mrf.mxu0
    %v2382 = vadd.f32 0.0, %v2381
    %v2383 = vpop.f32.mrf.mxu0
    %2384 = vmatprep.mubr.f32.mxu0 0.0
    %2385 = vmatmul.mubr.f32.gmra.mxu0 %v2237
    %v2386 = vpop.f32.mrf.mxu0
    %v2387 = vadd.f32 0.0, %v2386
    %v2388 = vpop.f32.mrf.mxu0
    %2389 = vmatprep.mubr.f32.mxu0 0.0
    %2390 = vmatmul.mubr.f32.gmra.mxu0 %v2240
    %v2391 = vpop.f32.mrf.mxu0
    %v2392 = vadd.f32 0.0, %v2391
    %v2393 = vpop.f32.mrf.mxu0
    %2394 = vmatprep.mubr.f32.mxu0 0.0
    %2395 = vmatmul.mubr.f32.gmra.mxu0 %v2243
    %v2396 = vpop.f32.mrf.mxu0
    %v2397 = vadd.f32 0.0, %v2396
    %v2398 = vpop.f32.mrf.mxu0
    %2399 = vmatprep.mubr.f32.mxu0 0.0
    %2400 = vmatmul.mubr.f32.gmra.mxu0 %v2246
    %v2401 = vpop.f32.mrf.mxu0
    %v2402 = vadd.f32 0.0, %v2401
    %v2403 = vpop.f32.mrf.mxu0
    %2404 = vmatprep.mubr.f32.mxu0 0.0
    %2405 = vmatmul.mubr.f32.gmra.mxu0 %v2249
    %v2406 = vpop.f32.mrf.mxu0
    %v2407 = vadd.f32 0.0, %v2406
    %v2408 = vpop.f32.mrf.mxu0
    %2409 = vmatprep.mubr.f32.mxu0 0.0
    %2410 = vmatmul.mubr.f32.gmra.mxu0 %v2252
    %v2411 = vpop.f32.mrf.mxu0
    %v2412 = vadd.f32 0.0, %v2411
    %v2413 = vpop.f32.mrf.mxu0
    %2414 = vmatprep.mubr.f32.mxu0 0.0
    %2415 = vmatmul.mubr.f32.gmra.mxu0 %v2255
    %v2416 = vpop.f32.mrf.mxu0
    %v2417 = vadd.f32 0.0, %v2416
    %v2418 = vpop.f32.mrf.mxu0
    %2419 = vmatprep.mubr.f32.mxu0 0.0
    %2420 = vmatmul.mubr.f32.gmra.mxu0 %v2258
    %v2421 = vpop.f32.mrf.mxu0
    %v2422 = vadd.f32 0.0, %v2421
    %v2423 = vpop.f32.mrf.mxu0
    %2424 = vmatprep.mubr.f32.mxu0 0.0
    %2425 = vmatmul.mubr.f32.gmra.mxu0 %v2261
    %v2426 = vpop.f32.mrf.mxu0
    %v2427 = vadd.f32 0.0, %v2426
    %v2428 = vpop.f32.mrf.mxu0
    %2429 = vmatprep.mubr.f32.mxu0 0.0
    %2430 = vmatmul.mubr.f32.gmra.mxu0 %v2264
    %v2431 = vpop.f32.mrf.mxu0
    %v2432 = vadd.f32 0.0, %v2431
    %v2433 = vpop.f32.mrf.mxu0
    %2434 = vmatprep.mubr.f32.mxu0 0.0
    %2435 = vmatmul.mubr.f32.gmra.mxu0 %v2267
    %v2436 = vpop.f32.mrf.mxu0
    %v2437 = vadd.f32 0.0, %v2436
    %v2438 = vpop.f32.mrf.mxu0
    %2439 = vmatprep.mubr.f32.mxu0 0.0
    %2440 = vmatmul.mubr.f32.gmra.mxu0 %v2270
    %v2441 = vpop.f32.mrf.mxu0
    %v2442 = vadd.f32 0.0, %v2441
    %v2443 = vpop.f32.mrf.mxu0
    %2444 = vdwg.mxu0
    %v2445 = vmul.f32 %v2342, %v1581
    %v2446 = vmul.f32 %v2347, %v1586
    %v2447 = vmul.f32 %v2352, %v1591
    %v2448 = vmul.f32 %v2357, %v1596
    %v2449 = vmul.f32 %v2362, %v1601
    %v2450 = vmul.f32 %v2367, %v1606
    %v2451 = vmul.f32 %v2372, %v1611
    %v2452 = vmul.f32 %v2377, %v1616
    %v2453 = vmul.f32 %v2382, %v1621
    %v2454 = vmul.f32 %v2387, %v1626
    %v2455 = vmul.f32 %v2392, %v1631
    %v2456 = vmul.f32 %v2397, %v1636
    %v2457 = vmul.f32 %v2402, %v1641
    %v2458 = vmul.f32 %v2407, %v1646
    %v2459 = vmul.f32 %v2412, %v1651
    %v2460 = vmul.f32 %v2417, %v1656
    %v2461 = vmul.f32 %v2422, %v1661
    %v2462 = vmul.f32 %v2427, %v1666
    %v2463 = vmul.f32 %v2432, %v1671
    %v2464 = vmul.f32 %v2437, %v1676
    %v2465 = vmul.f32 %v2442, %v1681
    %v2466 = vld [vmem:[%s5] sm:$0xff]
    %v2467 = vld [vmem:[%s5 + $0x8] sm:$0xff]
    %v2468 = vld [vmem:[%s5 + $0x10] sm:$0xff]
    %v2469 = vld [vmem:[%s5 + $0x18] sm:$0xff]
    %v2470 = vld [vmem:[%s5 + $0x20] sm:$0xff]
    %v2471 = vld [vmem:[%s5 + $0x28] sm:$0xff]
    %v2472 = vld [vmem:[%s5 + $0x30] sm:$0xff]
    %v2473 = vld [vmem:[%s5 + $0x38] sm:$0xff]
    %v2474 = vld [vmem:[%s5 + $0x40] sm:$0xff]
    %v2475 = vld [vmem:[%s5 + $0x48] sm:$0xff]
    %v2476 = vld [vmem:[%s5 + $0x50] sm:$0xff]
    %v2477 = vld [vmem:[%s5 + $0x58] sm:$0xff]
    %v2478 = vld [vmem:[%s5 + $0x60] sm:$0xff]
    %v2479 = vld [vmem:[%s5 + $0x68] sm:$0xff]
    %v2480 = vld [vmem:[%s5 + $0x70] sm:$0xff]
    %v2481 = vld [vmem:[%s5 + $0x78] sm:$0xff]
    %v2482 = vld [vmem:[%s10] sm:$0xf]
    %v2484 = vsel %vm144, %v2482, 0
    %2486 = vmatprep.subr.mxu0 0.0
    %2487 = vmatpush1.msra.mxu0 0.0
    %2488 = vmatprep.subr.mxu0 0.0
    %2489 = vmatpush1.msra.mxu0 0.0
    %2490 = vmatprep.subr.mxu0 0.0
    %2491 = vmatpush1.msra.mxu0 0.0
    %2492 = vmatprep.subr.mxu0 0.0
    %2493 = vmatpush1.msra.mxu0 0.0
    %2494 = vmatprep.subr.mxu0 0.0
    %2495 = vmatpush1.msra.mxu0 0.0
    %2496 = vmatprep.subr.mxu0 0.0
    %2497 = vmatpush1.msra.mxu0 0.0
    %2498 = vmatprep.subr.mxu0 0.0
    %2499 = vmatpush1.msra.mxu0 0.0
    %2500 = vmatprep.subr.mxu0 0.0
    %2501 = vmatpush1.msra.mxu0 0.0
    %2502 = vmatprep.subr.mxu0 0.0
    %2503 = vmatpush1.msra.mxu0 0.0
    %2504 = vmatprep.subr.mxu0 0.0
    %2505 = vmatpush1.msra.mxu0 0.0
    %2506 = vmatprep.subr.mxu0 0.0
    %2507 = vmatpush1.msra.mxu0 0.0
    %2508 = vmatprep.subr.mxu0 0.0
    %2509 = vmatpush1.msra.mxu0 0.0
    %2510 = vmatprep.subr.mxu0 0.0
    %2511 = vmatpush1.msra.mxu0 0.0
    %2512 = vmatprep.subr.mxu0 0.0
    %2513 = vmatpush1.msra.mxu0 0.0
    %2514 = vmatprep.subr.mxu0 0.0
    %2515 = vmatpush1.msra.mxu0 0.0
    %2516 = vmatprep.subr.mxu0 0.0
    %2517 = vmatpush1.msra.mxu0 %v2484
    %2518 = vmatprep.subr.mxu0 0.0
    %2519 = vmatpush2.msra.mxu0 0.0
    %2520 = vmatprep.subr.mxu0 0.0
    %2521 = vmatpush2.msra.mxu0 0.0
    %2522 = vmatprep.subr.mxu0 0.0
    %2523 = vmatpush2.msra.mxu0 0.0
    %2524 = vmatprep.subr.mxu0 0.0
    %2525 = vmatpush2.msra.mxu0 0.0
    %2526 = vmatprep.subr.mxu0 0.0
    %2527 = vmatpush2.msra.mxu0 0.0
    %2528 = vmatprep.subr.mxu0 0.0
    %2529 = vmatpush2.msra.mxu0 0.0
    %2530 = vmatprep.subr.mxu0 0.0
    %2531 = vmatpush2.msra.mxu0 0.0
    %2532 = vmatprep.subr.mxu0 0.0
    %2533 = vmatpush2.msra.mxu0 0.0
    %2534 = vmatprep.subr.mxu0 0.0
    %2535 = vmatpush2.msra.mxu0 0.0
    %2536 = vmatprep.subr.mxu0 0.0
    %2537 = vmatpush2.msra.mxu0 0.0
    %2538 = vmatprep.subr.mxu0 0.0
    %2539 = vmatpush2.msra.mxu0 0.0
    %2540 = vmatprep.subr.mxu0 0.0
    %2541 = vmatpush2.msra.mxu0 0.0
    %2542 = vmatprep.subr.mxu0 0.0
    %2543 = vmatpush2.msra.mxu0 0.0
    %2544 = vmatprep.subr.mxu0 0.0
    %2545 = vmatpush2.msra.mxu0 0.0
    %2546 = vmatprep.subr.mxu0 0.0
    %2547 = vmatpush2.msra.mxu0 0.0
    %2548 = vmatprep.subr.mxu0 0.0
    %2549 = vmatpush2.msra.mxu0 0.0
    %2550 = vmatprep.mubr.f32.mxu0 0.0
    %2551 = vmatmul.mubr.f32.gmra.mxu0 %v2210
    %v2552 = vpop.f32.mrf.mxu0
    %v2553 = vadd.f32 0.0, %v2552
    %v2554 = vpop.f32.mrf.mxu0
    %2555 = vmatprep.mubr.f32.mxu0 0.0
    %2556 = vmatmul.mubr.f32.gmra.mxu0 %v2213
    %v2557 = vpop.f32.mrf.mxu0
    %v2558 = vadd.f32 0.0, %v2557
    %v2559 = vpop.f32.mrf.mxu0
    %2560 = vmatprep.mubr.f32.mxu0 0.0
    %2561 = vmatmul.mubr.f32.gmra.mxu0 %v2216
    %v2562 = vpop.f32.mrf.mxu0
    %v2563 = vadd.f32 0.0, %v2562
    %v2564 = vpop.f32.mrf.mxu0
    %2565 = vmatprep.mubr.f32.mxu0 0.0
    %2566 = vmatmul.mubr.f32.gmra.mxu0 %v2219
    %v2567 = vpop.f32.mrf.mxu0
    %v2568 = vadd.f32 0.0, %v2567
    %v2569 = vpop.f32.mrf.mxu0
    %2570 = vmatprep.mubr.f32.mxu0 0.0
    %2571 = vmatmul.mubr.f32.gmra.mxu0 %v2222
    %v2572 = vpop.f32.mrf.mxu0
    %v2573 = vadd.f32 0.0, %v2572
    %v2574 = vpop.f32.mrf.mxu0
    %2575 = vmatprep.mubr.f32.mxu0 0.0
    %2576 = vmatmul.mubr.f32.gmra.mxu0 %v2225
    %v2577 = vpop.f32.mrf.mxu0
    %v2578 = vadd.f32 0.0, %v2577
    %v2579 = vpop.f32.mrf.mxu0
    %2580 = vmatprep.mubr.f32.mxu0 0.0
    %2581 = vmatmul.mubr.f32.gmra.mxu0 %v2228
    %v2582 = vpop.f32.mrf.mxu0
    %v2583 = vadd.f32 0.0, %v2582
    %v2584 = vpop.f32.mrf.mxu0
    %2585 = vmatprep.mubr.f32.mxu0 0.0
    %2586 = vmatmul.mubr.f32.gmra.mxu0 %v2231
    %v2587 = vpop.f32.mrf.mxu0
    %v2588 = vadd.f32 0.0, %v2587
    %v2589 = vpop.f32.mrf.mxu0
    %2590 = vmatprep.mubr.f32.mxu0 0.0
    %2591 = vmatmul.mubr.f32.gmra.mxu0 %v2234
    %v2592 = vpop.f32.mrf.mxu0
    %v2593 = vadd.f32 0.0, %v2592
    %v2594 = vpop.f32.mrf.mxu0
    %2595 = vmatprep.mubr.f32.mxu0 0.0
    %2596 = vmatmul.mubr.f32.gmra.mxu0 %v2237
    %v2597 = vpop.f32.mrf.mxu0
    %v2598 = vadd.f32 0.0, %v2597
    %v2599 = vpop.f32.mrf.mxu0
    %2600 = vmatprep.mubr.f32.mxu0 0.0
    %2601 = vmatmul.mubr.f32.gmra.mxu0 %v2240
    %v2602 = vpop.f32.mrf.mxu0
    %v2603 = vadd.f32 0.0, %v2602
    %v2604 = vpop.f32.mrf.mxu0
    %2605 = vmatprep.mubr.f32.mxu0 0.0
    %2606 = vmatmul.mubr.f32.gmra.mxu0 %v2243
    %v2607 = vpop.f32.mrf.mxu0
    %v2608 = vadd.f32 0.0, %v2607
    %v2609 = vpop.f32.mrf.mxu0
    %2610 = vmatprep.mubr.f32.mxu0 0.0
    %2611 = vmatmul.mubr.f32.gmra.mxu0 %v2246
    %v2612 = vpop.f32.mrf.mxu0
    %v2613 = vadd.f32 0.0, %v2612
    %v2614 = vpop.f32.mrf.mxu0
    %2615 = vmatprep.mubr.f32.mxu0 0.0
    %2616 = vmatmul.mubr.f32.gmra.mxu0 %v2249
    %v2617 = vpop.f32.mrf.mxu0
    %v2618 = vadd.f32 0.0, %v2617
    %v2619 = vpop.f32.mrf.mxu0
    %2620 = vmatprep.mubr.f32.mxu0 0.0
    %2621 = vmatmul.mubr.f32.gmra.mxu0 %v2252
    %v2622 = vpop.f32.mrf.mxu0
    %v2623 = vadd.f32 0.0, %v2622
    %v2624 = vpop.f32.mrf.mxu0
    %2625 = vmatprep.mubr.f32.mxu0 0.0
    %2626 = vmatmul.mubr.f32.gmra.mxu0 %v2255
    %v2627 = vpop.f32.mrf.mxu0
    %v2628 = vadd.f32 0.0, %v2627
    %v2629 = vpop.f32.mrf.mxu0
    %2630 = vmatprep.mubr.f32.mxu0 0.0
    %2631 = vmatmul.mubr.f32.gmra.mxu0 %v2258
    %v2632 = vpop.f32.mrf.mxu0
    %v2633 = vadd.f32 0.0, %v2632
    %v2634 = vpop.f32.mrf.mxu0
    %2635 = vmatprep.mubr.f32.mxu0 0.0
    %2636 = vmatmul.mubr.f32.gmra.mxu0 %v2261
    %v2637 = vpop.f32.mrf.mxu0
    %v2638 = vadd.f32 0.0, %v2637
    %v2639 = vpop.f32.mrf.mxu0
    %2640 = vmatprep.mubr.f32.mxu0 0.0
    %2641 = vmatmul.mubr.f32.gmra.mxu0 %v2264
    %v2642 = vpop.f32.mrf.mxu0
    %v2643 = vadd.f32 0.0, %v2642
    %v2644 = vpop.f32.mrf.mxu0
    %2645 = vmatprep.mubr.f32.mxu0 0.0
    %2646 = vmatmul.mubr.f32.gmra.mxu0 %v2267
    %v2647 = vpop.f32.mrf.mxu0
    %v2648 = vadd.f32 0.0, %v2647
    %v2649 = vpop.f32.mrf.mxu0
    %2650 = vmatprep.mubr.f32.mxu0 0.0
    %2651 = vmatmul.mubr.f32.gmra.mxu0 %v2270
    %v2652 = vpop.f32.mrf.mxu0
    %v2653 = vadd.f32 0.0, %v2652
    %v2654 = vpop.f32.mrf.mxu0
    %2655 = vdwg.mxu0
    %2656 = vmatprep.subr.mxu0 0.0
    %2657 = vmatpush1.msra.mxu0 %v2481
    %2658 = vmatprep.subr.mxu0 0.0
    %2659 = vmatpush1.msra.mxu0 %v2480
    %2660 = vmatprep.subr.mxu0 0.0
    %2661 = vmatpush1.msra.mxu0 %v2479
    %2662 = vmatprep.subr.mxu0 0.0
    %2663 = vmatpush1.msra.mxu0 %v2478
    %2664 = vmatprep.subr.mxu0 0.0
    %2665 = vmatpush1.msra.mxu0 %v2477
    %2666 = vmatprep.subr.mxu0 0.0
    %2667 = vmatpush1.msra.mxu0 %v2476
    %2668 = vmatprep.subr.mxu0 0.0
    %2669 = vmatpush1.msra.mxu0 %v2475
    %2670 = vmatprep.subr.mxu0 0.0
    %2671 = vmatpush1.msra.mxu0 %v2474
    %2672 = vmatprep.subr.mxu0 0.0
    %2673 = vmatpush1.msra.mxu0 %v2473
    %2674 = vmatprep.subr.mxu0 0.0
    %2675 = vmatpush1.msra.mxu0 %v2472
    %2676 = vmatprep.subr.mxu0 0.0
    %2677 = vmatpush1.msra.mxu0 %v2471
    %2678 = vmatprep.subr.mxu0 0.0
    %2679 = vmatpush1.msra.mxu0 %v2470
    %2680 = vmatprep.subr.mxu0 0.0
    %2681 = vmatpush1.msra.mxu0 %v2469
    %2682 = vmatprep.subr.mxu0 0.0
    %2683 = vmatpush1.msra.mxu0 %v2468
    %2684 = vmatprep.subr.mxu0 0.0
    %2685 = vmatpush1.msra.mxu0 %v2467
    %2686 = vmatprep.subr.mxu0 0.0
    %2687 = vmatpush1.msra.mxu0 %v2466
    %2688 = vmatprep.subr.mxu0 0.0
    %2689 = vmatpush2.msra.mxu0 0.0
    %2690 = vmatprep.subr.mxu0 0.0
    %2691 = vmatpush2.msra.mxu0 0.0
    %2692 = vmatprep.subr.mxu0 0.0
    %2693 = vmatpush2.msra.mxu0 0.0
    %2694 = vmatprep.subr.mxu0 0.0
    %2695 = vmatpush2.msra.mxu0 0.0
    %2696 = vmatprep.subr.mxu0 0.0
    %2697 = vmatpush2.msra.mxu0 0.0
    %2698 = vmatprep.subr.mxu0 0.0
    %2699 = vmatpush2.msra.mxu0 0.0
    %2700 = vmatprep.subr.mxu0 0.0
    %2701 = vmatpush2.msra.mxu0 0.0
    %2702 = vmatprep.subr.mxu0 0.0
    %2703 = vmatpush2.msra.mxu0 0.0
    %2704 = vmatprep.subr.mxu0 0.0
    %2705 = vmatpush2.msra.mxu0 0.0
    %2706 = vmatprep.subr.mxu0 0.0
    %2707 = vmatpush2.msra.mxu0 0.0
    %2708 = vmatprep.subr.mxu0 0.0
    %2709 = vmatpush2.msra.mxu0 0.0
    %2710 = vmatprep.subr.mxu0 0.0
    %2711 = vmatpush2.msra.mxu0 0.0
    %2712 = vmatprep.subr.mxu0 0.0
    %2713 = vmatpush2.msra.mxu0 0.0
    %2714 = vmatprep.subr.mxu0 0.0
    %2715 = vmatpush2.msra.mxu0 0.0
    %2716 = vmatprep.subr.mxu0 0.0
    %2717 = vmatpush2.msra.mxu0 0.0
    %2718 = vmatprep.subr.mxu0 0.0
    %2719 = vmatpush2.msra.mxu0 0.0
    %2720 = vmatprep.mubr.f32.mxu0 0.0
    %2721 = vmatmul.mubr.f32.gmra.mxu0 %v2445
    %v2722 = vpop.f32.mrf.mxu0
    %v2723 = vadd.f32 %v2553, %v2722
    %v2724 = vpop.f32.mrf.mxu0
    %2725 = vmatprep.mubr.f32.mxu0 0.0
    %2726 = vmatmul.mubr.f32.gmra.mxu0 %v2446
    %v2727 = vpop.f32.mrf.mxu0
    %v2728 = vadd.f32 %v2558, %v2727
    %v2729 = vpop.f32.mrf.mxu0
    %2730 = vmatprep.mubr.f32.mxu0 0.0
    %2731 = vmatmul.mubr.f32.gmra.mxu0 %v2447
    %v2732 = vpop.f32.mrf.mxu0
    %v2733 = vadd.f32 %v2563, %v2732
    %v2734 = vpop.f32.mrf.mxu0
    %2735 = vmatprep.mubr.f32.mxu0 0.0
    %2736 = vmatmul.mubr.f32.gmra.mxu0 %v2448
    %v2737 = vpop.f32.mrf.mxu0
    %v2738 = vadd.f32 %v2568, %v2737
    %v2739 = vpop.f32.mrf.mxu0
    %2740 = vmatprep.mubr.f32.mxu0 0.0
    %2741 = vmatmul.mubr.f32.gmra.mxu0 %v2449
    %v2742 = vpop.f32.mrf.mxu0
    %v2743 = vadd.f32 %v2573, %v2742
    %v2744 = vpop.f32.mrf.mxu0
    %2745 = vmatprep.mubr.f32.mxu0 0.0
    %2746 = vmatmul.mubr.f32.gmra.mxu0 %v2450
    %v2747 = vpop.f32.mrf.mxu0
    %v2748 = vadd.f32 %v2578, %v2747
    %v2749 = vpop.f32.mrf.mxu0
    %2750 = vmatprep.mubr.f32.mxu0 0.0
    %2751 = vmatmul.mubr.f32.gmra.mxu0 %v2451
    %v2752 = vpop.f32.mrf.mxu0
    %v2753 = vadd.f32 %v2583, %v2752
    %v2754 = vpop.f32.mrf.mxu0
    %2755 = vmatprep.mubr.f32.mxu0 0.0
    %2756 = vmatmul.mubr.f32.gmra.mxu0 %v2452
    %v2757 = vpop.f32.mrf.mxu0
    %v2758 = vadd.f32 %v2588, %v2757
    %v2759 = vpop.f32.mrf.mxu0
    %2760 = vmatprep.mubr.f32.mxu0 0.0
    %2761 = vmatmul.mubr.f32.gmra.mxu0 %v2453
    %v2762 = vpop.f32.mrf.mxu0
    %v2763 = vadd.f32 %v2593, %v2762
    %v2764 = vpop.f32.mrf.mxu0
    %2765 = vmatprep.mubr.f32.mxu0 0.0
    %2766 = vmatmul.mubr.f32.gmra.mxu0 %v2454
    %v2767 = vpop.f32.mrf.mxu0
    %v2768 = vadd.f32 %v2598, %v2767
    %v2769 = vpop.f32.mrf.mxu0
    %2770 = vmatprep.mubr.f32.mxu0 0.0
    %2771 = vmatmul.mubr.f32.gmra.mxu0 %v2455
    %v2772 = vpop.f32.mrf.mxu0
    %v2773 = vadd.f32 %v2603, %v2772
    %v2774 = vpop.f32.mrf.mxu0
    %2775 = vmatprep.mubr.f32.mxu0 0.0
    %2776 = vmatmul.mubr.f32.gmra.mxu0 %v2456
    %v2777 = vpop.f32.mrf.mxu0
    %v2778 = vadd.f32 %v2608, %v2777
    %v2779 = vpop.f32.mrf.mxu0
    %2780 = vmatprep.mubr.f32.mxu0 0.0
    %2781 = vmatmul.mubr.f32.gmra.mxu0 %v2457
    %v2782 = vpop.f32.mrf.mxu0
    %v2783 = vadd.f32 %v2613, %v2782
    %v2784 = vpop.f32.mrf.mxu0
    %2785 = vmatprep.mubr.f32.mxu0 0.0
    %2786 = vmatmul.mubr.f32.gmra.mxu0 %v2458
    %v2787 = vpop.f32.mrf.mxu0
    %v2788 = vadd.f32 %v2618, %v2787
    %v2789 = vpop.f32.mrf.mxu0
    %2790 = vmatprep.mubr.f32.mxu0 0.0
    %2791 = vmatmul.mubr.f32.gmra.mxu0 %v2459
    %v2792 = vpop.f32.mrf.mxu0
    %v2793 = vadd.f32 %v2623, %v2792
    %v2794 = vpop.f32.mrf.mxu0
    %2795 = vmatprep.mubr.f32.mxu0 0.0
    %2796 = vmatmul.mubr.f32.gmra.mxu0 %v2460
    %v2797 = vpop.f32.mrf.mxu0
    %v2798 = vadd.f32 %v2628, %v2797
    %v2799 = vpop.f32.mrf.mxu0
    %2800 = vmatprep.mubr.f32.mxu0 0.0
    %2801 = vmatmul.mubr.f32.gmra.mxu0 %v2461
    %v2802 = vpop.f32.mrf.mxu0
    %v2803 = vadd.f32 %v2633, %v2802
    %v2804 = vpop.f32.mrf.mxu0
    %2805 = vmatprep.mubr.f32.mxu0 0.0
    %2806 = vmatmul.mubr.f32.gmra.mxu0 %v2462
    %v2807 = vpop.f32.mrf.mxu0
    %v2808 = vadd.f32 %v2638, %v2807
    %v2809 = vpop.f32.mrf.mxu0
    %2810 = vmatprep.mubr.f32.mxu0 0.0
    %2811 = vmatmul.mubr.f32.gmra.mxu0 %v2463
    %v2812 = vpop.f32.mrf.mxu0
    %v2813 = vadd.f32 %v2643, %v2812
    %v2814 = vpop.f32.mrf.mxu0
    %2815 = vmatprep.mubr.f32.mxu0 0.0
    %2816 = vmatmul.mubr.f32.gmra.mxu0 %v2464
    %v2817 = vpop.f32.mrf.mxu0
    %v2818 = vadd.f32 %v2648, %v2817
    %v2819 = vpop.f32.mrf.mxu0
    %2820 = vmatprep.mubr.f32.mxu0 0.0
    %2821 = vmatmul.mubr.f32.gmra.mxu0 %v2465
    %v2822 = vpop.f32.mrf.mxu0
    %v2823 = vadd.f32 %v2653, %v2822
    %v2824 = vpop.f32.mrf.mxu0
    %2825 = vdwg.mxu0
    %v2826 = vld [vmem:[%s15] sm:$0x1]
    %v2828 = vlaneseq
    %v2829 = vshrl.u32 %v2828, 7
    %v2830 = vsub.s32 0, %v2829
    %v2831 = vrot.slane %v2826, %v2830
    %v2833 = vmul.f32 %v2723, %v2831
    %v2834 = vmul.f32 %v2728, %v2831
    %v2835 = vmul.f32 %v2733, %v2831
    %v2836 = vmul.f32 %v2738, %v2831
    %v2837 = vmul.f32 %v2743, %v2831
    %v2838 = vmul.f32 %v2748, %v2831
    %v2839 = vmul.f32 %v2753, %v2831
    %v2840 = vmul.f32 %v2758, %v2831
    %v2841 = vmul.f32 %v2763, %v2831
    %v2842 = vmul.f32 %v2768, %v2831
    %v2843 = vmul.f32 %v2773, %v2831
    %v2844 = vmul.f32 %v2778, %v2831
    %v2845 = vmul.f32 %v2783, %v2831
    %v2846 = vmul.f32 %v2788, %v2831
    %v2847 = vmul.f32 %v2793, %v2831
    %v2848 = vmul.f32 %v2798, %v2831
    %v2849 = vmul.f32 %v2803, %v2831
    %v2850 = vmul.f32 %v2808, %v2831
    %v2851 = vmul.f32 %v2813, %v2831
    %v2852 = vmul.f32 %v2818, %v2831
    %v2853 = vmul.f32 %v2823, %v2831
    %v2854 = vld [vmem:[%s16] sm:$0x1]
    %v2856 = vlaneseq
    %v2857 = vshrl.u32 %v2856, 7
    %v2858 = vsub.s32 0, %v2857
    %v2859 = vrot.slane %v2854, %v2858
    %v2861 = vadd.f32 %v2833, %v2859
    %v2862 = vadd.f32 %v2834, %v2859
    %v2863 = vadd.f32 %v2835, %v2859
    %v2864 = vadd.f32 %v2836, %v2859
    %v2865 = vadd.f32 %v2837, %v2859
    %v2866 = vadd.f32 %v2838, %v2859
    %v2867 = vadd.f32 %v2839, %v2859
    %v2868 = vadd.f32 %v2840, %v2859
    %v2869 = vadd.f32 %v2841, %v2859
    %v2870 = vadd.f32 %v2842, %v2859
    %v2871 = vadd.f32 %v2843, %v2859
    %v2872 = vadd.f32 %v2844, %v2859
    %v2873 = vadd.f32 %v2845, %v2859
    %v2874 = vadd.f32 %v2846, %v2859
    %v2875 = vadd.f32 %v2847, %v2859
    %v2876 = vadd.f32 %v2848, %v2859
    %v2877 = vadd.f32 %v2849, %v2859
    %v2878 = vadd.f32 %v2850, %v2859
    %v2879 = vadd.f32 %v2851, %v2859
    %v2880 = vadd.f32 %v2852, %v2859
    %v2881 = vadd.f32 %v2853, %v2859
    %v2882 = vmax.f32 %v2861, 0.0
    %v2883 = vmax.f32 %v2862, 0.0
    %v2884 = vmax.f32 %v2863, 0.0
    %v2885 = vmax.f32 %v2864, 0.0
    %v2886 = vmax.f32 %v2865, 0.0
    %v2887 = vmax.f32 %v2866, 0.0
    %v2888 = vmax.f32 %v2867, 0.0
    %v2889 = vmax.f32 %v2868, 0.0
    %v2890 = vmax.f32 %v2869, 0.0
    %v2891 = vmax.f32 %v2870, 0.0
    %v2892 = vmax.f32 %v2871, 0.0
    %v2893 = vmax.f32 %v2872, 0.0
    %v2894 = vmax.f32 %v2873, 0.0
    %v2895 = vmax.f32 %v2874, 0.0
    %v2896 = vmax.f32 %v2875, 0.0
    %v2897 = vmax.f32 %v2876, 0.0
    %v2898 = vmax.f32 %v2877, 0.0
    %v2899 = vmax.f32 %v2878, 0.0
    %v2900 = vmax.f32 %v2879, 0.0
    %v2901 = vmax.f32 %v2880, 0.0
    %v2902 = vmax.f32 %v2881, 0.0
    %v2904 = vsel %vm395, %v2902, 0
    %2906 = vmatprep.subr.mxu0 0.0
    %2907 = vmatpush1.msra.mxu0 %v2897
    %2908 = vmatprep.subr.mxu0 0.0
    %2909 = vmatpush1.msra.mxu0 %v2896
    %2910 = vmatprep.subr.mxu0 0.0
    %2911 = vmatpush1.msra.mxu0 %v2895
    %2912 = vmatprep.subr.mxu0 0.0
    %2913 = vmatpush1.msra.mxu0 %v2894
    %2914 = vmatprep.subr.mxu0 0.0
    %2915 = vmatpush1.msra.mxu0 %v2893
    %2916 = vmatprep.subr.mxu0 0.0
    %2917 = vmatpush1.msra.mxu0 %v2892
    %2918 = vmatprep.subr.mxu0 0.0
    %2919 = vmatpush1.msra.mxu0 %v2891
    %2920 = vmatprep.subr.mxu0 0.0
    %2921 = vmatpush1.msra.mxu0 %v2890
    %2922 = vmatprep.subr.mxu0 0.0
    %2923 = vmatpush1.msra.mxu0 %v2889
    %2924 = vmatprep.subr.mxu0 0.0
    %2925 = vmatpush1.msra.mxu0 %v2888
    %2926 = vmatprep.subr.mxu0 0.0
    %2927 = vmatpush1.msra.mxu0 %v2887
    %2928 = vmatprep.subr.mxu0 0.0
    %2929 = vmatpush1.msra.mxu0 %v2886
    %2930 = vmatprep.subr.mxu0 0.0
    %2931 = vmatpush1.msra.mxu0 %v2885
    %2932 = vmatprep.subr.mxu0 0.0
    %2933 = vmatpush1.msra.mxu0 %v2884
    %2934 = vmatprep.subr.mxu0 0.0
    %2935 = vmatpush1.msra.mxu0 %v2883
    %2936 = vmatprep.subr.mxu0 0.0
    %2937 = vmatpush1.msra.mxu0 %v2882
    %2938 = vmatprep.subr.mxu0 0.0
    %2939 = vmatpush2.msra.mxu0 0.0
    %2940 = vmatprep.subr.mxu0 0.0
    %2941 = vmatpush2.msra.mxu0 0.0
    %2942 = vmatprep.subr.mxu0 0.0
    %2943 = vmatpush2.msra.mxu0 0.0
    %2944 = vmatprep.subr.mxu0 0.0
    %2945 = vmatpush2.msra.mxu0 0.0
    %2946 = vmatprep.subr.mxu0 0.0
    %2947 = vmatpush2.msra.mxu0 0.0
    %2948 = vmatprep.subr.mxu0 0.0
    %2949 = vmatpush2.msra.mxu0 0.0
    %2950 = vmatprep.subr.mxu0 0.0
    %2951 = vmatpush2.msra.mxu0 0.0
    %2952 = vmatprep.subr.mxu0 0.0
    %2953 = vmatpush2.msra.mxu0 0.0
    %2954 = vmatprep.subr.mxu0 0.0
    %2955 = vmatpush2.msra.mxu0 0.0
    %2956 = vmatprep.subr.mxu0 0.0
    %2957 = vmatpush2.msra.mxu0 0.0
    %2958 = vmatprep.subr.mxu0 0.0
    %2959 = vmatpush2.msra.mxu0 0.0
    %2960 = vmatprep.subr.mxu0 0.0
    %2961 = vmatpush2.msra.mxu0 %v2904
    %2962 = vmatprep.subr.mxu0 0.0
    %2963 = vmatpush2.msra.mxu0 %v2901
    %2964 = vmatprep.subr.mxu0 0.0
    %2965 = vmatpush2.msra.mxu0 %v2900
    %2966 = vmatprep.subr.mxu0 0.0
    %2967 = vmatpush2.msra.mxu0 %v2899
    %2968 = vmatprep.subr.mxu0 0.0
    %2969 = vmatpush2.msra.mxu0 %v2898
    %2970 = vmatprep.mubr.f32.mxu0 %v1696
    %2971 = vmatmul.mubr.f32.gmra.mxu0 %v1692
    %v2972 = vpop.f32.mrf.mxu0
    %v2973 = vadd.f32 0.0, %v2972
    %v2974 = vpop.f32.mrf.mxu0
    %2975 = vdwg.mxu0
    %vm2976 = vcmask 254976
    %2977 = vst.msk [vmem:[#allocation3] sm:$0x3] %vm2976, %v2973
    // Predicated region
    $region70: #{network_forward.1} parent=1 // pred_check
      _
    $region71: #{network_forward.1} parent=1 // pred_check_branch
      %2979 = sbr.rel (0) target = $region73
    $region72: #{network_forward.1} parent=1 // pred_region
      %s2981 = ssub.s32 32, 32
      %2982 = vsyncadd [#allocation4], %s2981
      %s2984 = sshll.u32 [#allocation3], 4
      %s2985 = int_to_ptr.vmem [resolvable:$true] %s2984
      %2987 = dma.vmem_to_hbm [thread:$0]  %s2985, 32, %s17, [#allocation4]
    $region73: #{network_forward.1} parent=1 // pred_fallthru
      _
    // Predicated region
    $region74: #{network_forward.1} parent=1 // pred_check
      _
    $region75: #{network_forward.1} parent=1 // pred_check_branch
      %2989 = sbr.rel (0) target = $region77
    $region76: #{network_forward.1} parent=1 // pred_region
      %2990 = dma.done [#allocation4], 32
    $region77: #{network_forward.1} parent=1 // pred_fallthru
      _
    %2991 = vsyncpa [#allocation4], 1

</llo_original>
